<compile_context>
chip_gen: v7x
topology: tpu7x:2x2x1
jax: 0.10.0
libtpu: 0.0.40
codegen_flags: <defaults>
</compile_context>

<pallas_src>
import functools

import jax
import jax.numpy as jnp
from jax import lax
from jax.experimental import pallas as pl
from jax.experimental.pallas import tpu as pltpu


def _round_up(n, m):
    return ((n + m - 1) // m) * m


def _vmem_limit_bytes():
    """Generation-aware VMEM limit: most of physical capacity, with headroom."""
    try:
        cap = int(pltpu.get_tpu_info().vmem_capacity_bytes)
    except Exception:  # info query unavailable -> conservative default
        cap = 64 * 1024 * 1024
    return max(32 * 1024 * 1024, min(int(cap * 0.85), 110 * 1024 * 1024))


def _fused_kernel(a_ref, lf_ref, rft_ref, w1_ref, w2_ref, w1t_ref, w2t_ref,
                  bl_ref, brt_ref,
                  conv_l_ref, conv_rt_ref,
                  kl_ref, krt_ref, *, compute_dtype):
    """One hop (both branches) per grid step; state carried in VMEM scratch.

    Left branch is kept in natural layout; right branch is kept fully transposed
    so only a single adjacency copy A (mlp, mrp) is needed.
    """
    h = pl.program_id(0)

    @pl.when(h == 0)
    def _init():
        kl_ref[...] = lf_ref[...]          # Korder_l   (mlp, dp) f32
        krt_ref[...] = rft_ref[...]        # Korder_r^T (dp, mrp) f32
        # Bias hoisted: total bias over all hops = hop*(b1+b2), pre-scaled in the
        # wrapper.  Padded rows/cols also get bias; they are sliced off afterwards.
        conv_l_ref[...] = jnp.broadcast_to(bl_ref[...], conv_l_ref.shape)
        conv_rt_ref[...] = jnp.broadcast_to(brt_ref[...], conv_rt_ref.shape)

    a = a_ref[...]                         # (mlp, mrp) compute_dtype
    kl = kl_ref[...]                       # (mlp, dp)  f32
    krt = krt_ref[...]                     # (dp, mrp)  f32
    krt_c = krt.astype(compute_dtype)

    # ---- left branch (natural layout): g_l = A @ Korder_r ----
    # contract A dim1 with Korder_r^T dim1  (rhs-transposed matmul, MXU native)
    g_l = lax.dot_general(a, krt_c, (((1,), (1,)), ((), ())),
                          preferred_element_type=jnp.float32)       # (mlp, dp)
    m_l = g_l * kl
    conv_l_ref[...] += (
        jnp.dot(g_l.astype(compute_dtype), w1_ref[...],
                preferred_element_type=jnp.float32)
        + jnp.dot(m_l.astype(compute_dtype), w2_ref[...],
                  preferred_element_type=jnp.float32))
    kl_ref[...] = g_l + m_l

    # ---- right branch (transposed layout): g_r^T = Korder_l^T @ A ----
    klt_c = jnp.transpose(kl).astype(compute_dtype)                 # (dp, mlp) skinny XLU transpose
    g_rt = jnp.dot(klt_c, a, preferred_element_type=jnp.float32)    # (dp, mrp)
    m_rt = g_rt * krt
    conv_rt_ref[...] += (
        jnp.dot(w1t_ref[...], g_rt.astype(compute_dtype),
                preferred_element_type=jnp.float32)
        + jnp.dot(w2t_ref[...], m_rt.astype(compute_dtype),
                  preferred_element_type=jnp.float32))
    krt_ref[...] = g_rt + m_rt


def _build_call(kernel, *, mlp, mrp, dp, op, hop, single_buffer):
    def spec(shape):
        if single_buffer:
            # Constant index maps -> nothing to pipeline; single buffer halves VMEM.
            return pl.BlockSpec(shape, lambda h: (0, 0),
                                pipeline_mode=pl.Buffered(1))
        return pl.BlockSpec(shape, lambda h: (0, 0))

    return pl.pallas_call(
        kernel,
        out_shape=(jax.ShapeDtypeStruct((mlp, op), jnp.float32),   # conv_l
                   jax.ShapeDtypeStruct((op, mrp), jnp.float32)),  # conv_r^T
        grid_spec=pltpu.PrefetchScalarGridSpec(
            num_scalar_prefetch=0,
            grid=(hop,),
            in_specs=[
                spec((mlp, mrp)),   # A (resident, compute_dtype)
                spec((mlp, dp)),    # l_feat  (f32, init only)
                spec((dp, mrp)),    # r_feat^T (f32, init only)
                spec((dp, op)),     # W1
                spec((dp, op)),     # W2
                spec((op, dp)),     # W1^T
                spec((op, dp)),     # W2^T
                spec((1, op)),      # hop*(b1+b2)
                spec((op, 1)),      # (hop*(b1+b2))^T
            ],
            out_specs=[
                spec((mlp, op)),    # conv_l accumulator
                spec((op, mrp)),    # conv_r^T accumulator
            ],
            scratch_shapes=[
                pltpu.VMEM((mlp, dp), jnp.float32),   # carried Korder_l
                pltpu.VMEM((dp, mrp), jnp.float32),   # carried Korder_r^T
            ],
        ),
        compiler_params=pltpu.CompilerParams(
            # Hop axis carries VMEM state -> must be sequential.
            dimension_semantics=("arbitrary",),
            vmem_limit_bytes=_vmem_limit_bytes(),
        ),
    )


def graph_inception_forward(l_feat, r_feat, network, params, hop, *,
                            compute_dtype=jnp.bfloat16):
    """JAX/Pallas equivalent of graph_inception.forward (eval mode).

    l_feat : (N_l, Din), r_feat : (N_r, Din), network : (N_l, N_r) dense adjacency
    params : (W1 (Din,Dout), b1 (1,Dout), W2 (Din,Dout), b2 (1,Dout))
    compute_dtype : MXU streaming dtype (bf16 default; use jnp.float32 for
                    bit-faithful semantics).  Accumulators/state are always f32.
    Returns (conv_l (N_l, Dout), conv_r (N_r, Dout)).
    """
    assert hop >= 1
    w1, b1, w2, b2 = params
    n_l, din = l_feat.shape
    n_r = r_feat.shape[0]
    dout = w1.shape[1]

    # Pad everything to lane/sublane-friendly multiples of 128 (sliced off at end).
    mlp = _round_up(n_l, 128)
    mrp = _round_up(n_r, 128)
    dp = _round_up(din, 128)
    op = _round_up(dout, 128)

    a = (jnp.zeros((mlp, mrp), jnp.float32)
         .at[:n_l, :n_r].set(network.astype(jnp.float32))).astype(compute_dtype)

    lf = jnp.zeros((mlp, dp), jnp.float32).at[:n_l, :din].set(
        l_feat.astype(jnp.float32))
    rft = jnp.zeros((dp, mrp), jnp.float32).at[:din, :n_r].set(
        r_feat.astype(jnp.float32).T)

    w1p = jnp.zeros((dp, op), jnp.float32).at[:din, :dout].set(w1.astype(jnp.float32))
    w2p = jnp.zeros((dp, op), jnp.float32).at[:din, :dout].set(w2.astype(jnp.float32))
    w1tp = w1p.T.astype(compute_dtype)
    w2tp = w2p.T.astype(compute_dtype)
    w1p = w1p.astype(compute_dtype)
    w2p = w2p.astype(compute_dtype)

    # Total bias over all hops = hop * (b1 + b2); kernel adds it once at hop==0.
    bsum = (jnp.reshape(b1, (1, -1)) + jnp.reshape(b2, (1, -1))).astype(jnp.float32)
    bsum = bsum * jnp.float32(hop)
    bl = jnp.zeros((1, op), jnp.float32).at[:, :dout].set(bsum)
    brt = jnp.zeros((op, 1), jnp.float32).at[:dout, :].set(bsum.T)

    kernel = functools.partial(_fused_kernel, compute_dtype=compute_dtype)
    args = (a, lf, rft, w1p, w2p, w1tp, w2tp, bl, brt)

    try:
        call = _build_call(kernel, mlp=mlp, mrp=mrp, dp=dp, op=op, hop=hop,
                           single_buffer=True)
        conv_l_p, conv_rt_p = call(*args)
    except Exception:
        # pipeline_mode=pl.Buffered(1) unsupported in this JAX/Mosaic build:
        # fall back to default double-buffering (correct, just more VMEM).
        call = _build_call(kernel, mlp=mlp, mrp=mrp, dp=dp, op=op, hop=hop,
                           single_buffer=False)
        conv_l_p, conv_rt_p = call(*args)

    conv_l = conv_l_p[:n_l, :dout]
    conv_r = conv_rt_p[:dout, :n_r].T
    return conv_l, conv_r


def _reference_forward(l_feat, r_feat, network, params, hop):
    """Pure-JAX re-implementation of the PyTorch forward (eval mode)."""
    w1, b1, w2, b2 = params
    hp = jax.lax.Precision.HIGHEST
    mm = lambda a, b: jnp.dot(a, b, precision=hp)
    lin1 = lambda x: mm(x, w1) + jnp.reshape(b1, (1, -1))
    lin2 = lambda x: mm(x, w2) + jnp.reshape(b2, (1, -1))
    net_l, net_r = network, network.T
    korder = [[l_feat], [r_feat]]
    conv = [[], []]
    for i in range(hop):
        x0 = korder[1][i]
        x1 = korder[0][i]
        g_l = mm(net_l, x0)
        conv[0].append(lin1(g_l))
        g_r = mm(net_r, x1)
        conv[1].append(lin1(g_r))
        m_l = mm(net_l, x0) * x1
        m_r = mm(net_r, x1) * x0
        conv[0].append(lin2(m_l))
        conv[1].append(lin2(m_r))
        korder[0].append(g_l + m_l)
        korder[1].append(g_r + m_r)
    out = []
    for c in conv:
        t = c[0]
        for z in range(1, len(c)):
            t = t + c[z]
        out.append(t)
    return out


if __name__ == "__main__":
    key = jax.random.PRNGKey(0)
    k_l, k_r, k_net, k_w1, k_b1, k_w2, k_b2 = jax.random.split(key, 7)

    # Small shapes consistent with the module:
    #   l_feat (N_l, Din), r_feat (N_r, Din), network (N_l, N_r)
    N_L, N_R, DIN, DOUT, HOP = 48, 40, 12, 20, 2

    l_feat = jax.random.normal(k_l, (N_L, DIN), jnp.float32)
    r_feat = jax.random.normal(k_r, (N_R, DIN), jnp.float32)
    # Sparse-ish adjacency, materialized dense (same semantics as torch.sparse.mm).
    dense = jax.random.uniform(k_net, (N_L, N_R), jnp.float32)
    network = jnp.where(dense > 0.7, dense, 0.0).astype(jnp.float32)

    # Linear(inputdims, outputdims) parameters stored as (Din, Dout): y = x @ W + b.
    w1 = jax.random.normal(k_w1, (DIN, DOUT), jnp.float32) * 0.1
    b1 = jax.random.normal(k_b1, (1, DOUT), jnp.float32) * 0.1
    w2 = jax.random.normal(k_w2, (DIN, DOUT), jnp.float32) * 0.1
    b2 = jax.random.normal(k_b2, (1, DOUT), jnp.float32) * 0.1
    params = (w1, b1, w2, b2)

    ref_l, ref_r = _reference_forward(l_feat, r_feat, network, params, HOP)

    # f32 path: bit-faithful to the PyTorch math (within matmul tolerance).
    conv_l, conv_r = graph_inception_forward(l_feat, r_feat, network, params, HOP,
                                             compute_dtype=jnp.float32)
    conv_l = jax.block_until_ready(conv_l)
    conv_r = jax.block_until_ready(conv_r)
    assert conv_l.shape == (N_L, DOUT) and conv_r.shape == (N_R, DOUT)
    assert jnp.allclose(conv_l, ref_l, atol=1e-2, rtol=1e-3), \
        float(jnp.max(jnp.abs(conv_l - ref_l)))
    assert jnp.allclose(conv_r, ref_r, atol=1e-2, rtol=1e-3), \
        float(jnp.max(jnp.abs(conv_r - ref_r)))

    # Default bf16 MXU-streaming path (f32 accumulation): compile/run + coarse check.
    bl16, br16 = graph_inception_forward(l_feat, r_feat, network, params, HOP)
    bl16 = jax.block_until_ready(bl16)
    br16 = jax.block_until_ready(br16)
    assert float(jnp.max(jnp.abs(bl16 - ref_l))) < 0.1 * (1.0 + float(jnp.max(jnp.abs(ref_l))))
    assert float(jnp.max(jnp.abs(br16 - ref_r))) < 0.1 * (1.0 + float(jnp.max(jnp.abs(ref_r))))

    print("KERNEL_OK")
</pallas_src>

<mosaic_0001>
module attributes {stable_mosaic.version = 11 : i64} {
  func.func @_fused_kernel(%arg0: i32, %arg1: memref<128x128xf32, #tpu.memory_space<vmem>>, %arg2: memref<128x128xf32, #tpu.memory_space<vmem>>, %arg3: memref<128x128xf32, #tpu.memory_space<vmem>>, %arg4: memref<128x128xf32, #tpu.memory_space<vmem>>, %arg5: memref<128x128xf32, #tpu.memory_space<vmem>>, %arg6: memref<128x128xf32, #tpu.memory_space<vmem>>, %arg7: memref<128x128xf32, #tpu.memory_space<vmem>>, %arg8: memref<1x128xf32, #tpu.memory_space<vmem>>, %arg9: memref<128x1xf32, #tpu.memory_space<vmem>>, %arg10: memref<128x128xf32, #tpu.memory_space<vmem>>, %arg11: memref<128x128xf32, #tpu.memory_space<vmem>>, %arg12: memref<128x128xf32, #tpu.memory_space<vmem>>, %arg13: memref<128x128xf32, #tpu.memory_space<vmem>>) attributes {dimension_semantics = [#tpu.dimension_semantics<arbitrary>], iteration_bounds = array<i64: 2>, scalar_prefetch = 0 : i64, scratch_operands = 2 : i64, tpu.core_type = #tpu.core_type<tc>, window_params = [{pipeline_mode = #tpu.pipeline_mode<synchronous>, transform_indices = @transform_0, window_bounds = array<i64: 128, 128>}, {pipeline_mode = #tpu.pipeline_mode<synchronous>, transform_indices = @transform_1, window_bounds = array<i64: 128, 128>}, {pipeline_mode = #tpu.pipeline_mode<synchronous>, transform_indices = @transform_2, window_bounds = array<i64: 128, 128>}, {pipeline_mode = #tpu.pipeline_mode<synchronous>, transform_indices = @transform_3, window_bounds = array<i64: 128, 128>}, {pipeline_mode = #tpu.pipeline_mode<synchronous>, transform_indices = @transform_4, window_bounds = array<i64: 128, 128>}, {pipeline_mode = #tpu.pipeline_mode<synchronous>, transform_indices = @transform_5, window_bounds = array<i64: 128, 128>}, {pipeline_mode = #tpu.pipeline_mode<synchronous>, transform_indices = @transform_6, window_bounds = array<i64: 128, 128>}, {pipeline_mode = #tpu.pipeline_mode<synchronous>, transform_indices = @transform_7, window_bounds = array<i64: 1, 128>}, {pipeline_mode = #tpu.pipeline_mode<synchronous>, transform_indices = @transform_8, window_bounds = array<i64: 128, 1>}, {pipeline_mode = #tpu.pipeline_mode<synchronous>, transform_indices = @transform_9, window_bounds = array<i64: 128, 128>}, {pipeline_mode = #tpu.pipeline_mode<synchronous>, transform_indices = @transform_10, window_bounds = array<i64: 128, 128>}]} {
    %c0_i32 = arith.constant 0 : i32
    %0 = arith.cmpi eq, %arg0, %c0_i32 : i32
    %1 = arith.extui %0 : i1 to i32
    %c0_i32_0 = arith.constant 0 : i32
    %2 = arith.cmpi ne, %1, %c0_i32_0 : i32
    scf.if %2 {
      %c0_31 = arith.constant 0 : index
      %c0_32 = arith.constant 0 : index
      %31 = vector.load %arg2[%c0_31, %c0_32] : memref<128x128xf32, #tpu.memory_space<vmem>>, vector<128x128xf32>
      %c0_33 = arith.constant 0 : index
      %c0_34 = arith.constant 0 : index
      %32 = vector.load %arg12[%c0_33, %c0_34] : memref<128x128xf32, #tpu.memory_space<vmem>>, vector<128x128xf32>
      tpu.vector_store %arg12[%c0_33, %c0_34], %31 {strides = array<i32>} : memref<128x128xf32, #tpu.memory_space<vmem>>, vector<128x128xf32>,
      %c0_35 = arith.constant 0 : index
      %c0_36 = arith.constant 0 : index
      %33 = vector.load %arg3[%c0_35, %c0_36] : memref<128x128xf32, #tpu.memory_space<vmem>>, vector<128x128xf32>
      %c0_37 = arith.constant 0 : index
      %c0_38 = arith.constant 0 : index
      %34 = vector.load %arg13[%c0_37, %c0_38] : memref<128x128xf32, #tpu.memory_space<vmem>>, vector<128x128xf32>
      tpu.vector_store %arg13[%c0_37, %c0_38], %33 {strides = array<i32>} : memref<128x128xf32, #tpu.memory_space<vmem>>, vector<128x128xf32>,
      %c0_39 = arith.constant 0 : index
      %c0_40 = arith.constant 0 : index
      %35 = vector.load %arg8[%c0_39, %c0_40] : memref<1x128xf32, #tpu.memory_space<vmem>>, vector<1x128xf32>
      %36 = vector.shape_cast %35 : vector<1x128xf32> to vector<1x128xf32>
      %37 = vector.broadcast %36 : vector<1x128xf32> to vector<128x128xf32>
      %c0_41 = arith.constant 0 : index
      %c0_42 = arith.constant 0 : index
      %38 = vector.load %arg10[%c0_41, %c0_42] : memref<128x128xf32, #tpu.memory_space<vmem>>, vector<128x128xf32>
      tpu.vector_store %arg10[%c0_41, %c0_42], %37 {strides = array<i32>} : memref<128x128xf32, #tpu.memory_space<vmem>>, vector<128x128xf32>,
      %c0_43 = arith.constant 0 : index
      %c0_44 = arith.constant 0 : index
      %39 = vector.load %arg9[%c0_43, %c0_44] : memref<128x1xf32, #tpu.memory_space<vmem>>, vector<128x1xf32>
      %40 = vector.shape_cast %39 : vector<128x1xf32> to vector<128x1xf32>
      %41 = vector.broadcast %40 : vector<128x1xf32> to vector<128x128xf32>
      %c0_45 = arith.constant 0 : index
      %c0_46 = arith.constant 0 : index
      %42 = vector.load %arg11[%c0_45, %c0_46] : memref<128x128xf32, #tpu.memory_space<vmem>>, vector<128x128xf32>
      tpu.vector_store %arg11[%c0_45, %c0_46], %41 {strides = array<i32>} : memref<128x128xf32, #tpu.memory_space<vmem>>, vector<128x128xf32>,
    } else {
    }
    %c0 = arith.constant 0 : index
    %c0_1 = arith.constant 0 : index
    %3 = vector.load %arg1[%c0, %c0_1] : memref<128x128xf32, #tpu.memory_space<vmem>>, vector<128x128xf32>
    %c0_2 = arith.constant 0 : index
    %c0_3 = arith.constant 0 : index
    %4 = vector.load %arg12[%c0_2, %c0_3] : memref<128x128xf32, #tpu.memory_space<vmem>>, vector<128x128xf32>
    %c0_4 = arith.constant 0 : index
    %c0_5 = arith.constant 0 : index
    %5 = vector.load %arg13[%c0_4, %c0_5] : memref<128x128xf32, #tpu.memory_space<vmem>>, vector<128x128xf32>
    %cst = arith.constant dense<0.000000e+00> : vector<128x128xf32>
    %6 = tpu.matmul %3, %5, %cst {dimension_numbers = #tpu.dot_dimension_numbers<[1], [1], [0], [0], [0, 0, 1, 0], [], []>} : vector<128x128xf32>, vector<128x128xf32>, vector<128x128xf32> -> vector<128x128xf32>
    %7 = arith.mulf %6, %4 : vector<128x128xf32>
    %c0_6 = arith.constant 0 : index
    %c0_7 = arith.constant 0 : index
    %8 = vector.load %arg10[%c0_6, %c0_7] : memref<128x128xf32, #tpu.memory_space<vmem>>, vector<128x128xf32>
    %c0_8 = arith.constant 0 : index
    %c0_9 = arith.constant 0 : index
    %9 = vector.load %arg4[%c0_8, %c0_9] : memref<128x128xf32, #tpu.memory_space<vmem>>, vector<128x128xf32>
    %cst_10 = arith.constant dense<0.000000e+00> : vector<128x128xf32>
    %10 = tpu.matmul %6, %9, %cst_10 {dimension_numbers = #tpu.dot_dimension_numbers<[1], [0], [0], [1], [0, 0, 1, 1], [], []>} : vector<128x128xf32>, vector<128x128xf32>, vector<128x128xf32> -> vector<128x128xf32>
    %c0_11 = arith.constant 0 : index
    %c0_12 = arith.constant 0 : index
    %11 = vector.load %arg5[%c0_11, %c0_12] : memref<128x128xf32, #tpu.memory_space<vmem>>, vector<128x128xf32>
    %cst_13 = arith.constant dense<0.000000e+00> : vector<128x128xf32>
    %12 = tpu.matmul %7, %11, %cst_13 {dimension_numbers = #tpu.dot_dimension_numbers<[1], [0], [0], [1], [0, 0, 1, 1], [], []>} : vector<128x128xf32>, vector<128x128xf32>, vector<128x128xf32> -> vector<128x128xf32>
    %13 = arith.addf %10, %12 : vector<128x128xf32>
    %14 = arith.addf %8, %13 : vector<128x128xf32>
    %c0_14 = arith.constant 0 : index
    %c0_15 = arith.constant 0 : index
    %15 = vector.load %arg10[%c0_14, %c0_15] : memref<128x128xf32, #tpu.memory_space<vmem>>, vector<128x128xf32>
    tpu.vector_store %arg10[%c0_14, %c0_15], %14 {strides = array<i32>} : memref<128x128xf32, #tpu.memory_space<vmem>>, vector<128x128xf32>,
    %16 = arith.addf %6, %7 : vector<128x128xf32>
    %c0_16 = arith.constant 0 : index
    %c0_17 = arith.constant 0 : index
    %17 = vector.load %arg12[%c0_16, %c0_17] : memref<128x128xf32, #tpu.memory_space<vmem>>, vector<128x128xf32>
    tpu.vector_store %arg12[%c0_16, %c0_17], %16 {strides = array<i32>} : memref<128x128xf32, #tpu.memory_space<vmem>>, vector<128x128xf32>,
    %18 = tpu.transpose %4, [1, 0] : vector<128x128xf32> -> vector<128x128xf32>
    %cst_18 = arith.constant dense<0.000000e+00> : vector<128x128xf32>
    %19 = tpu.matmul %18, %3, %cst_18 {dimension_numbers = #tpu.dot_dimension_numbers<[1], [0], [0], [1], [0, 0, 1, 1], [], []>} : vector<128x128xf32>, vector<128x128xf32>, vector<128x128xf32> -> vector<128x128xf32>
    %20 = arith.mulf %19, %5 : vector<128x128xf32>
    %c0_19 = arith.constant 0 : index
    %c0_20 = arith.constant 0 : index
    %21 = vector.load %arg11[%c0_19, %c0_20] : memref<128x128xf32, #tpu.memory_space<vmem>>, vector<128x128xf32>
    %c0_21 = arith.constant 0 : index
    %c0_22 = arith.constant 0 : index
    %22 = vector.load %arg6[%c0_21, %c0_22] : memref<128x128xf32, #tpu.memory_space<vmem>>, vector<128x128xf32>
    %cst_23 = arith.constant dense<0.000000e+00> : vector<128x128xf32>
    %23 = tpu.matmul %22, %19, %cst_23 {dimension_numbers = #tpu.dot_dimension_numbers<[1], [0], [0], [1], [0, 0, 1, 1], [], []>} : vector<128x128xf32>, vector<128x128xf32>, vector<128x128xf32> -> vector<128x128xf32>
    %c0_24 = arith.constant 0 : index
    %c0_25 = arith.constant 0 : index
    %24 = vector.load %arg7[%c0_24, %c0_25] : memref<128x128xf32, #tpu.memory_space<vmem>>, vector<128x128xf32>
    %cst_26 = arith.constant dense<0.000000e+00> : vector<128x128xf32>
    %25 = tpu.matmul %24, %20, %cst_26 {dimension_numbers = #tpu.dot_dimension_numbers<[1], [0], [0], [1], [0, 0, 1, 1], [], []>} : vector<128x128xf32>, vector<128x128xf32>, vector<128x128xf32> -> vector<128x128xf32>
    %26 = arith.addf %23, %25 : vector<128x128xf32>
    %27 = arith.addf %21, %26 : vector<128x128xf32>
    %c0_27 = arith.constant 0 : index
    %c0_28 = arith.constant 0 : index
    %28 = vector.load %arg11[%c0_27, %c0_28] : memref<128x128xf32, #tpu.memory_space<vmem>>, vector<128x128xf32>
    tpu.vector_store %arg11[%c0_27, %c0_28], %27 {strides = array<i32>} : memref<128x128xf32, #tpu.memory_space<vmem>>, vector<128x128xf32>,
    %29 = arith.addf %19, %20 : vector<128x128xf32>
    %c0_29 = arith.constant 0 : index
    %c0_30 = arith.constant 0 : index
    %30 = vector.load %arg13[%c0_29, %c0_30] : memref<128x128xf32, #tpu.memory_space<vmem>>, vector<128x128xf32>
    tpu.vector_store %arg13[%c0_29, %c0_30], %29 {strides = array<i32>} : memref<128x128xf32, #tpu.memory_space<vmem>>, vector<128x128xf32>,
    return
  }
  func.func @transform_0(%arg0: i32) -> (i32, i32) {
    %c0_i32 = arith.constant 0 : i32
    %c0_i32_0 = arith.constant 0 : i32
    %c0_i32_1 = arith.constant 0 : i32
    return %c0_i32, %c0_i32_0 : i32, i32
  }
  func.func @transform_1(%arg0: i32) -> (i32, i32) {
    %c0_i32 = arith.constant 0 : i32
    %c0_i32_0 = arith.constant 0 : i32
    %c0_i32_1 = arith.constant 0 : i32
    return %c0_i32, %c0_i32_0 : i32, i32
  }
  func.func @transform_2(%arg0: i32) -> (i32, i32) {
    %c0_i32 = arith.constant 0 : i32
    %c0_i32_0 = arith.constant 0 : i32
    %c0_i32_1 = arith.constant 0 : i32
    return %c0_i32, %c0_i32_0 : i32, i32
  }
  func.func @transform_3(%arg0: i32) -> (i32, i32) {
    %c0_i32 = arith.constant 0 : i32
    %c0_i32_0 = arith.constant 0 : i32
    %c0_i32_1 = arith.constant 0 : i32
    return %c0_i32, %c0_i32_0 : i32, i32
  }
  func.func @transform_4(%arg0: i32) -> (i32, i32) {
    %c0_i32 = arith.constant 0 : i32
    %c0_i32_0 = arith.constant 0 : i32
    %c0_i32_1 = arith.constant 0 : i32
    return %c0_i32, %c0_i32_0 : i32, i32
  }
  func.func @transform_5(%arg0: i32) -> (i32, i32) {
    %c0_i32 = arith.constant 0 : i32
    %c0_i32_0 = arith.constant 0 : i32
    %c0_i32_1 = arith.constant 0 : i32
    return %c0_i32, %c0_i32_0 : i32, i32
  }
  func.func @transform_6(%arg0: i32) -> (i32, i32) {
    %c0_i32 = arith.constant 0 : i32
    %c0_i32_0 = arith.constant 0 : i32
    %c0_i32_1 = arith.constant 0 : i32
    return %c0_i32, %c0_i32_0 : i32, i32
  }
  func.func @transform_7(%arg0: i32) -> (i32, i32) {
    %c0_i32 = arith.constant 0 : i32
    %c0_i32_0 = arith.constant 0 : i32
    %c0_i32_1 = arith.constant 0 : i32
    return %c0_i32, %c0_i32_0 : i32, i32
  }
  func.func @transform_8(%arg0: i32) -> (i32, i32) {
    %c0_i32 = arith.constant 0 : i32
    %c0_i32_0 = arith.constant 0 : i32
    %c0_i32_1 = arith.constant 0 : i32
    return %c0_i32, %c0_i32_0 : i32, i32
  }
  func.func @transform_9(%arg0: i32) -> (i32, i32) {
    %c0_i32 = arith.constant 0 : i32
    %c0_i32_0 = arith.constant 0 : i32
    %c0_i32_1 = arith.constant 0 : i32
    return %c0_i32, %c0_i32_0 : i32, i32
  }
  func.func @transform_10(%arg0: i32) -> (i32, i32) {
    %c0_i32 = arith.constant 0 : i32
    %c0_i32_0 = arith.constant 0 : i32
    %c0_i32_1 = arith.constant 0 : i32
    return %c0_i32, %c0_i32_0 : i32, i32
  }
}

module attributes {stable_mosaic.version = 11 : i64} {
  func.func @_fused_kernel(%arg0: i32, %arg1: memref<128x128xf32, #tpu.memory_space<vmem>>, %arg2: memref<128x128xf32, #tpu.memory_space<vmem>>, %arg3: memref<128x128xf32, #tpu.memory_space<vmem>>, %arg4: memref<128x128xf32, #tpu.memory_space<vmem>>, %arg5: memref<128x128xf32, #tpu.memory_space<vmem>>, %arg6: memref<128x128xf32, #tpu.memory_space<vmem>>, %arg7: memref<128x128xf32, #tpu.memory_space<vmem>>, %arg8: memref<1x128xf32, #tpu.memory_space<vmem>>, %arg9: memref<128x1xf32, #tpu.memory_space<vmem>>, %arg10: memref<128x128xf32, #tpu.memory_space<vmem>>, %arg11: memref<128x128xf32, #tpu.memory_space<vmem>>, %arg12: memref<128x128xf32, #tpu.memory_space<vmem>>, %arg13: memref<128x128xf32, #tpu.memory_space<vmem>>) attributes {dimension_semantics = [#tpu.dimension_semantics<arbitrary>], iteration_bounds = array<i64: 2>, scalar_prefetch = 0 : i64, scratch_operands = 2 : i64, tpu.core_type = #tpu.core_type<tc>, window_params = [{pipeline_mode = #tpu.pipeline_mode<synchronous>, transform_indices = @transform_0, window_bounds = array<i64: 128, 128>}, {pipeline_mode = #tpu.pipeline_mode<synchronous>, transform_indices = @transform_1, window_bounds = array<i64: 128, 128>}, {pipeline_mode = #tpu.pipeline_mode<synchronous>, transform_indices = @transform_2, window_bounds = array<i64: 128, 128>}, {pipeline_mode = #tpu.pipeline_mode<synchronous>, transform_indices = @transform_3, window_bounds = array<i64: 128, 128>}, {pipeline_mode = #tpu.pipeline_mode<synchronous>, transform_indices = @transform_4, window_bounds = array<i64: 128, 128>}, {pipeline_mode = #tpu.pipeline_mode<synchronous>, transform_indices = @transform_5, window_bounds = array<i64: 128, 128>}, {pipeline_mode = #tpu.pipeline_mode<synchronous>, transform_indices = @transform_6, window_bounds = array<i64: 128, 128>}, {pipeline_mode = #tpu.pipeline_mode<synchronous>, transform_indices = @transform_7, window_bounds = array<i64: 1, 128>}, {pipeline_mode = #tpu.pipeline_mode<synchronous>, transform_indices = @transform_8, window_bounds = array<i64: 128, 1>}, {pipeline_mode = #tpu.pipeline_mode<synchronous>, transform_indices = @transform_9, window_bounds = array<i64: 128, 128>}, {pipeline_mode = #tpu.pipeline_mode<synchronous>, transform_indices = @transform_10, window_bounds = array<i64: 128, 128>}]} {
    %c0_i32 = arith.constant 0 : i32
    %0 = arith.cmpi eq, %arg0, %c0_i32 : i32
    %1 = arith.extui %0 : i1 to i32
    %c0_i32_0 = arith.constant 0 : i32
    %2 = arith.cmpi ne, %1, %c0_i32_0 : i32
    scf.if %2 {
      %c0_31 = arith.constant 0 : index
      %c0_32 = arith.constant 0 : index
      %31 = vector.load %arg2[%c0_31, %c0_32] : memref<128x128xf32, #tpu.memory_space<vmem>>, vector<128x128xf32>
      %c0_33 = arith.constant 0 : index
      %c0_34 = arith.constant 0 : index
      %32 = vector.load %arg12[%c0_33, %c0_34] : memref<128x128xf32, #tpu.memory_space<vmem>>, vector<128x128xf32>
      tpu.vector_store %arg12[%c0_33, %c0_34], %31 {strides = array<i32>} : memref<128x128xf32, #tpu.memory_space<vmem>>, vector<128x128xf32>,
      %c0_35 = arith.constant 0 : index
      %c0_36 = arith.constant 0 : index
      %33 = vector.load %arg3[%c0_35, %c0_36] : memref<128x128xf32, #tpu.memory_space<vmem>>, vector<128x128xf32>
      %c0_37 = arith.constant 0 : index
      %c0_38 = arith.constant 0 : index
      %34 = vector.load %arg13[%c0_37, %c0_38] : memref<128x128xf32, #tpu.memory_space<vmem>>, vector<128x128xf32>
      tpu.vector_store %arg13[%c0_37, %c0_38], %33 {strides = array<i32>} : memref<128x128xf32, #tpu.memory_space<vmem>>, vector<128x128xf32>,
      %c0_39 = arith.constant 0 : index
      %c0_40 = arith.constant 0 : index
      %35 = vector.load %arg8[%c0_39, %c0_40] : memref<1x128xf32, #tpu.memory_space<vmem>>, vector<1x128xf32>
      %36 = vector.shape_cast %35 : vector<1x128xf32> to vector<1x128xf32>
      %37 = vector.broadcast %36 : vector<1x128xf32> to vector<128x128xf32>
      %c0_41 = arith.constant 0 : index
      %c0_42 = arith.constant 0 : index
      %38 = vector.load %arg10[%c0_41, %c0_42] : memref<128x128xf32, #tpu.memory_space<vmem>>, vector<128x128xf32>
      tpu.vector_store %arg10[%c0_41, %c0_42], %37 {strides = array<i32>} : memref<128x128xf32, #tpu.memory_space<vmem>>, vector<128x128xf32>,
      %c0_43 = arith.constant 0 : index
      %c0_44 = arith.constant 0 : index
      %39 = vector.load %arg9[%c0_43, %c0_44] : memref<128x1xf32, #tpu.memory_space<vmem>>, vector<128x1xf32>
      %40 = vector.shape_cast %39 : vector<128x1xf32> to vector<128x1xf32>
      %41 = vector.broadcast %40 : vector<128x1xf32> to vector<128x128xf32>
      %c0_45 = arith.constant 0 : index
      %c0_46 = arith.constant 0 : index
      %42 = vector.load %arg11[%c0_45, %c0_46] : memref<128x128xf32, #tpu.memory_space<vmem>>, vector<128x128xf32>
      tpu.vector_store %arg11[%c0_45, %c0_46], %41 {strides = array<i32>} : memref<128x128xf32, #tpu.memory_space<vmem>>, vector<128x128xf32>,
    } else {
    }
    %c0 = arith.constant 0 : index
    %c0_1 = arith.constant 0 : index
    %3 = vector.load %arg1[%c0, %c0_1] : memref<128x128xf32, #tpu.memory_space<vmem>>, vector<128x128xf32>
    %c0_2 = arith.constant 0 : index
    %c0_3 = arith.constant 0 : index
    %4 = vector.load %arg12[%c0_2, %c0_3] : memref<128x128xf32, #tpu.memory_space<vmem>>, vector<128x128xf32>
    %c0_4 = arith.constant 0 : index
    %c0_5 = arith.constant 0 : index
    %5 = vector.load %arg13[%c0_4, %c0_5] : memref<128x128xf32, #tpu.memory_space<vmem>>, vector<128x128xf32>
    %cst = arith.constant dense<0.000000e+00> : vector<128x128xf32>
    %6 = tpu.matmul %3, %5, %cst {dimension_numbers = #tpu.dot_dimension_numbers<[1], [1], [0], [0], [0, 0, 1, 0], [], []>} : vector<128x128xf32>, vector<128x128xf32>, vector<128x128xf32> -> vector<128x128xf32>
    %7 = arith.mulf %6, %4 : vector<128x128xf32>
    %c0_6 = arith.constant 0 : index
    %c0_7 = arith.constant 0 : index
    %8 = vector.load %arg10[%c0_6, %c0_7] : memref<128x128xf32, #tpu.memory_space<vmem>>, vector<128x128xf32>
    %c0_8 = arith.constant 0 : index
    %c0_9 = arith.constant 0 : index
    %9 = vector.load %arg4[%c0_8, %c0_9] : memref<128x128xf32, #tpu.memory_space<vmem>>, vector<128x128xf32>
    %cst_10 = arith.constant dense<0.000000e+00> : vector<128x128xf32>
    %10 = tpu.matmul %6, %9, %cst_10 {dimension_numbers = #tpu.dot_dimension_numbers<[1], [0], [0], [1], [0, 0, 1, 1], [], []>} : vector<128x128xf32>, vector<128x128xf32>, vector<128x128xf32> -> vector<128x128xf32>
    %c0_11 = arith.constant 0 : index
    %c0_12 = arith.constant 0 : index
    %11 = vector.load %arg5[%c0_11, %c0_12] : memref<128x128xf32, #tpu.memory_space<vmem>>, vector<128x128xf32>
    %cst_13 = arith.constant dense<0.000000e+00> : vector<128x128xf32>
    %12 = tpu.matmul %7, %11, %cst_13 {dimension_numbers = #tpu.dot_dimension_numbers<[1], [0], [0], [1], [0, 0, 1, 1], [], []>} : vector<128x128xf32>, vector<128x128xf32>, vector<128x128xf32> -> vector<128x128xf32>
    %13 = arith.addf %10, %12 : vector<128x128xf32>
    %14 = arith.addf %8, %13 : vector<128x128xf32>
    %c0_14 = arith.constant 0 : index
    %c0_15 = arith.constant 0 : index
    %15 = vector.load %arg10[%c0_14, %c0_15] : memref<128x128xf32, #tpu.memory_space<vmem>>, vector<128x128xf32>
    tpu.vector_store %arg10[%c0_14, %c0_15], %14 {strides = array<i32>} : memref<128x128xf32, #tpu.memory_space<vmem>>, vector<128x128xf32>,
    %16 = arith.addf %6, %7 : vector<128x128xf32>
    %c0_16 = arith.constant 0 : index
    %c0_17 = arith.constant 0 : index
    %17 = vector.load %arg12[%c0_16, %c0_17] : memref<128x128xf32, #tpu.memory_space<vmem>>, vector<128x128xf32>
    tpu.vector_store %arg12[%c0_16, %c0_17], %16 {strides = array<i32>} : memref<128x128xf32, #tpu.memory_space<vmem>>, vector<128x128xf32>,
    %18 = tpu.transpose %4, [1, 0] : vector<128x128xf32> -> vector<128x128xf32>
    %cst_18 = arith.constant dense<0.000000e+00> : vector<128x128xf32>
    %19 = tpu.matmul %18, %3, %cst_18 {dimension_numbers = #tpu.dot_dimension_numbers<[1], [0], [0], [1], [0, 0, 1, 1], [], []>} : vector<128x128xf32>, vector<128x128xf32>, vector<128x128xf32> -> vector<128x128xf32>
    %20 = arith.mulf %19, %5 : vector<128x128xf32>
    %c0_19 = arith.constant 0 : index
    %c0_20 = arith.constant 0 : index
    %21 = vector.load %arg11[%c0_19, %c0_20] : memref<128x128xf32, #tpu.memory_space<vmem>>, vector<128x128xf32>
    %c0_21 = arith.constant 0 : index
    %c0_22 = arith.constant 0 : index
    %22 = vector.load %arg6[%c0_21, %c0_22] : memref<128x128xf32, #tpu.memory_space<vmem>>, vector<128x128xf32>
    %cst_23 = arith.constant dense<0.000000e+00> : vector<128x128xf32>
    %23 = tpu.matmul %22, %19, %cst_23 {dimension_numbers = #tpu.dot_dimension_numbers<[1], [0], [0], [1], [0, 0, 1, 1], [], []>} : vector<128x128xf32>, vector<128x128xf32>, vector<128x128xf32> -> vector<128x128xf32>
    %c0_24 = arith.constant 0 : index
    %c0_25 = arith.constant 0 : index
    %24 = vector.load %arg7[%c0_24, %c0_25] : memref<128x128xf32, #tpu.memory_space<vmem>>, vector<128x128xf32>
    %cst_26 = arith.constant dense<0.000000e+00> : vector<128x128xf32>
    %25 = tpu.matmul %24, %20, %cst_26 {dimension_numbers = #tpu.dot_dimension_numbers<[1], [0], [0], [1], [0, 0, 1, 1], [], []>} : vector<128x128xf32>, vector<128x128xf32>, vector<128x128xf32> -> vector<128x128xf32>
    %26 = arith.addf %23, %25 : vector<128x128xf32>
    %27 = arith.addf %21, %26 : vector<128x128xf32>
    %c0_27 = arith.constant 0 : index
    %c0_28 = arith.constant 0 : index
    %28 = vector.load %arg11[%c0_27, %c0_28] : memref<128x128xf32, #tpu.memory_space<vmem>>, vector<128x128xf32>
    tpu.vector_store %arg11[%c0_27, %c0_28], %27 {strides = array<i32>} : memref<128x128xf32, #tpu.memory_space<vmem>>, vector<128x128xf32>,
    %29 = arith.addf %19, %20 : vector<128x128xf32>
    %c0_29 = arith.constant 0 : index
    %c0_30 = arith.constant 0 : index
    %30 = vector.load %arg13[%c0_29, %c0_30] : memref<128x128xf32, #tpu.memory_space<vmem>>, vector<128x128xf32>
    tpu.vector_store %arg13[%c0_29, %c0_30], %29 {strides = array<i32>} : memref<128x128xf32, #tpu.memory_space<vmem>>, vector<128x128xf32>,
    return
  }
  func.func @transform_0(%arg0: i32) -> (i32, i32) {
    %c0_i32 = arith.constant 0 : i32
    %c0_i32_0 = arith.constant 0 : i32
    %c0_i32_1 = arith.constant 0 : i32
    return %c0_i32, %c0_i32_0 : i32, i32
  }
  func.func @transform_1(%arg0: i32) -> (i32, i32) {
    %c0_i32 = arith.constant 0 : i32
    %c0_i32_0 = arith.constant 0 : i32
    %c0_i32_1 = arith.constant 0 : i32
    return %c0_i32, %c0_i32_0 : i32, i32
  }
  func.func @transform_2(%arg0: i32) -> (i32, i32) {
    %c0_i32 = arith.constant 0 : i32
    %c0_i32_0 = arith.constant 0 : i32
    %c0_i32_1 = arith.constant 0 : i32
    return %c0_i32, %c0_i32_0 : i32, i32
  }
  func.func @transform_3(%arg0: i32) -> (i32, i32) {
    %c0_i32 = arith.constant 0 : i32
    %c0_i32_0 = arith.constant 0 : i32
    %c0_i32_1 = arith.constant 0 : i32
    return %c0_i32, %c0_i32_0 : i32, i32
  }
  func.func @transform_4(%arg0: i32) -> (i32, i32) {
    %c0_i32 = arith.constant 0 : i32
    %c0_i32_0 = arith.constant 0 : i32
    %c0_i32_1 = arith.constant 0 : i32
    return %c0_i32, %c0_i32_0 : i32, i32
  }
  func.func @transform_5(%arg0: i32) -> (i32, i32) {
    %c0_i32 = arith.constant 0 : i32
    %c0_i32_0 = arith.constant 0 : i32
    %c0_i32_1 = arith.constant 0 : i32
    return %c0_i32, %c0_i32_0 : i32, i32
  }
  func.func @transform_6(%arg0: i32) -> (i32, i32) {
    %c0_i32 = arith.constant 0 : i32
    %c0_i32_0 = arith.constant 0 : i32
    %c0_i32_1 = arith.constant 0 : i32
    return %c0_i32, %c0_i32_0 : i32, i32
  }
  func.func @transform_7(%arg0: i32) -> (i32, i32) {
    %c0_i32 = arith.constant 0 : i32
    %c0_i32_0 = arith.constant 0 : i32
    %c0_i32_1 = arith.constant 0 : i32
    return %c0_i32, %c0_i32_0 : i32, i32
  }
  func.func @transform_8(%arg0: i32) -> (i32, i32) {
    %c0_i32 = arith.constant 0 : i32
    %c0_i32_0 = arith.constant 0 : i32
    %c0_i32_1 = arith.constant 0 : i32
    return %c0_i32, %c0_i32_0 : i32, i32
  }
  func.func @transform_9(%arg0: i32) -> (i32, i32) {
    %c0_i32 = arith.constant 0 : i32
    %c0_i32_0 = arith.constant 0 : i32
    %c0_i32_1 = arith.constant 0 : i32
    return %c0_i32, %c0_i32_0 : i32, i32
  }
  func.func @transform_10(%arg0: i32) -> (i32, i32) {
    %c0_i32 = arith.constant 0 : i32
    %c0_i32_0 = arith.constant 0 : i32
    %c0_i32_1 = arith.constant 0 : i32
    return %c0_i32, %c0_i32_0 : i32, i32
  }
}

</mosaic_0001>

<llo_original>
// kernel: tpu_custom_call.1
$region0: #{tpu_custom_call.1}
  #allocation0 [shape = 'u32[]', space=smem, size = 0x4, offset = 0x4, fixed_abs, tag = 'smem constant byte address 0x4 - core index']
  #allocation1 [shape = 'u32[144,128]{1,0:T(1,128)}', space=vmem, size = 0x12000, scoped, tag = 'internal scratch']
  #allocation2 [shape = 'f32[128,128]{1,0:T(8,128)}', space=vmem, size = 0x10000, scoped, tag = 'scratch operand']
  #allocation3 [shape = 'f32[128,128]{1,0:T(8,128)}', space=vmem, size = 0x10000, scoped, tag = 'scratch operand']
  %s0 = inlined_call_operand.vmem [shape: f32[128,128], index: 0, kind: input, shape index: {}]
  %s1 = inlined_call_operand.hbm [shape: f32[128,128], index: 1, kind: input, shape index: {}]
  %s2 = inlined_call_operand.hbm [shape: f32[128,128], index: 2, kind: input, shape index: {}]
  %s3 = inlined_call_operand.hbm [shape: f32[128,128], index: 3, kind: input, shape index: {}]
  %s4 = inlined_call_operand.hbm [shape: f32[128,128], index: 4, kind: input, shape index: {}]
  %s5 = inlined_call_operand.hbm [shape: f32[128,128], index: 5, kind: input, shape index: {}]
  %s6 = inlined_call_operand.hbm [shape: f32[128,128], index: 6, kind: input, shape index: {}]
  %s7 = inlined_call_operand.vmem [shape: f32[1,128], index: 7, kind: input, shape index: {}]
  %s8 = inlined_call_operand.vmem [shape: f32[128,1], index: 8, kind: input, shape index: {}]
  %s9 = inlined_call_operand.hbm [shape: f32[128,128], index: 9, kind: output, shape index: {0}]
  %s10 = inlined_call_operand.hbm [shape: f32[128,128], index: 10, kind: output, shape index: {1}]
  %11 = xla_tuple %s9, %s10
  %s12 = sld [smem:[#allocation0]]
  $region105: #{tpu_custom_call.1} parent=0
    _
  %s14 = ssub.s32 1, %s12
  %s15 = scalar_select 0, %s14, %s12
  $region1: #{tpu_custom_call.1} parent=0
    #allocation4 [shape = 'u8[65536]{0}', space=vmem, size = 0x10000, scoped, tag = 'input window, operand 1, single buffered']
    #allocation5 [shape = 's32[2]{0}', space=sflag, size = 0x8, scoped, tag = 'scoped memory for tpu_custom_call.1']
    #allocation6 [shape = 's32[2]{0}', space=sflag, size = 0x8, scoped, tag = 'scoped memory for tpu_custom_call.1']
    #allocation7 [shape = 'u8[65536]{0}', space=vmem, size = 0x10000, scoped, tag = 'input window, operand 2, single buffered']
    #allocation8 [shape = 's32[1]{0}', space=sflag, size = 0x4, scoped, tag = 'scoped memory for tpu_custom_call.1']
    #allocation9 [shape = 'u8[65536]{0}', space=vmem, size = 0x10000, scoped, tag = 'input window, operand 3, single buffered']
    #allocation10 [shape = 'u8[65536]{0}', space=vmem, size = 0x10000, scoped, tag = 'input window, operand 4, single buffered']
    #allocation11 [shape = 's32[1]{0}', space=sflag, size = 0x4, scoped, tag = 'scoped memory for tpu_custom_call.1']
    #allocation12 [shape = 'u8[65536]{0}', space=vmem, size = 0x10000, scoped, tag = 'input window, operand 5, single buffered']
    #allocation13 [shape = 'u8[65536]{0}', space=vmem, size = 0x10000, scoped, tag = 'input window, operand 6, single buffered']
    #allocation14 [shape = 's32[1]{0}', space=sflag, size = 0x4, scoped, tag = 'scoped memory for tpu_custom_call.1']
    #allocation15 [shape = 'u8[65536]{0}', space=vmem, size = 0x10000, scoped, tag = 'output window, operand 0, single buffered']
    #allocation16 [shape = 'u8[65536]{0}', space=vmem, size = 0x10000, scoped, tag = 'output window, operand 1, single buffered']
    #allocation17 [shape = 's32[1]{0}', space=sflag, size = 0x4, scoped, tag = 'scoped memory for tpu_custom_call.1']
    %16 = vsyncpa [#allocation5], 0
    %17 = vsyncpa [#allocation8], 0
    %18 = vsyncpa [#allocation11], 0
    %19 = vsyncpa [#allocation14], 0
    %20 = vsyncpa [#allocation6], 0
    %21 = vsyncpa [#allocation17], 0
    loop: start=0, step=1, limit=4
    $region2: #{tpu_custom_call.1} parent=1 // loop_pre_header
      _
    $region3: #{tpu_custom_call.1} parent=1 // loop_header
      %s23 = sphi 0, %s27
      %p24 = scmp.ge.s32.totalorder %s23, 4
      %s31 = sphi 0, %s31
      %s33 = sphi 0, %s31
      %s34 = sphi 0, %s33
      %s48 = sphi 0, %s34
      %s52 = sphi 0, %s52
      %s54 = sphi 0, %s52
      %s55 = sphi 0, %s54
      %s69 = sphi 0, %s55
      %s73 = sphi 0, %s73
      %s75 = sphi 0, %s73
      %s76 = sphi 0, %s75
      %s90 = sphi 0, %s76
      %s94 = sphi 0, %s94
      %s96 = sphi 0, %s94
      %s97 = sphi 0, %s96
      %s111 = sphi 0, %s97
      %s115 = sphi 0, %s115
      %s117 = sphi 0, %s115
      %s118 = sphi 0, %s117
      %s132 = sphi 0, %s118
      %s136 = sphi 0, %s136
      %s138 = sphi 0, %s136
      %s139 = sphi 0, %s138
      %s153 = sphi 0, %s139
      %s157 = sphi 0, %s157
      %s159 = sphi 0, %s157
      %s160 = sphi 0, %s159
      %s174 = sphi 0, %s160
      %s178 = sphi 0, %s178
      %s180 = sphi 0, %s178
      %s181 = sphi 0, %s180
      %s195 = sphi 0, %s181
      %s199 = sphi 0, %s199
      %s201 = sphi 0, %s199
      %s202 = sphi 0, %s201
      %s216 = sphi 0, %s202
      %s220 = sphi 0, %s220
      %s222 = sphi 0, %s220
      %s223 = sphi 0, %s222
      %s237 = sphi 0, %s223
      %s241 = sphi 0, %s241
      %s243 = sphi 0, %s241
      %s244 = sphi 0, %s243
      %s258 = sphi 0, %s244
    $region4: #{tpu_custom_call.1} parent=1 // loop_header_branch
      %26 = sbr.rel (%p24) target = $region8
    $region5: #{tpu_custom_call.1} parent=1 // loop_body
      %s28 = ssub.s32 %s23, 1
      %s29 = ssub.s32 %s23, 2
      %s30 = sadd.s32 %s23, 1
      %s32 = sadd.s32 %s31, 1
      %p35 = scmp.eq.s32.totalorder %s23, 1
      %p36 = scmp.ne.s32.totalorder %s31, %s33
      %p37 = scmp.eq.s32.totalorder %s23, 0
      %p38 = por %p36, %p37
      %p39 = scmp.ne.s32.totalorder %s31, %s33
      %p40 = scmp.eq.s32.totalorder %s28, 1
      %p41 = por %p39, %p40
      %p42 = scmp.ne.s32.totalorder %s33, %s34
      %p43 = scmp.eq.s32.totalorder %s28, 0
      %p44 = por %p42, %p43
      %p45 = scmp.ne.s32.totalorder %s33, %s34
      %p46 = scmp.eq.s32.totalorder %s29, 1
      %p47 = por %p45, %p46
      %p49 = scmp.ne.s32.totalorder %s34, %s48
      %p50 = scmp.eq.s32.totalorder %s29, 0
      %p51 = por %p49, %p50
      %s53 = sadd.s32 %s52, 1
      %p56 = scmp.eq.s32.totalorder %s23, 1
      %p57 = scmp.ne.s32.totalorder %s52, %s54
      %p58 = scmp.eq.s32.totalorder %s23, 0
      %p59 = por %p57, %p58
      %p60 = scmp.ne.s32.totalorder %s52, %s54
      %p61 = scmp.eq.s32.totalorder %s28, 1
      %p62 = por %p60, %p61
      %p63 = scmp.ne.s32.totalorder %s54, %s55
      %p64 = scmp.eq.s32.totalorder %s28, 0
      %p65 = por %p63, %p64
      %p66 = scmp.ne.s32.totalorder %s54, %s55
      %p67 = scmp.eq.s32.totalorder %s29, 1
      %p68 = por %p66, %p67
      %p70 = scmp.ne.s32.totalorder %s55, %s69
      %p71 = scmp.eq.s32.totalorder %s29, 0
      %p72 = por %p70, %p71
      %s74 = sadd.s32 %s73, 1
      %p77 = scmp.eq.s32.totalorder %s23, 1
      %p78 = scmp.ne.s32.totalorder %s73, %s75
      %p79 = scmp.eq.s32.totalorder %s23, 0
      %p80 = por %p78, %p79
      %p81 = scmp.ne.s32.totalorder %s73, %s75
      %p82 = scmp.eq.s32.totalorder %s28, 1
      %p83 = por %p81, %p82
      %p84 = scmp.ne.s32.totalorder %s75, %s76
      %p85 = scmp.eq.s32.totalorder %s28, 0
      %p86 = por %p84, %p85
      %p87 = scmp.ne.s32.totalorder %s75, %s76
      %p88 = scmp.eq.s32.totalorder %s29, 1
      %p89 = por %p87, %p88
      %p91 = scmp.ne.s32.totalorder %s76, %s90
      %p92 = scmp.eq.s32.totalorder %s29, 0
      %p93 = por %p91, %p92
      %s95 = sadd.s32 %s94, 1
      %p98 = scmp.eq.s32.totalorder %s23, 1
      %p99 = scmp.ne.s32.totalorder %s94, %s96
      %p100 = scmp.eq.s32.totalorder %s23, 0
      %p101 = por %p99, %p100
      %p102 = scmp.ne.s32.totalorder %s94, %s96
      %p103 = scmp.eq.s32.totalorder %s28, 1
      %p104 = por %p102, %p103
      %p105 = scmp.ne.s32.totalorder %s96, %s97
      %p106 = scmp.eq.s32.totalorder %s28, 0
      %p107 = por %p105, %p106
      %p108 = scmp.ne.s32.totalorder %s96, %s97
      %p109 = scmp.eq.s32.totalorder %s29, 1
      %p110 = por %p108, %p109
      %p112 = scmp.ne.s32.totalorder %s97, %s111
      %p113 = scmp.eq.s32.totalorder %s29, 0
      %p114 = por %p112, %p113
      %s116 = sadd.s32 %s115, 1
      %p119 = scmp.eq.s32.totalorder %s23, 1
      %p120 = scmp.ne.s32.totalorder %s115, %s117
      %p121 = scmp.eq.s32.totalorder %s23, 0
      %p122 = por %p120, %p121
      %p123 = scmp.ne.s32.totalorder %s115, %s117
      %p124 = scmp.eq.s32.totalorder %s28, 1
      %p125 = por %p123, %p124
      %p126 = scmp.ne.s32.totalorder %s117, %s118
      %p127 = scmp.eq.s32.totalorder %s28, 0
      %p128 = por %p126, %p127
      %p129 = scmp.ne.s32.totalorder %s117, %s118
      %p130 = scmp.eq.s32.totalorder %s29, 1
      %p131 = por %p129, %p130
      %p133 = scmp.ne.s32.totalorder %s118, %s132
      %p134 = scmp.eq.s32.totalorder %s29, 0
      %p135 = por %p133, %p134
      %s137 = sadd.s32 %s136, 1
      %p140 = scmp.eq.s32.totalorder %s23, 1
      %p141 = scmp.ne.s32.totalorder %s136, %s138
      %p142 = scmp.eq.s32.totalorder %s23, 0
      %p143 = por %p141, %p142
      %p144 = scmp.ne.s32.totalorder %s136, %s138
      %p145 = scmp.eq.s32.totalorder %s28, 1
      %p146 = por %p144, %p145
      %p147 = scmp.ne.s32.totalorder %s138, %s139
      %p148 = scmp.eq.s32.totalorder %s28, 0
      %p149 = por %p147, %p148
      %p150 = scmp.ne.s32.totalorder %s138, %s139
      %p151 = scmp.eq.s32.totalorder %s29, 1
      %p152 = por %p150, %p151
      %p154 = scmp.ne.s32.totalorder %s139, %s153
      %p155 = scmp.eq.s32.totalorder %s29, 0
      %p156 = por %p154, %p155
      %s158 = sadd.s32 %s157, 1
      %p161 = scmp.eq.s32.totalorder %s23, 1
      %p162 = scmp.ne.s32.totalorder %s157, %s159
      %p163 = scmp.eq.s32.totalorder %s23, 0
      %p164 = por %p162, %p163
      %p165 = scmp.ne.s32.totalorder %s157, %s159
      %p166 = scmp.eq.s32.totalorder %s28, 1
      %p167 = por %p165, %p166
      %p168 = scmp.ne.s32.totalorder %s159, %s160
      %p169 = scmp.eq.s32.totalorder %s28, 0
      %p170 = por %p168, %p169
      %p171 = scmp.ne.s32.totalorder %s159, %s160
      %p172 = scmp.eq.s32.totalorder %s29, 1
      %p173 = por %p171, %p172
      %p175 = scmp.ne.s32.totalorder %s160, %s174
      %p176 = scmp.eq.s32.totalorder %s29, 0
      %p177 = por %p175, %p176
      %s179 = sadd.s32 %s178, 1
      %p182 = scmp.eq.s32.totalorder %s23, 1
      %p183 = scmp.ne.s32.totalorder %s178, %s180
      %p184 = scmp.eq.s32.totalorder %s23, 0
      %p185 = por %p183, %p184
      %p186 = scmp.ne.s32.totalorder %s178, %s180
      %p187 = scmp.eq.s32.totalorder %s28, 1
      %p188 = por %p186, %p187
      %p189 = scmp.ne.s32.totalorder %s180, %s181
      %p190 = scmp.eq.s32.totalorder %s28, 0
      %p191 = por %p189, %p190
      %p192 = scmp.ne.s32.totalorder %s180, %s181
      %p193 = scmp.eq.s32.totalorder %s29, 1
      %p194 = por %p192, %p193
      %p196 = scmp.ne.s32.totalorder %s181, %s195
      %p197 = scmp.eq.s32.totalorder %s29, 0
      %p198 = por %p196, %p197
      %s200 = sadd.s32 %s199, 1
      %p203 = scmp.eq.s32.totalorder %s23, 1
      %p204 = scmp.ne.s32.totalorder %s199, %s201
      %p205 = scmp.eq.s32.totalorder %s23, 0
      %p206 = por %p204, %p205
      %p207 = scmp.ne.s32.totalorder %s199, %s201
      %p208 = scmp.eq.s32.totalorder %s28, 1
      %p209 = por %p207, %p208
      %p210 = scmp.ne.s32.totalorder %s201, %s202
      %p211 = scmp.eq.s32.totalorder %s28, 0
      %p212 = por %p210, %p211
      %p213 = scmp.ne.s32.totalorder %s201, %s202
      %p214 = scmp.eq.s32.totalorder %s29, 1
      %p215 = por %p213, %p214
      %p217 = scmp.ne.s32.totalorder %s202, %s216
      %p218 = scmp.eq.s32.totalorder %s29, 0
      %p219 = por %p217, %p218
      %s221 = sadd.s32 %s220, 1
      %p224 = scmp.eq.s32.totalorder %s23, 1
      %p225 = scmp.ne.s32.totalorder %s220, %s222
      %p226 = scmp.eq.s32.totalorder %s23, 0
      %p227 = por %p225, %p226
      %p228 = scmp.ne.s32.totalorder %s220, %s222
      %p229 = scmp.eq.s32.totalorder %s28, 1
      %p230 = por %p228, %p229
      %p231 = scmp.ne.s32.totalorder %s222, %s223
      %p232 = scmp.eq.s32.totalorder %s28, 0
      %p233 = por %p231, %p232
      %p234 = scmp.ne.s32.totalorder %s222, %s223
      %p235 = scmp.eq.s32.totalorder %s29, 1
      %p236 = por %p234, %p235
      %p238 = scmp.ne.s32.totalorder %s223, %s237
      %p239 = scmp.eq.s32.totalorder %s29, 0
      %p240 = por %p238, %p239
      %s242 = sadd.s32 %s241, 1
      %p245 = scmp.eq.s32.totalorder %s23, 1
      %p246 = scmp.ne.s32.totalorder %s241, %s243
      %p247 = scmp.eq.s32.totalorder %s23, 0
      %p248 = por %p246, %p247
      %p249 = scmp.ne.s32.totalorder %s241, %s243
      %p250 = scmp.eq.s32.totalorder %s28, 1
      %p251 = por %p249, %p250
      %p252 = scmp.ne.s32.totalorder %s243, %s244
      %p253 = scmp.eq.s32.totalorder %s28, 0
      %p254 = por %p252, %p253
      %p255 = scmp.ne.s32.totalorder %s243, %s244
      %p256 = scmp.eq.s32.totalorder %s29, 1
      %p257 = por %p255, %p256
      %p259 = scmp.ne.s32.totalorder %s244, %s258
      %p260 = scmp.eq.s32.totalorder %s29, 0
      %p261 = por %p259, %p260
      %p262 = scmp.le.s32.totalorder 1, %s23
      %p263 = scmp.lt.s32.totalorder %s23, 3
      %p264 = pnand %p262, %p263
      %p265 = pneg %p264
      // Predicated region
      $region9: #{tpu_custom_call.1} parent=5 // pred_check
        _
      $region10: #{tpu_custom_call.1} parent=5 // pred_check_branch
        %267 = sbr.rel (%p264) target = $region12
      $region11: #{tpu_custom_call.1} parent=5 // pred_region
        %s268 = ssub.s32 %s23, 1
        // Predicated region
        $region13: #{tpu_custom_call.1} parent=11 // pred_check
          %p269 = pneg %p44
        $region14: #{tpu_custom_call.1} parent=11 // pred_check_branch
          %271 = sbr.rel (%p269) target = $region16
        $region15: #{tpu_custom_call.1} parent=11 // pred_region
          _
        $region16: #{tpu_custom_call.1} parent=11 // pred_fallthru
          _
        // Predicated region
        $region17: #{tpu_custom_call.1} parent=11 // pred_check
          %p272 = pneg %p65
        $region18: #{tpu_custom_call.1} parent=11 // pred_check_branch
          %274 = sbr.rel (%p272) target = $region20
        $region19: #{tpu_custom_call.1} parent=11 // pred_region
          %s276 = ssub.s32 2048, 2048
          %277 = vsyncadd [#allocation5], %s276
          %s278 = sshll.u32 [#allocation4], 4
          %s279 = int_to_ptr.vmem [resolvable:$true] %s278
          %284 = dma.hbm_to_vmem [thread:$0]  %s1, 2048, %s279, [#allocation5], 128, 128, 8
        $region20: #{tpu_custom_call.1} parent=11 // pred_fallthru
          _
        // Predicated region
        $region21: #{tpu_custom_call.1} parent=11 // pred_check
          %p285 = pneg %p86
        $region22: #{tpu_custom_call.1} parent=11 // pred_check_branch
          %287 = sbr.rel (%p285) target = $region24
        $region23: #{tpu_custom_call.1} parent=11 // pred_region
          %s289 = ssub.s32 2048, 2048
          %290 = vsyncadd [#allocation8], %s289
          %s291 = sshll.u32 [#allocation7], 4
          %s292 = int_to_ptr.vmem [resolvable:$true] %s291
          %297 = dma.hbm_to_vmem [thread:$0]  %s2, 2048, %s292, [#allocation8], 128, 128, 8
        $region24: #{tpu_custom_call.1} parent=11 // pred_fallthru
          _
        // Predicated region
        $region25: #{tpu_custom_call.1} parent=11 // pred_check
          %p298 = pneg %p107
        $region26: #{tpu_custom_call.1} parent=11 // pred_check_branch
          %300 = sbr.rel (%p298) target = $region28
        $region27: #{tpu_custom_call.1} parent=11 // pred_region
          %s302 = ssub.s32 2048, 2048
          %303 = vsyncadd [#allocation8], %s302
          %s304 = sshll.u32 [#allocation9], 4
          %s305 = int_to_ptr.vmem [resolvable:$true] %s304
          %310 = dma.hbm_to_vmem [thread:$0]  %s3, 2048, %s305, [#allocation8], 128, 128, 8
        $region28: #{tpu_custom_call.1} parent=11 // pred_fallthru
          _
        // Predicated region
        $region29: #{tpu_custom_call.1} parent=11 // pred_check
          %p311 = pneg %p128
        $region30: #{tpu_custom_call.1} parent=11 // pred_check_branch
          %313 = sbr.rel (%p311) target = $region32
        $region31: #{tpu_custom_call.1} parent=11 // pred_region
          %s315 = ssub.s32 2048, 2048
          %316 = vsyncadd [#allocation11], %s315
          %s317 = sshll.u32 [#allocation10], 4
          %s318 = int_to_ptr.vmem [resolvable:$true] %s317
          %323 = dma.hbm_to_vmem [thread:$0]  %s4, 2048, %s318, [#allocation11], 128, 128, 8
        $region32: #{tpu_custom_call.1} parent=11 // pred_fallthru
          _
        // Predicated region
        $region33: #{tpu_custom_call.1} parent=11 // pred_check
          %p324 = pneg %p149
        $region34: #{tpu_custom_call.1} parent=11 // pred_check_branch
          %326 = sbr.rel (%p324) target = $region36
        $region35: #{tpu_custom_call.1} parent=11 // pred_region
          %s328 = ssub.s32 2048, 2048
          %329 = vsyncadd [#allocation11], %s328
          %s330 = sshll.u32 [#allocation12], 4
          %s331 = int_to_ptr.vmem [resolvable:$true] %s330
          %336 = dma.hbm_to_vmem [thread:$0]  %s5, 2048, %s331, [#allocation11], 128, 128, 8
        $region36: #{tpu_custom_call.1} parent=11 // pred_fallthru
          _
        // Predicated region
        $region37: #{tpu_custom_call.1} parent=11 // pred_check
          %p337 = pneg %p170
        $region38: #{tpu_custom_call.1} parent=11 // pred_check_branch
          %339 = sbr.rel (%p337) target = $region40
        $region39: #{tpu_custom_call.1} parent=11 // pred_region
          %s341 = ssub.s32 2048, 2048
          %342 = vsyncadd [#allocation14], %s341
          %s343 = sshll.u32 [#allocation13], 4
          %s344 = int_to_ptr.vmem [resolvable:$true] %s343
          %349 = dma.hbm_to_vmem [thread:$0]  %s6, 2048, %s344, [#allocation14], 128, 128, 8
        $region40: #{tpu_custom_call.1} parent=11 // pred_fallthru
          _
        // Predicated region
        $region41: #{tpu_custom_call.1} parent=11 // pred_check
          %p350 = pneg %p191
        $region42: #{tpu_custom_call.1} parent=11 // pred_check_branch
          %352 = sbr.rel (%p350) target = $region44
        $region43: #{tpu_custom_call.1} parent=11 // pred_region
          _
        $region44: #{tpu_custom_call.1} parent=11 // pred_fallthru
          _
        // Predicated region
        $region45: #{tpu_custom_call.1} parent=11 // pred_check
          %p353 = pneg %p212
        $region46: #{tpu_custom_call.1} parent=11 // pred_check_branch
          %355 = sbr.rel (%p353) target = $region48
        $region47: #{tpu_custom_call.1} parent=11 // pred_region
          _
        $region48: #{tpu_custom_call.1} parent=11 // pred_fallthru
          _
      $region12: #{tpu_custom_call.1} parent=5 // pred_fallthru
        _
      %p356 = scmp.lt.s32.totalorder %s23, 2
      // Predicated region
      $region49: #{tpu_custom_call.1} parent=5 // pred_check
        %p357 = pneg %p356
      $region50: #{tpu_custom_call.1} parent=5 // pred_check_branch
        %359 = sbr.rel (%p357) target = $region52
      $region51: #{tpu_custom_call.1} parent=5 // pred_region
        _
      $region52: #{tpu_custom_call.1} parent=5 // pred_fallthru
        _
      %p360 = scmp.le.s32.totalorder 1, %s23
      %p361 = scmp.lt.s32.totalorder %s23, 3
      %p362 = pnand %p360, %p361
      %p363 = pneg %p362
      // Predicated region
      $region53: #{tpu_custom_call.1} parent=5 // pred_check
        _
      $region54: #{tpu_custom_call.1} parent=5 // pred_check_branch
        %365 = sbr.rel (%p362) target = $region56
      $region55: #{tpu_custom_call.1} parent=5 // pred_region
        %s366 = ssub.s32 %s23, 1
        // Predicated region
        $region57: #{tpu_custom_call.1} parent=55 // pred_check
          %p367 = pneg %p65
        $region58: #{tpu_custom_call.1} parent=55 // pred_check_branch
          %369 = sbr.rel (%p367) target = $region60
        $region59: #{tpu_custom_call.1} parent=55 // pred_region
          %370 = dma.done [#allocation5], 2048
        $region60: #{tpu_custom_call.1} parent=55 // pred_fallthru
          _
        // Predicated region
        $region61: #{tpu_custom_call.1} parent=55 // pred_check
          %p371 = pneg %p86
        $region62: #{tpu_custom_call.1} parent=55 // pred_check_branch
          %373 = sbr.rel (%p371) target = $region64
        $region63: #{tpu_custom_call.1} parent=55 // pred_region
          %374 = dma.done [#allocation8], 2048
        $region64: #{tpu_custom_call.1} parent=55 // pred_fallthru
          _
        // Predicated region
        $region65: #{tpu_custom_call.1} parent=55 // pred_check
          %p375 = pneg %p107
        $region66: #{tpu_custom_call.1} parent=55 // pred_check_branch
          %377 = sbr.rel (%p375) target = $region68
        $region67: #{tpu_custom_call.1} parent=55 // pred_region
          %378 = dma.done [#allocation8], 2048
        $region68: #{tpu_custom_call.1} parent=55 // pred_fallthru
          _
        // Predicated region
        $region69: #{tpu_custom_call.1} parent=55 // pred_check
          %p379 = pneg %p128
        $region70: #{tpu_custom_call.1} parent=55 // pred_check_branch
          %381 = sbr.rel (%p379) target = $region72
        $region71: #{tpu_custom_call.1} parent=55 // pred_region
          %382 = dma.done [#allocation11], 2048
        $region72: #{tpu_custom_call.1} parent=55 // pred_fallthru
          _
        // Predicated region
        $region73: #{tpu_custom_call.1} parent=55 // pred_check
          %p383 = pneg %p149
        $region74: #{tpu_custom_call.1} parent=55 // pred_check_branch
          %385 = sbr.rel (%p383) target = $region76
        $region75: #{tpu_custom_call.1} parent=55 // pred_region
          %386 = dma.done [#allocation11], 2048
        $region76: #{tpu_custom_call.1} parent=55 // pred_fallthru
          _
        // Predicated region
        $region77: #{tpu_custom_call.1} parent=55 // pred_check
          %p387 = pneg %p170
        $region78: #{tpu_custom_call.1} parent=55 // pred_check_branch
          %389 = sbr.rel (%p387) target = $region80
        $region79: #{tpu_custom_call.1} parent=55 // pred_region
          %390 = dma.done [#allocation14], 2048
        $region80: #{tpu_custom_call.1} parent=55 // pred_fallthru
          _
        %p391 = pneg %p44
        %p392 = pneg %p41
        %p393 = pneg %p65
        %p394 = pneg %p62
        %p395 = pneg %p86
        %p396 = pneg %p83
        %p397 = pneg %p107
        %p398 = pneg %p104
        %p399 = pneg %p128
        %p400 = pneg %p125
        %p401 = pneg %p149
        %p402 = pneg %p146
        %p403 = pneg %p170
        %p404 = pneg %p167
        %p405 = pneg %p191
        %p406 = pneg %p188
        %p407 = pneg %p212
        %p408 = pneg %p209
        %p409 = pneg %p233
        %p410 = pneg %p230
        %p411 = pneg %p254
        %p412 = pneg %p251
        %p413 = scmp.eq.s32.totalorder %s28, 0
        // Predicated region
        $region81: #{tpu_custom_call.1} parent=55 // pred_check
          %p414 = pneg %p413
        $region82: #{tpu_custom_call.1} parent=55 // pred_check_branch
          %416 = sbr.rel (%p414) target = $region84
        $region83: #{tpu_custom_call.1} parent=55 // pred_region
          %v417 = vld [vmem:[#allocation4] sm:$0xff]
          %v418 = vld [vmem:[#allocation4 + $0x8] sm:$0xff]
          %v419 = vld [vmem:[#allocation4 + $0x10] sm:$0xff]
          %v420 = vld [vmem:[#allocation4 + $0x18] sm:$0xff]
          %v421 = vld [vmem:[#allocation4 + $0x20] sm:$0xff]
          %v422 = vld [vmem:[#allocation4 + $0x28] sm:$0xff]
          %v423 = vld [vmem:[#allocation4 + $0x30] sm:$0xff]
          %v424 = vld [vmem:[#allocation4 + $0x38] sm:$0xff]
          %v425 = vld [vmem:[#allocation4 + $0x40] sm:$0xff]
          %v426 = vld [vmem:[#allocation4 + $0x48] sm:$0xff]
          %v427 = vld [vmem:[#allocation4 + $0x50] sm:$0xff]
          %v428 = vld [vmem:[#allocation4 + $0x58] sm:$0xff]
          %v429 = vld [vmem:[#allocation4 + $0x60] sm:$0xff]
          %v430 = vld [vmem:[#allocation4 + $0x68] sm:$0xff]
          %v431 = vld [vmem:[#allocation4 + $0x70] sm:$0xff]
          %v432 = vld [vmem:[#allocation4 + $0x78] sm:$0xff]
          %433 = vst [vmem:[#allocation2] sm:$0xff] %v417
          %434 = vst [vmem:[#allocation2 + $0x8] sm:$0xff] %v418
          %435 = vst [vmem:[#allocation2 + $0x10] sm:$0xff] %v419
          %436 = vst [vmem:[#allocation2 + $0x18] sm:$0xff] %v420
          %437 = vst [vmem:[#allocation2 + $0x20] sm:$0xff] %v421
          %438 = vst [vmem:[#allocation2 + $0x28] sm:$0xff] %v422
          %439 = vst [vmem:[#allocation2 + $0x30] sm:$0xff] %v423
          %440 = vst [vmem:[#allocation2 + $0x38] sm:$0xff] %v424
          %441 = vst [vmem:[#allocation2 + $0x40] sm:$0xff] %v425
          %442 = vst [vmem:[#allocation2 + $0x48] sm:$0xff] %v426
          %443 = vst [vmem:[#allocation2 + $0x50] sm:$0xff] %v427
          %444 = vst [vmem:[#allocation2 + $0x58] sm:$0xff] %v428
          %445 = vst [vmem:[#allocation2 + $0x60] sm:$0xff] %v429
          %446 = vst [vmem:[#allocation2 + $0x68] sm:$0xff] %v430
          %447 = vst [vmem:[#allocation2 + $0x70] sm:$0xff] %v431
          %448 = vst [vmem:[#allocation2 + $0x78] sm:$0xff] %v432
          %v449 = vld [vmem:[#allocation7] sm:$0xff]
          %v450 = vld [vmem:[#allocation7 + $0x8] sm:$0xff]
          %v451 = vld [vmem:[#allocation7 + $0x10] sm:$0xff]
          %v452 = vld [vmem:[#allocation7 + $0x18] sm:$0xff]
          %v453 = vld [vmem:[#allocation7 + $0x20] sm:$0xff]
          %v454 = vld [vmem:[#allocation7 + $0x28] sm:$0xff]
          %v455 = vld [vmem:[#allocation7 + $0x30] sm:$0xff]
          %v456 = vld [vmem:[#allocation7 + $0x38] sm:$0xff]
          %v457 = vld [vmem:[#allocation7 + $0x40] sm:$0xff]
          %v458 = vld [vmem:[#allocation7 + $0x48] sm:$0xff]
          %v459 = vld [vmem:[#allocation7 + $0x50] sm:$0xff]
          %v460 = vld [vmem:[#allocation7 + $0x58] sm:$0xff]
          %v461 = vld [vmem:[#allocation7 + $0x60] sm:$0xff]
          %v462 = vld [vmem:[#allocation7 + $0x68] sm:$0xff]
          %v463 = vld [vmem:[#allocation7 + $0x70] sm:$0xff]
          %v464 = vld [vmem:[#allocation7 + $0x78] sm:$0xff]
          %465 = vst [vmem:[#allocation3] sm:$0xff] %v449
          %466 = vst [vmem:[#allocation3 + $0x8] sm:$0xff] %v450
          %467 = vst [vmem:[#allocation3 + $0x10] sm:$0xff] %v451
          %468 = vst [vmem:[#allocation3 + $0x18] sm:$0xff] %v452
          %469 = vst [vmem:[#allocation3 + $0x20] sm:$0xff] %v453
          %470 = vst [vmem:[#allocation3 + $0x28] sm:$0xff] %v454
          %471 = vst [vmem:[#allocation3 + $0x30] sm:$0xff] %v455
          %472 = vst [vmem:[#allocation3 + $0x38] sm:$0xff] %v456
          %473 = vst [vmem:[#allocation3 + $0x40] sm:$0xff] %v457
          %474 = vst [vmem:[#allocation3 + $0x48] sm:$0xff] %v458
          %475 = vst [vmem:[#allocation3 + $0x50] sm:$0xff] %v459
          %476 = vst [vmem:[#allocation3 + $0x58] sm:$0xff] %v460
          %477 = vst [vmem:[#allocation3 + $0x60] sm:$0xff] %v461
          %478 = vst [vmem:[#allocation3 + $0x68] sm:$0xff] %v462
          %479 = vst [vmem:[#allocation3 + $0x70] sm:$0xff] %v463
          %480 = vst [vmem:[#allocation3 + $0x78] sm:$0xff] %v464
          %v481 = vld [vmem:[%s7] sm:$0x1]
          %v483 = vlaneseq
          %v484 = vshrl.u32 %v483, 7
          %v485 = vsub.s32 0, %v484
          %v486 = vrot.slane %v481, %v485
          %488 = vst [vmem:[#allocation15] sm:$0xff] %v486
          %489 = vst [vmem:[#allocation15 + $0x8] sm:$0xff] %v486
          %490 = vst [vmem:[#allocation15 + $0x10] sm:$0xff] %v486
          %491 = vst [vmem:[#allocation15 + $0x18] sm:$0xff] %v486
          %492 = vst [vmem:[#allocation15 + $0x20] sm:$0xff] %v486
          %493 = vst [vmem:[#allocation15 + $0x28] sm:$0xff] %v486
          %494 = vst [vmem:[#allocation15 + $0x30] sm:$0xff] %v486
          %495 = vst [vmem:[#allocation15 + $0x38] sm:$0xff] %v486
          %496 = vst [vmem:[#allocation15 + $0x40] sm:$0xff] %v486
          %497 = vst [vmem:[#allocation15 + $0x48] sm:$0xff] %v486
          %498 = vst [vmem:[#allocation15 + $0x50] sm:$0xff] %v486
          %499 = vst [vmem:[#allocation15 + $0x58] sm:$0xff] %v486
          %500 = vst [vmem:[#allocation15 + $0x60] sm:$0xff] %v486
          %501 = vst [vmem:[#allocation15 + $0x68] sm:$0xff] %v486
          %502 = vst [vmem:[#allocation15 + $0x70] sm:$0xff] %v486
          %503 = vst [vmem:[#allocation15 + $0x78] sm:$0xff] %v486
          %v504 = vld [vmem:[%s8] sm:$0xff]
          %v505 = vld [vmem:[%s8 + $0x8] sm:$0xff]
          %v506 = vld [vmem:[%s8 + $0x10] sm:$0xff]
          %v507 = vld [vmem:[%s8 + $0x18] sm:$0xff]
          %v508 = vld [vmem:[%s8 + $0x20] sm:$0xff]
          %v509 = vld [vmem:[%s8 + $0x28] sm:$0xff]
          %v510 = vld [vmem:[%s8 + $0x30] sm:$0xff]
          %v511 = vld [vmem:[%s8 + $0x38] sm:$0xff]
          %v512 = vld [vmem:[%s8 + $0x40] sm:$0xff]
          %v513 = vld [vmem:[%s8 + $0x48] sm:$0xff]
          %v514 = vld [vmem:[%s8 + $0x50] sm:$0xff]
          %v515 = vld [vmem:[%s8 + $0x58] sm:$0xff]
          %v516 = vld [vmem:[%s8 + $0x60] sm:$0xff]
          %v517 = vld [vmem:[%s8 + $0x68] sm:$0xff]
          %v518 = vld [vmem:[%s8 + $0x70] sm:$0xff]
          %v519 = vld [vmem:[%s8 + $0x78] sm:$0xff]
          %521 = vset.pattern.permute.xlu0 0
          %522 = vperm.xlu0 %521, %v504
          %v523 = vpop.permute.xlu0 %522
          %526 = vset.pattern.permute.xlu0 0
          %527 = vperm.xlu0 %526, %v505
          %v528 = vpop.permute.xlu0 %527
          %531 = vset.pattern.permute.xlu0 0
          %532 = vperm.xlu0 %531, %v506
          %v533 = vpop.permute.xlu0 %532
          %536 = vset.pattern.permute.xlu0 0
          %537 = vperm.xlu0 %536, %v507
          %v538 = vpop.permute.xlu0 %537
          %541 = vset.pattern.permute.xlu0 0
          %542 = vperm.xlu0 %541, %v508
          %v543 = vpop.permute.xlu0 %542
          %546 = vset.pattern.permute.xlu0 0
          %547 = vperm.xlu0 %546, %v509
          %v548 = vpop.permute.xlu0 %547
          %551 = vset.pattern.permute.xlu0 0
          %552 = vperm.xlu0 %551, %v510
          %v553 = vpop.permute.xlu0 %552
          %556 = vset.pattern.permute.xlu0 0
          %557 = vperm.xlu0 %556, %v511
          %v558 = vpop.permute.xlu0 %557
          %561 = vset.pattern.permute.xlu0 0
          %562 = vperm.xlu0 %561, %v512
          %v563 = vpop.permute.xlu0 %562
          %566 = vset.pattern.permute.xlu0 0
          %567 = vperm.xlu0 %566, %v513
          %v568 = vpop.permute.xlu0 %567
          %571 = vset.pattern.permute.xlu0 0
          %572 = vperm.xlu0 %571, %v514
          %v573 = vpop.permute.xlu0 %572
          %576 = vset.pattern.permute.xlu0 0
          %577 = vperm.xlu0 %576, %v515
          %v578 = vpop.permute.xlu0 %577
          %581 = vset.pattern.permute.xlu0 0
          %582 = vperm.xlu0 %581, %v516
          %v583 = vpop.permute.xlu0 %582
          %586 = vset.pattern.permute.xlu0 0
          %587 = vperm.xlu0 %586, %v517
          %v588 = vpop.permute.xlu0 %587
          %591 = vset.pattern.permute.xlu0 0
          %592 = vperm.xlu0 %591, %v518
          %v593 = vpop.permute.xlu0 %592
          %596 = vset.pattern.permute.xlu0 0
          %597 = vperm.xlu0 %596, %v519
          %v598 = vpop.permute.xlu0 %597
          %600 = vst [vmem:[#allocation16] sm:$0xff] %v523
          %601 = vst [vmem:[#allocation16 + $0x8] sm:$0xff] %v528
          %602 = vst [vmem:[#allocation16 + $0x10] sm:$0xff] %v533
          %603 = vst [vmem:[#allocation16 + $0x18] sm:$0xff] %v538
          %604 = vst [vmem:[#allocation16 + $0x20] sm:$0xff] %v543
          %605 = vst [vmem:[#allocation16 + $0x28] sm:$0xff] %v548
          %606 = vst [vmem:[#allocation16 + $0x30] sm:$0xff] %v553
          %607 = vst [vmem:[#allocation16 + $0x38] sm:$0xff] %v558
          %608 = vst [vmem:[#allocation16 + $0x40] sm:$0xff] %v563
          %609 = vst [vmem:[#allocation16 + $0x48] sm:$0xff] %v568
          %610 = vst [vmem:[#allocation16 + $0x50] sm:$0xff] %v573
          %611 = vst [vmem:[#allocation16 + $0x58] sm:$0xff] %v578
          %612 = vst [vmem:[#allocation16 + $0x60] sm:$0xff] %v583
          %613 = vst [vmem:[#allocation16 + $0x68] sm:$0xff] %v588
          %614 = vst [vmem:[#allocation16 + $0x70] sm:$0xff] %v593
          %615 = vst [vmem:[#allocation16 + $0x78] sm:$0xff] %v598
        $region84: #{tpu_custom_call.1} parent=55 // pred_fallthru
          _
        %v616 = vld [vmem:[%s0] sm:$0xff]
        %v617 = vld [vmem:[%s0 + $0x8] sm:$0xff]
        %v618 = vld [vmem:[%s0 + $0x10] sm:$0xff]
        %v619 = vld [vmem:[%s0 + $0x18] sm:$0xff]
        %v620 = vld [vmem:[%s0 + $0x20] sm:$0xff]
        %v621 = vld [vmem:[%s0 + $0x28] sm:$0xff]
        %v622 = vld [vmem:[%s0 + $0x30] sm:$0xff]
        %v623 = vld [vmem:[%s0 + $0x38] sm:$0xff]
        %v624 = vld [vmem:[%s0 + $0x40] sm:$0xff]
        %v625 = vld [vmem:[%s0 + $0x48] sm:$0xff]
        %v626 = vld [vmem:[%s0 + $0x50] sm:$0xff]
        %v627 = vld [vmem:[%s0 + $0x58] sm:$0xff]
        %v628 = vld [vmem:[%s0 + $0x60] sm:$0xff]
        %v629 = vld [vmem:[%s0 + $0x68] sm:$0xff]
        %v630 = vld [vmem:[%s0 + $0x70] sm:$0xff]
        %v631 = vld [vmem:[%s0 + $0x78] sm:$0xff]
        %v632 = vld [vmem:[#allocation2] sm:$0xff]
        %v633 = vld [vmem:[#allocation2 + $0x8] sm:$0xff]
        %v634 = vld [vmem:[#allocation2 + $0x10] sm:$0xff]
        %v635 = vld [vmem:[#allocation2 + $0x18] sm:$0xff]
        %v636 = vld [vmem:[#allocation2 + $0x20] sm:$0xff]
        %v637 = vld [vmem:[#allocation2 + $0x28] sm:$0xff]
        %v638 = vld [vmem:[#allocation2 + $0x30] sm:$0xff]
        %v639 = vld [vmem:[#allocation2 + $0x38] sm:$0xff]
        %v640 = vld [vmem:[#allocation2 + $0x40] sm:$0xff]
        %v641 = vld [vmem:[#allocation2 + $0x48] sm:$0xff]
        %v642 = vld [vmem:[#allocation2 + $0x50] sm:$0xff]
        %v643 = vld [vmem:[#allocation2 + $0x58] sm:$0xff]
        %v644 = vld [vmem:[#allocation2 + $0x60] sm:$0xff]
        %v645 = vld [vmem:[#allocation2 + $0x68] sm:$0xff]
        %v646 = vld [vmem:[#allocation2 + $0x70] sm:$0xff]
        %v647 = vld [vmem:[#allocation2 + $0x78] sm:$0xff]
        %v648 = vld [vmem:[#allocation3] sm:$0xff]
        %v649 = vld [vmem:[#allocation3 + $0x8] sm:$0xff]
        %v650 = vld [vmem:[#allocation3 + $0x10] sm:$0xff]
        %v651 = vld [vmem:[#allocation3 + $0x18] sm:$0xff]
        %v652 = vld [vmem:[#allocation3 + $0x20] sm:$0xff]
        %v653 = vld [vmem:[#allocation3 + $0x28] sm:$0xff]
        %v654 = vld [vmem:[#allocation3 + $0x30] sm:$0xff]
        %v655 = vld [vmem:[#allocation3 + $0x38] sm:$0xff]
        %v656 = vld [vmem:[#allocation3 + $0x40] sm:$0xff]
        %v657 = vld [vmem:[#allocation3 + $0x48] sm:$0xff]
        %v658 = vld [vmem:[#allocation3 + $0x50] sm:$0xff]
        %v659 = vld [vmem:[#allocation3 + $0x58] sm:$0xff]
        %v660 = vld [vmem:[#allocation3 + $0x60] sm:$0xff]
        %v661 = vld [vmem:[#allocation3 + $0x68] sm:$0xff]
        %v662 = vld [vmem:[#allocation3 + $0x70] sm:$0xff]
        %v663 = vld [vmem:[#allocation3 + $0x78] sm:$0xff]
        %664 = vmatprep.subr.mxu0 0.0
        %665 = vmatpush1.xpose.msra.mxu0 %v648
        %666 = vmatprep.subr.mxu0 0.0
        %667 = vmatpush1.xpose.msra.mxu0 %v649
        %668 = vmatprep.subr.mxu0 0.0
        %669 = vmatpush1.xpose.msra.mxu0 %v650
        %670 = vmatprep.subr.mxu0 0.0
        %671 = vmatpush1.xpose.msra.mxu0 %v651
        %672 = vmatprep.subr.mxu0 0.0
        %673 = vmatpush1.xpose.msra.mxu0 %v652
        %674 = vmatprep.subr.mxu0 0.0
        %675 = vmatpush1.xpose.msra.mxu0 %v653
        %676 = vmatprep.subr.mxu0 0.0
        %677 = vmatpush1.xpose.msra.mxu0 %v654
        %678 = vmatprep.subr.mxu0 0.0
        %679 = vmatpush1.xpose.msra.mxu0 %v655
        %680 = vmatprep.subr.mxu0 0.0
        %681 = vmatpush1.xpose.msra.mxu0 %v656
        %682 = vmatprep.subr.mxu0 0.0
        %683 = vmatpush1.xpose.msra.mxu0 %v657
        %684 = vmatprep.subr.mxu0 0.0
        %685 = vmatpush1.xpose.msra.mxu0 %v658
        %686 = vmatprep.subr.mxu0 0.0
        %687 = vmatpush1.xpose.msra.mxu0 %v659
        %688 = vmatprep.subr.mxu0 0.0
        %689 = vmatpush1.xpose.msra.mxu0 %v660
        %690 = vmatprep.subr.mxu0 0.0
        %691 = vmatpush1.xpose.msra.mxu0 %v661
        %692 = vmatprep.subr.mxu0 0.0
        %693 = vmatpush1.xpose.msra.mxu0 %v662
        %694 = vmatprep.subr.mxu0 0.0
        %695 = vmatpush1.xpose.msra.mxu0 %v663
        %696 = vmatprep.subr.mxu0 0.0
        %697 = vmatpush1.xpose.msra.mxu0 0.0
        %698 = vmatprep.subr.mxu0 0.0
        %699 = vmatpush1.xpose.msra.mxu0 0.0
        %700 = vmatprep.subr.mxu0 0.0
        %701 = vmatpush1.xpose.msra.mxu0 0.0
        %702 = vmatprep.subr.mxu0 0.0
        %703 = vmatpush1.xpose.msra.mxu0 0.0
        %704 = vmatprep.subr.mxu0 0.0
        %705 = vmatpush1.xpose.msra.mxu0 0.0
        %706 = vmatprep.subr.mxu0 0.0
        %707 = vmatpush1.xpose.msra.mxu0 0.0
        %708 = vmatprep.subr.mxu0 0.0
        %709 = vmatpush1.xpose.msra.mxu0 0.0
        %710 = vmatprep.subr.mxu0 0.0
        %711 = vmatpush1.xpose.msra.mxu0 0.0
        %712 = vmatprep.subr.mxu0 0.0
        %713 = vmatpush1.xpose.msra.mxu0 0.0
        %714 = vmatprep.subr.mxu0 0.0
        %715 = vmatpush1.xpose.msra.mxu0 0.0
        %716 = vmatprep.subr.mxu0 0.0
        %717 = vmatpush1.xpose.msra.mxu0 0.0
        %718 = vmatprep.subr.mxu0 0.0
        %719 = vmatpush1.xpose.msra.mxu0 0.0
        %720 = vmatprep.subr.mxu0 0.0
        %721 = vmatpush1.xpose.msra.mxu0 0.0
        %722 = vmatprep.subr.mxu0 0.0
        %723 = vmatpush1.xpose.msra.mxu0 0.0
        %724 = vmatprep.subr.mxu0 0.0
        %725 = vmatpush1.xpose.msra.mxu0 0.0
        %726 = vmatprep.subr.mxu0 0.0
        %727 = vmatpush1.xpose.msra.mxu0 0.0
        %728 = vmatprep.mubr.f32.mxu0 0.0
        %729 = vmatmul.mubr.f32.gmra.mrb[0].mxu0 %v616
        %v730 = vpop.f32.mrb[0].mxu0
        %v731 = vadd.f32 0.0, %v730
        %v732 = vpop.f32.mrb[0].mxu0
        %733 = vmatprep.mubr.f32.mxu0 0.0
        %734 = vmatmul.mubr.f32.gmra.mrb[0].mxu0 %v617
        %v735 = vpop.f32.mrb[0].mxu0
        %v736 = vadd.f32 0.0, %v735
        %v737 = vpop.f32.mrb[0].mxu0
        %738 = vmatprep.mubr.f32.mxu0 0.0
        %739 = vmatmul.mubr.f32.gmra.mrb[0].mxu0 %v618
        %v740 = vpop.f32.mrb[0].mxu0
        %v741 = vadd.f32 0.0, %v740
        %v742 = vpop.f32.mrb[0].mxu0
        %743 = vmatprep.mubr.f32.mxu0 0.0
        %744 = vmatmul.mubr.f32.gmra.mrb[0].mxu0 %v619
        %v745 = vpop.f32.mrb[0].mxu0
        %v746 = vadd.f32 0.0, %v745
        %v747 = vpop.f32.mrb[0].mxu0
        %748 = vmatprep.mubr.f32.mxu0 0.0
        %749 = vmatmul.mubr.f32.gmra.mrb[0].mxu0 %v620
        %v750 = vpop.f32.mrb[0].mxu0
        %v751 = vadd.f32 0.0, %v750
        %v752 = vpop.f32.mrb[0].mxu0
        %753 = vmatprep.mubr.f32.mxu0 0.0
        %754 = vmatmul.mubr.f32.gmra.mrb[0].mxu0 %v621
        %v755 = vpop.f32.mrb[0].mxu0
        %v756 = vadd.f32 0.0, %v755
        %v757 = vpop.f32.mrb[0].mxu0
        %758 = vmatprep.mubr.f32.mxu0 0.0
        %759 = vmatmul.mubr.f32.gmra.mrb[0].mxu0 %v622
        %v760 = vpop.f32.mrb[0].mxu0
        %v761 = vadd.f32 0.0, %v760
        %v762 = vpop.f32.mrb[0].mxu0
        %763 = vmatprep.mubr.f32.mxu0 0.0
        %764 = vmatmul.mubr.f32.gmra.mrb[0].mxu0 %v623
        %v765 = vpop.f32.mrb[0].mxu0
        %v766 = vadd.f32 0.0, %v765
        %v767 = vpop.f32.mrb[0].mxu0
        %768 = vmatprep.mubr.f32.mxu0 0.0
        %769 = vmatmul.mubr.f32.gmra.mrb[0].mxu0 %v624
        %v770 = vpop.f32.mrb[0].mxu0
        %v771 = vadd.f32 0.0, %v770
        %v772 = vpop.f32.mrb[0].mxu0
        %773 = vmatprep.mubr.f32.mxu0 0.0
        %774 = vmatmul.mubr.f32.gmra.mrb[0].mxu0 %v625
        %v775 = vpop.f32.mrb[0].mxu0
        %v776 = vadd.f32 0.0, %v775
        %v777 = vpop.f32.mrb[0].mxu0
        %778 = vmatprep.mubr.f32.mxu0 0.0
        %779 = vmatmul.mubr.f32.gmra.mrb[0].mxu0 %v626
        %v780 = vpop.f32.mrb[0].mxu0
        %v781 = vadd.f32 0.0, %v780
        %v782 = vpop.f32.mrb[0].mxu0
        %783 = vmatprep.mubr.f32.mxu0 0.0
        %784 = vmatmul.mubr.f32.gmra.mrb[0].mxu0 %v627
        %v785 = vpop.f32.mrb[0].mxu0
        %v786 = vadd.f32 0.0, %v785
        %v787 = vpop.f32.mrb[0].mxu0
        %788 = vmatprep.mubr.f32.mxu0 0.0
        %789 = vmatmul.mubr.f32.gmra.mrb[0].mxu0 %v628
        %v790 = vpop.f32.mrb[0].mxu0
        %v791 = vadd.f32 0.0, %v790
        %v792 = vpop.f32.mrb[0].mxu0
        %793 = vmatprep.mubr.f32.mxu0 0.0
        %794 = vmatmul.mubr.f32.gmra.mrb[0].mxu0 %v629
        %v795 = vpop.f32.mrb[0].mxu0
        %v796 = vadd.f32 0.0, %v795
        %v797 = vpop.f32.mrb[0].mxu0
        %798 = vmatprep.mubr.f32.mxu0 0.0
        %799 = vmatmul.mubr.f32.gmra.mrb[0].mxu0 %v630
        %v800 = vpop.f32.mrb[0].mxu0
        %v801 = vadd.f32 0.0, %v800
        %v802 = vpop.f32.mrb[0].mxu0
        %803 = vmatprep.mubr.f32.mxu0 0.0
        %804 = vmatmul.mubr.f32.gmra.mrb[0].mxu0 %v631
        %v805 = vpop.f32.mrb[0].mxu0
        %v806 = vadd.f32 0.0, %v805
        %v807 = vpop.f32.mrb[0].mxu0
        %808 = vdwg.mxu0
        %v809 = vmul.f32 %v731, %v632
        %v810 = vmul.f32 %v736, %v633
        %v811 = vmul.f32 %v741, %v634
        %v812 = vmul.f32 %v746, %v635
        %v813 = vmul.f32 %v751, %v636
        %v814 = vmul.f32 %v756, %v637
        %v815 = vmul.f32 %v761, %v638
        %v816 = vmul.f32 %v766, %v639
        %v817 = vmul.f32 %v771, %v640
        %v818 = vmul.f32 %v776, %v641
        %v819 = vmul.f32 %v781, %v642
        %v820 = vmul.f32 %v786, %v643
        %v821 = vmul.f32 %v791, %v644
        %v822 = vmul.f32 %v796, %v645
        %v823 = vmul.f32 %v801, %v646
        %v824 = vmul.f32 %v806, %v647
        %v825 = vld [vmem:[#allocation15] sm:$0xff]
        %v826 = vld [vmem:[#allocation15 + $0x8] sm:$0xff]
        %v827 = vld [vmem:[#allocation15 + $0x10] sm:$0xff]
        %v828 = vld [vmem:[#allocation15 + $0x18] sm:$0xff]
        %v829 = vld [vmem:[#allocation15 + $0x20] sm:$0xff]
        %v830 = vld [vmem:[#allocation15 + $0x28] sm:$0xff]
        %v831 = vld [vmem:[#allocation15 + $0x30] sm:$0xff]
        %v832 = vld [vmem:[#allocation15 + $0x38] sm:$0xff]
        %v833 = vld [vmem:[#allocation15 + $0x40] sm:$0xff]
        %v834 = vld [vmem:[#allocation15 + $0x48] sm:$0xff]
        %v835 = vld [vmem:[#allocation15 + $0x50] sm:$0xff]
        %v836 = vld [vmem:[#allocation15 + $0x58] sm:$0xff]
        %v837 = vld [vmem:[#allocation15 + $0x60] sm:$0xff]
        %v838 = vld [vmem:[#allocation15 + $0x68] sm:$0xff]
        %v839 = vld [vmem:[#allocation15 + $0x70] sm:$0xff]
        %v840 = vld [vmem:[#allocation15 + $0x78] sm:$0xff]
        %v841 = vld [vmem:[#allocation9] sm:$0xff]
        %v842 = vld [vmem:[#allocation9 + $0x8] sm:$0xff]
        %v843 = vld [vmem:[#allocation9 + $0x10] sm:$0xff]
        %v844 = vld [vmem:[#allocation9 + $0x18] sm:$0xff]
        %v845 = vld [vmem:[#allocation9 + $0x20] sm:$0xff]
        %v846 = vld [vmem:[#allocation9 + $0x28] sm:$0xff]
        %v847 = vld [vmem:[#allocation9 + $0x30] sm:$0xff]
        %v848 = vld [vmem:[#allocation9 + $0x38] sm:$0xff]
        %v849 = vld [vmem:[#allocation9 + $0x40] sm:$0xff]
        %v850 = vld [vmem:[#allocation9 + $0x48] sm:$0xff]
        %v851 = vld [vmem:[#allocation9 + $0x50] sm:$0xff]
        %v852 = vld [vmem:[#allocation9 + $0x58] sm:$0xff]
        %v853 = vld [vmem:[#allocation9 + $0x60] sm:$0xff]
        %v854 = vld [vmem:[#allocation9 + $0x68] sm:$0xff]
        %v855 = vld [vmem:[#allocation9 + $0x70] sm:$0xff]
        %v856 = vld [vmem:[#allocation9 + $0x78] sm:$0xff]
        %v857 = vld [vmem:[#allocation10] sm:$0xff]
        %v858 = vld [vmem:[#allocation10 + $0x8] sm:$0xff]
        %v859 = vld [vmem:[#allocation10 + $0x10] sm:$0xff]
        %v860 = vld [vmem:[#allocation10 + $0x18] sm:$0xff]
        %v861 = vld [vmem:[#allocation10 + $0x20] sm:$0xff]
        %v862 = vld [vmem:[#allocation10 + $0x28] sm:$0xff]
        %v863 = vld [vmem:[#allocation10 + $0x30] sm:$0xff]
        %v864 = vld [vmem:[#allocation10 + $0x38] sm:$0xff]
        %v865 = vld [vmem:[#allocation10 + $0x40] sm:$0xff]
        %v866 = vld [vmem:[#allocation10 + $0x48] sm:$0xff]
        %v867 = vld [vmem:[#allocation10 + $0x50] sm:$0xff]
        %v868 = vld [vmem:[#allocation10 + $0x58] sm:$0xff]
        %v869 = vld [vmem:[#allocation10 + $0x60] sm:$0xff]
        %v870 = vld [vmem:[#allocation10 + $0x68] sm:$0xff]
        %v871 = vld [vmem:[#allocation10 + $0x70] sm:$0xff]
        %v872 = vld [vmem:[#allocation10 + $0x78] sm:$0xff]
        %873 = vmatprep.subr.mxu0 0.0
        %874 = vmatpush1.msra.mxu0 %v857
        %875 = vmatprep.subr.mxu0 0.0
        %876 = vmatpush1.msra.mxu0 %v858
        %877 = vmatprep.subr.mxu0 0.0
        %878 = vmatpush1.msra.mxu0 %v859
        %879 = vmatprep.subr.mxu0 0.0
        %880 = vmatpush1.msra.mxu0 %v860
        %881 = vmatprep.subr.mxu0 0.0
        %882 = vmatpush1.msra.mxu0 %v861
        %883 = vmatprep.subr.mxu0 0.0
        %884 = vmatpush1.msra.mxu0 %v862
        %885 = vmatprep.subr.mxu0 0.0
        %886 = vmatpush1.msra.mxu0 %v863
        %887 = vmatprep.subr.mxu0 0.0
        %888 = vmatpush1.msra.mxu0 %v864
        %889 = vmatprep.subr.mxu0 0.0
        %890 = vmatpush1.msra.mxu0 %v865
        %891 = vmatprep.subr.mxu0 0.0
        %892 = vmatpush1.msra.mxu0 %v866
        %893 = vmatprep.subr.mxu0 0.0
        %894 = vmatpush1.msra.mxu0 %v867
        %895 = vmatprep.subr.mxu0 0.0
        %896 = vmatpush1.msra.mxu0 %v868
        %897 = vmatprep.subr.mxu0 0.0
        %898 = vmatpush1.msra.mxu0 %v869
        %899 = vmatprep.subr.mxu0 0.0
        %900 = vmatpush1.msra.mxu0 %v870
        %901 = vmatprep.subr.mxu0 0.0
        %902 = vmatpush1.msra.mxu0 %v871
        %903 = vmatprep.subr.mxu0 0.0
        %904 = vmatpush1.msra.mxu0 %v872
        %905 = vmatprep.subr.mxu0 0.0
        %906 = vmatpush1.msra.mxu0 0.0
        %907 = vmatprep.subr.mxu0 0.0
        %908 = vmatpush1.msra.mxu0 0.0
        %909 = vmatprep.subr.mxu0 0.0
        %910 = vmatpush1.msra.mxu0 0.0
        %911 = vmatprep.subr.mxu0 0.0
        %912 = vmatpush1.msra.mxu0 0.0
        %913 = vmatprep.subr.mxu0 0.0
        %914 = vmatpush1.msra.mxu0 0.0
        %915 = vmatprep.subr.mxu0 0.0
        %916 = vmatpush1.msra.mxu0 0.0
        %917 = vmatprep.subr.mxu0 0.0
        %918 = vmatpush1.msra.mxu0 0.0
        %919 = vmatprep.subr.mxu0 0.0
        %920 = vmatpush1.msra.mxu0 0.0
        %921 = vmatprep.subr.mxu0 0.0
        %922 = vmatpush1.msra.mxu0 0.0
        %923 = vmatprep.subr.mxu0 0.0
        %924 = vmatpush1.msra.mxu0 0.0
        %925 = vmatprep.subr.mxu0 0.0
        %926 = vmatpush1.msra.mxu0 0.0
        %927 = vmatprep.subr.mxu0 0.0
        %928 = vmatpush1.msra.mxu0 0.0
        %929 = vmatprep.subr.mxu0 0.0
        %930 = vmatpush1.msra.mxu0 0.0
        %931 = vmatprep.subr.mxu0 0.0
        %932 = vmatpush1.msra.mxu0 0.0
        %933 = vmatprep.subr.mxu0 0.0
        %934 = vmatpush1.msra.mxu0 0.0
        %935 = vmatprep.subr.mxu0 0.0
        %936 = vmatpush1.msra.mxu0 0.0
        %937 = vmatprep.mubr.f32.mxu0 0.0
        %938 = vmatmul.mubr.f32.gmra.mrb[0].mxu0 %v809
        %v939 = vpop.f32.mrb[0].mxu0
        %v940 = vadd.f32 0.0, %v939
        %v941 = vpop.f32.mrb[0].mxu0
        %942 = vmatprep.mubr.f32.mxu0 0.0
        %943 = vmatmul.mubr.f32.gmra.mrb[0].mxu0 %v810
        %v944 = vpop.f32.mrb[0].mxu0
        %v945 = vadd.f32 0.0, %v944
        %v946 = vpop.f32.mrb[0].mxu0
        %947 = vmatprep.mubr.f32.mxu0 0.0
        %948 = vmatmul.mubr.f32.gmra.mrb[0].mxu0 %v811
        %v949 = vpop.f32.mrb[0].mxu0
        %v950 = vadd.f32 0.0, %v949
        %v951 = vpop.f32.mrb[0].mxu0
        %952 = vmatprep.mubr.f32.mxu0 0.0
        %953 = vmatmul.mubr.f32.gmra.mrb[0].mxu0 %v812
        %v954 = vpop.f32.mrb[0].mxu0
        %v955 = vadd.f32 0.0, %v954
        %v956 = vpop.f32.mrb[0].mxu0
        %957 = vmatprep.mubr.f32.mxu0 0.0
        %958 = vmatmul.mubr.f32.gmra.mrb[0].mxu0 %v813
        %v959 = vpop.f32.mrb[0].mxu0
        %v960 = vadd.f32 0.0, %v959
        %v961 = vpop.f32.mrb[0].mxu0
        %962 = vmatprep.mubr.f32.mxu0 0.0
        %963 = vmatmul.mubr.f32.gmra.mrb[0].mxu0 %v814
        %v964 = vpop.f32.mrb[0].mxu0
        %v965 = vadd.f32 0.0, %v964
        %v966 = vpop.f32.mrb[0].mxu0
        %967 = vmatprep.mubr.f32.mxu0 0.0
        %968 = vmatmul.mubr.f32.gmra.mrb[0].mxu0 %v815
        %v969 = vpop.f32.mrb[0].mxu0
        %v970 = vadd.f32 0.0, %v969
        %v971 = vpop.f32.mrb[0].mxu0
        %972 = vmatprep.mubr.f32.mxu0 0.0
        %973 = vmatmul.mubr.f32.gmra.mrb[0].mxu0 %v816
        %v974 = vpop.f32.mrb[0].mxu0
        %v975 = vadd.f32 0.0, %v974
        %v976 = vpop.f32.mrb[0].mxu0
        %977 = vmatprep.mubr.f32.mxu0 0.0
        %978 = vmatmul.mubr.f32.gmra.mrb[0].mxu0 %v817
        %v979 = vpop.f32.mrb[0].mxu0
        %v980 = vadd.f32 0.0, %v979
        %v981 = vpop.f32.mrb[0].mxu0
        %982 = vmatprep.mubr.f32.mxu0 0.0
        %983 = vmatmul.mubr.f32.gmra.mrb[0].mxu0 %v818
        %v984 = vpop.f32.mrb[0].mxu0
        %v985 = vadd.f32 0.0, %v984
        %v986 = vpop.f32.mrb[0].mxu0
        %987 = vmatprep.mubr.f32.mxu0 0.0
        %988 = vmatmul.mubr.f32.gmra.mrb[0].mxu0 %v819
        %v989 = vpop.f32.mrb[0].mxu0
        %v990 = vadd.f32 0.0, %v989
        %v991 = vpop.f32.mrb[0].mxu0
        %992 = vmatprep.mubr.f32.mxu0 0.0
        %993 = vmatmul.mubr.f32.gmra.mrb[0].mxu0 %v820
        %v994 = vpop.f32.mrb[0].mxu0
        %v995 = vadd.f32 0.0, %v994
        %v996 = vpop.f32.mrb[0].mxu0
        %997 = vmatprep.mubr.f32.mxu0 0.0
        %998 = vmatmul.mubr.f32.gmra.mrb[0].mxu0 %v821
        %v999 = vpop.f32.mrb[0].mxu0
        %v1000 = vadd.f32 0.0, %v999
        %v1001 = vpop.f32.mrb[0].mxu0
        %1002 = vmatprep.mubr.f32.mxu0 0.0
        %1003 = vmatmul.mubr.f32.gmra.mrb[0].mxu0 %v822
        %v1004 = vpop.f32.mrb[0].mxu0
        %v1005 = vadd.f32 0.0, %v1004
        %v1006 = vpop.f32.mrb[0].mxu0
        %1007 = vmatprep.mubr.f32.mxu0 0.0
        %1008 = vmatmul.mubr.f32.gmra.mrb[0].mxu0 %v823
        %v1009 = vpop.f32.mrb[0].mxu0
        %v1010 = vadd.f32 0.0, %v1009
        %v1011 = vpop.f32.mrb[0].mxu0
        %1012 = vmatprep.mubr.f32.mxu0 0.0
        %1013 = vmatmul.mubr.f32.gmra.mrb[0].mxu0 %v824
        %v1014 = vpop.f32.mrb[0].mxu0
        %v1015 = vadd.f32 0.0, %v1014
        %v1016 = vpop.f32.mrb[0].mxu0
        %1017 = vdwg.mxu0
        %1018 = vmatprep.subr.mxu0 0.0
        %1019 = vmatpush1.msra.mxu0 %v841
        %1020 = vmatprep.subr.mxu0 0.0
        %1021 = vmatpush1.msra.mxu0 %v842
        %1022 = vmatprep.subr.mxu0 0.0
        %1023 = vmatpush1.msra.mxu0 %v843
        %1024 = vmatprep.subr.mxu0 0.0
        %1025 = vmatpush1.msra.mxu0 %v844
        %1026 = vmatprep.subr.mxu0 0.0
        %1027 = vmatpush1.msra.mxu0 %v845
        %1028 = vmatprep.subr.mxu0 0.0
        %1029 = vmatpush1.msra.mxu0 %v846
        %1030 = vmatprep.subr.mxu0 0.0
        %1031 = vmatpush1.msra.mxu0 %v847
        %1032 = vmatprep.subr.mxu0 0.0
        %1033 = vmatpush1.msra.mxu0 %v848
        %1034 = vmatprep.subr.mxu0 0.0
        %1035 = vmatpush1.msra.mxu0 %v849
        %1036 = vmatprep.subr.mxu0 0.0
        %1037 = vmatpush1.msra.mxu0 %v850
        %1038 = vmatprep.subr.mxu0 0.0
        %1039 = vmatpush1.msra.mxu0 %v851
        %1040 = vmatprep.subr.mxu0 0.0
        %1041 = vmatpush1.msra.mxu0 %v852
        %1042 = vmatprep.subr.mxu0 0.0
        %1043 = vmatpush1.msra.mxu0 %v853
        %1044 = vmatprep.subr.mxu0 0.0
        %1045 = vmatpush1.msra.mxu0 %v854
        %1046 = vmatprep.subr.mxu0 0.0
        %1047 = vmatpush1.msra.mxu0 %v855
        %1048 = vmatprep.subr.mxu0 0.0
        %1049 = vmatpush1.msra.mxu0 %v856
        %1050 = vmatprep.subr.mxu0 0.0
        %1051 = vmatpush1.msra.mxu0 0.0
        %1052 = vmatprep.subr.mxu0 0.0
        %1053 = vmatpush1.msra.mxu0 0.0
        %1054 = vmatprep.subr.mxu0 0.0
        %1055 = vmatpush1.msra.mxu0 0.0
        %1056 = vmatprep.subr.mxu0 0.0
        %1057 = vmatpush1.msra.mxu0 0.0
        %1058 = vmatprep.subr.mxu0 0.0
        %1059 = vmatpush1.msra.mxu0 0.0
        %1060 = vmatprep.subr.mxu0 0.0
        %1061 = vmatpush1.msra.mxu0 0.0
        %1062 = vmatprep.subr.mxu0 0.0
        %1063 = vmatpush1.msra.mxu0 0.0
        %1064 = vmatprep.subr.mxu0 0.0
        %1065 = vmatpush1.msra.mxu0 0.0
        %1066 = vmatprep.subr.mxu0 0.0
        %1067 = vmatpush1.msra.mxu0 0.0
        %1068 = vmatprep.subr.mxu0 0.0
        %1069 = vmatpush1.msra.mxu0 0.0
        %1070 = vmatprep.subr.mxu0 0.0
        %1071 = vmatpush1.msra.mxu0 0.0
        %1072 = vmatprep.subr.mxu0 0.0
        %1073 = vmatpush1.msra.mxu0 0.0
        %1074 = vmatprep.subr.mxu0 0.0
        %1075 = vmatpush1.msra.mxu0 0.0
        %1076 = vmatprep.subr.mxu0 0.0
        %1077 = vmatpush1.msra.mxu0 0.0
        %1078 = vmatprep.subr.mxu0 0.0
        %1079 = vmatpush1.msra.mxu0 0.0
        %1080 = vmatprep.subr.mxu0 0.0
        %1081 = vmatpush1.msra.mxu0 0.0
        %1082 = vmatprep.mubr.f32.mxu0 0.0
        %1083 = vmatmul.mubr.f32.gmra.mrb[0].mxu0 %v731
        %v1084 = vpop.f32.mrb[0].mxu0
        %v1085 = vadd.f32 %v940, %v1084
        %v1086 = vpop.f32.mrb[0].mxu0
        %1087 = vmatprep.mubr.f32.mxu0 0.0
        %1088 = vmatmul.mubr.f32.gmra.mrb[0].mxu0 %v736
        %v1089 = vpop.f32.mrb[0].mxu0
        %v1090 = vadd.f32 %v945, %v1089
        %v1091 = vpop.f32.mrb[0].mxu0
        %1092 = vmatprep.mubr.f32.mxu0 0.0
        %1093 = vmatmul.mubr.f32.gmra.mrb[0].mxu0 %v741
        %v1094 = vpop.f32.mrb[0].mxu0
        %v1095 = vadd.f32 %v950, %v1094
        %v1096 = vpop.f32.mrb[0].mxu0
        %1097 = vmatprep.mubr.f32.mxu0 0.0
        %1098 = vmatmul.mubr.f32.gmra.mrb[0].mxu0 %v746
        %v1099 = vpop.f32.mrb[0].mxu0
        %v1100 = vadd.f32 %v955, %v1099
        %v1101 = vpop.f32.mrb[0].mxu0
        %1102 = vmatprep.mubr.f32.mxu0 0.0
        %1103 = vmatmul.mubr.f32.gmra.mrb[0].mxu0 %v751
        %v1104 = vpop.f32.mrb[0].mxu0
        %v1105 = vadd.f32 %v960, %v1104
        %v1106 = vpop.f32.mrb[0].mxu0
        %1107 = vmatprep.mubr.f32.mxu0 0.0
        %1108 = vmatmul.mubr.f32.gmra.mrb[0].mxu0 %v756
        %v1109 = vpop.f32.mrb[0].mxu0
        %v1110 = vadd.f32 %v965, %v1109
        %v1111 = vpop.f32.mrb[0].mxu0
        %1112 = vmatprep.mubr.f32.mxu0 0.0
        %1113 = vmatmul.mubr.f32.gmra.mrb[0].mxu0 %v761
        %v1114 = vpop.f32.mrb[0].mxu0
        %v1115 = vadd.f32 %v970, %v1114
        %v1116 = vpop.f32.mrb[0].mxu0
        %1117 = vmatprep.mubr.f32.mxu0 0.0
        %1118 = vmatmul.mubr.f32.gmra.mrb[0].mxu0 %v766
        %v1119 = vpop.f32.mrb[0].mxu0
        %v1120 = vadd.f32 %v975, %v1119
        %v1121 = vpop.f32.mrb[0].mxu0
        %1122 = vmatprep.mubr.f32.mxu0 0.0
        %1123 = vmatmul.mubr.f32.gmra.mrb[0].mxu0 %v771
        %v1124 = vpop.f32.mrb[0].mxu0
        %v1125 = vadd.f32 %v980, %v1124
        %v1126 = vpop.f32.mrb[0].mxu0
        %1127 = vmatprep.mubr.f32.mxu0 0.0
        %1128 = vmatmul.mubr.f32.gmra.mrb[0].mxu0 %v776
        %v1129 = vpop.f32.mrb[0].mxu0
        %v1130 = vadd.f32 %v985, %v1129
        %v1131 = vpop.f32.mrb[0].mxu0
        %1132 = vmatprep.mubr.f32.mxu0 0.0
        %1133 = vmatmul.mubr.f32.gmra.mrb[0].mxu0 %v781
        %v1134 = vpop.f32.mrb[0].mxu0
        %v1135 = vadd.f32 %v990, %v1134
        %v1136 = vpop.f32.mrb[0].mxu0
        %1137 = vmatprep.mubr.f32.mxu0 0.0
        %1138 = vmatmul.mubr.f32.gmra.mrb[0].mxu0 %v786
        %v1139 = vpop.f32.mrb[0].mxu0
        %v1140 = vadd.f32 %v995, %v1139
        %v1141 = vpop.f32.mrb[0].mxu0
        %1142 = vmatprep.mubr.f32.mxu0 0.0
        %1143 = vmatmul.mubr.f32.gmra.mrb[0].mxu0 %v791
        %v1144 = vpop.f32.mrb[0].mxu0
        %v1145 = vadd.f32 %v1000, %v1144
        %v1146 = vpop.f32.mrb[0].mxu0
        %1147 = vmatprep.mubr.f32.mxu0 0.0
        %1148 = vmatmul.mubr.f32.gmra.mrb[0].mxu0 %v796
        %v1149 = vpop.f32.mrb[0].mxu0
        %v1150 = vadd.f32 %v1005, %v1149
        %v1151 = vpop.f32.mrb[0].mxu0
        %1152 = vmatprep.mubr.f32.mxu0 0.0
        %1153 = vmatmul.mubr.f32.gmra.mrb[0].mxu0 %v801
        %v1154 = vpop.f32.mrb[0].mxu0
        %v1155 = vadd.f32 %v1010, %v1154
        %v1156 = vpop.f32.mrb[0].mxu0
        %1157 = vmatprep.mubr.f32.mxu0 0.0
        %1158 = vmatmul.mubr.f32.gmra.mrb[0].mxu0 %v806
        %v1159 = vpop.f32.mrb[0].mxu0
        %v1160 = vadd.f32 %v1015, %v1159
        %v1161 = vpop.f32.mrb[0].mxu0
        %1162 = vdwg.mxu0
        %v1163 = vadd.f32 %v825, %v1085
        %v1164 = vadd.f32 %v826, %v1090
        %v1165 = vadd.f32 %v827, %v1095
        %v1166 = vadd.f32 %v828, %v1100
        %v1167 = vadd.f32 %v829, %v1105
        %v1168 = vadd.f32 %v830, %v1110
        %v1169 = vadd.f32 %v831, %v1115
        %v1170 = vadd.f32 %v832, %v1120
        %v1171 = vadd.f32 %v833, %v1125
        %v1172 = vadd.f32 %v834, %v1130
        %v1173 = vadd.f32 %v835, %v1135
        %v1174 = vadd.f32 %v836, %v1140
        %v1175 = vadd.f32 %v837, %v1145
        %v1176 = vadd.f32 %v838, %v1150
        %v1177 = vadd.f32 %v839, %v1155
        %v1178 = vadd.f32 %v840, %v1160
        %1179 = vst [vmem:[#allocation15] sm:$0xff] %v1163
        %1180 = vst [vmem:[#allocation15 + $0x8] sm:$0xff] %v1164
        %1181 = vst [vmem:[#allocation15 + $0x10] sm:$0xff] %v1165
        %1182 = vst [vmem:[#allocation15 + $0x18] sm:$0xff] %v1166
        %1183 = vst [vmem:[#allocation15 + $0x20] sm:$0xff] %v1167
        %1184 = vst [vmem:[#allocation15 + $0x28] sm:$0xff] %v1168
        %1185 = vst [vmem:[#allocation15 + $0x30] sm:$0xff] %v1169
        %1186 = vst [vmem:[#allocation15 + $0x38] sm:$0xff] %v1170
        %1187 = vst [vmem:[#allocation15 + $0x40] sm:$0xff] %v1171
        %1188 = vst [vmem:[#allocation15 + $0x48] sm:$0xff] %v1172
        %1189 = vst [vmem:[#allocation15 + $0x50] sm:$0xff] %v1173
        %1190 = vst [vmem:[#allocation15 + $0x58] sm:$0xff] %v1174
        %1191 = vst [vmem:[#allocation15 + $0x60] sm:$0xff] %v1175
        %1192 = vst [vmem:[#allocation15 + $0x68] sm:$0xff] %v1176
        %1193 = vst [vmem:[#allocation15 + $0x70] sm:$0xff] %v1177
        %1194 = vst [vmem:[#allocation15 + $0x78] sm:$0xff] %v1178
        %v1195 = vadd.f32 %v731, %v809
        %v1196 = vadd.f32 %v736, %v810
        %v1197 = vadd.f32 %v741, %v811
        %v1198 = vadd.f32 %v746, %v812
        %v1199 = vadd.f32 %v751, %v813
        %v1200 = vadd.f32 %v756, %v814
        %v1201 = vadd.f32 %v761, %v815
        %v1202 = vadd.f32 %v766, %v816
        %v1203 = vadd.f32 %v771, %v817
        %v1204 = vadd.f32 %v776, %v818
        %v1205 = vadd.f32 %v781, %v819
        %v1206 = vadd.f32 %v786, %v820
        %v1207 = vadd.f32 %v791, %v821
        %v1208 = vadd.f32 %v796, %v822
        %v1209 = vadd.f32 %v801, %v823
        %v1210 = vadd.f32 %v806, %v824
        %1211 = vst [vmem:[#allocation2] sm:$0xff] %v1195
        %1212 = vst [vmem:[#allocation2 + $0x8] sm:$0xff] %v1196
        %1213 = vst [vmem:[#allocation2 + $0x10] sm:$0xff] %v1197
        %1214 = vst [vmem:[#allocation2 + $0x18] sm:$0xff] %v1198
        %1215 = vst [vmem:[#allocation2 + $0x20] sm:$0xff] %v1199
        %1216 = vst [vmem:[#allocation2 + $0x28] sm:$0xff] %v1200
        %1217 = vst [vmem:[#allocation2 + $0x30] sm:$0xff] %v1201
        %1218 = vst [vmem:[#allocation2 + $0x38] sm:$0xff] %v1202
        %1219 = vst [vmem:[#allocation2 + $0x40] sm:$0xff] %v1203
        %1220 = vst [vmem:[#allocation2 + $0x48] sm:$0xff] %v1204
        %1221 = vst [vmem:[#allocation2 + $0x50] sm:$0xff] %v1205
        %1222 = vst [vmem:[#allocation2 + $0x58] sm:$0xff] %v1206
        %1223 = vst [vmem:[#allocation2 + $0x60] sm:$0xff] %v1207
        %1224 = vst [vmem:[#allocation2 + $0x68] sm:$0xff] %v1208
        %1225 = vst [vmem:[#allocation2 + $0x70] sm:$0xff] %v1209
        %1226 = vst [vmem:[#allocation2 + $0x78] sm:$0xff] %v1210
        %1227 = vxpose.xlu0.b32.start [1/16] %v632, 128
        %1228 = vxpose.xlu0.b32.cont [2/16] %v633, 128
        %1229 = vxpose.xlu0.b32.cont [3/16] %v634, 128
        %1230 = vxpose.xlu0.b32.cont [4/16] %v635, 128
        %1231 = vxpose.xlu0.b32.cont [5/16] %v636, 128
        %1232 = vxpose.xlu0.b32.cont [6/16] %v637, 128
        %1233 = vxpose.xlu0.b32.cont [7/16] %v638, 128
        %1234 = vxpose.xlu0.b32.cont [8/16] %v639, 128
        %1235 = vxpose.xlu0.b32.cont [9/16] %v640, 128
        %1236 = vxpose.xlu0.b32.cont [10/16] %v641, 128
        %1237 = vxpose.xlu0.b32.cont [11/16] %v642, 128
        %1238 = vxpose.xlu0.b32.cont [12/16] %v643, 128
        %1239 = vxpose.xlu0.b32.cont [13/16] %v644, 128
        %1240 = vxpose.xlu0.b32.cont [14/16] %v645, 128
        %1241 = vxpose.xlu0.b32.cont [15/16] %v646, 128
        %1242 = vxpose.xlu0.b32.end [16/16] %v647, 128
        %v1243 = vpop.trf.xlu0
        %v1244 = vpop.trf.xlu0
        %v1245 = vpop.trf.xlu0
        %v1246 = vpop.trf.xlu0
        %v1247 = vpop.trf.xlu0
        %v1248 = vpop.trf.xlu0
        %v1249 = vpop.trf.xlu0
        %v1250 = vpop.trf.xlu0
        %v1251 = vpop.trf.xlu0
        %v1252 = vpop.trf.xlu0
        %v1253 = vpop.trf.xlu0
        %v1254 = vpop.trf.xlu0
        %v1255 = vpop.trf.xlu0
        %v1256 = vpop.trf.xlu0
        %v1257 = vpop.trf.xlu0
        %v1258 = vpop.trf.xlu0
        %1259 = vmatprep.subr.mxu0 0.0
        %1260 = vmatpush1.msra.mxu0 %v616
        %1261 = vmatprep.subr.mxu0 0.0
        %1262 = vmatpush1.msra.mxu0 %v617
        %1263 = vmatprep.subr.mxu0 0.0
        %1264 = vmatpush1.msra.mxu0 %v618
        %1265 = vmatprep.subr.mxu0 0.0
        %1266 = vmatpush1.msra.mxu0 %v619
        %1267 = vmatprep.subr.mxu0 0.0
        %1268 = vmatpush1.msra.mxu0 %v620
        %1269 = vmatprep.subr.mxu0 0.0
        %1270 = vmatpush1.msra.mxu0 %v621
        %1271 = vmatprep.subr.mxu0 0.0
        %1272 = vmatpush1.msra.mxu0 %v622
        %1273 = vmatprep.subr.mxu0 0.0
        %1274 = vmatpush1.msra.mxu0 %v623
        %1275 = vmatprep.subr.mxu0 0.0
        %1276 = vmatpush1.msra.mxu0 %v624
        %1277 = vmatprep.subr.mxu0 0.0
        %1278 = vmatpush1.msra.mxu0 %v625
        %1279 = vmatprep.subr.mxu0 0.0
        %1280 = vmatpush1.msra.mxu0 %v626
        %1281 = vmatprep.subr.mxu0 0.0
        %1282 = vmatpush1.msra.mxu0 %v627
        %1283 = vmatprep.subr.mxu0 0.0
        %1284 = vmatpush1.msra.mxu0 %v628
        %1285 = vmatprep.subr.mxu0 0.0
        %1286 = vmatpush1.msra.mxu0 %v629
        %1287 = vmatprep.subr.mxu0 0.0
        %1288 = vmatpush1.msra.mxu0 %v630
        %1289 = vmatprep.subr.mxu0 0.0
        %1290 = vmatpush1.msra.mxu0 %v631
        %1291 = vmatprep.subr.mxu0 0.0
        %1292 = vmatpush1.msra.mxu0 0.0
        %1293 = vmatprep.subr.mxu0 0.0
        %1294 = vmatpush1.msra.mxu0 0.0
        %1295 = vmatprep.subr.mxu0 0.0
        %1296 = vmatpush1.msra.mxu0 0.0
        %1297 = vmatprep.subr.mxu0 0.0
        %1298 = vmatpush1.msra.mxu0 0.0
        %1299 = vmatprep.subr.mxu0 0.0
        %1300 = vmatpush1.msra.mxu0 0.0
        %1301 = vmatprep.subr.mxu0 0.0
        %1302 = vmatpush1.msra.mxu0 0.0
        %1303 = vmatprep.subr.mxu0 0.0
        %1304 = vmatpush1.msra.mxu0 0.0
        %1305 = vmatprep.subr.mxu0 0.0
        %1306 = vmatpush1.msra.mxu0 0.0
        %1307 = vmatprep.subr.mxu0 0.0
        %1308 = vmatpush1.msra.mxu0 0.0
        %1309 = vmatprep.subr.mxu0 0.0
        %1310 = vmatpush1.msra.mxu0 0.0
        %1311 = vmatprep.subr.mxu0 0.0
        %1312 = vmatpush1.msra.mxu0 0.0
        %1313 = vmatprep.subr.mxu0 0.0
        %1314 = vmatpush1.msra.mxu0 0.0
        %1315 = vmatprep.subr.mxu0 0.0
        %1316 = vmatpush1.msra.mxu0 0.0
        %1317 = vmatprep.subr.mxu0 0.0
        %1318 = vmatpush1.msra.mxu0 0.0
        %1319 = vmatprep.subr.mxu0 0.0
        %1320 = vmatpush1.msra.mxu0 0.0
        %1321 = vmatprep.subr.mxu0 0.0
        %1322 = vmatpush1.msra.mxu0 0.0
        %1323 = vmatprep.mubr.f32.mxu0 0.0
        %1324 = vmatmul.mubr.f32.gmra.mrb[0].mxu0 %v1243
        %v1325 = vpop.f32.mrb[0].mxu0
        %v1326 = vadd.f32 0.0, %v1325
        %v1327 = vpop.f32.mrb[0].mxu0
        %1328 = vmatprep.mubr.f32.mxu0 0.0
        %1329 = vmatmul.mubr.f32.gmra.mrb[0].mxu0 %v1244
        %v1330 = vpop.f32.mrb[0].mxu0
        %v1331 = vadd.f32 0.0, %v1330
        %v1332 = vpop.f32.mrb[0].mxu0
        %1333 = vmatprep.mubr.f32.mxu0 0.0
        %1334 = vmatmul.mubr.f32.gmra.mrb[0].mxu0 %v1245
        %v1335 = vpop.f32.mrb[0].mxu0
        %v1336 = vadd.f32 0.0, %v1335
        %v1337 = vpop.f32.mrb[0].mxu0
        %1338 = vmatprep.mubr.f32.mxu0 0.0
        %1339 = vmatmul.mubr.f32.gmra.mrb[0].mxu0 %v1246
        %v1340 = vpop.f32.mrb[0].mxu0
        %v1341 = vadd.f32 0.0, %v1340
        %v1342 = vpop.f32.mrb[0].mxu0
        %1343 = vmatprep.mubr.f32.mxu0 0.0
        %1344 = vmatmul.mubr.f32.gmra.mrb[0].mxu0 %v1247
        %v1345 = vpop.f32.mrb[0].mxu0
        %v1346 = vadd.f32 0.0, %v1345
        %v1347 = vpop.f32.mrb[0].mxu0
        %1348 = vmatprep.mubr.f32.mxu0 0.0
        %1349 = vmatmul.mubr.f32.gmra.mrb[0].mxu0 %v1248
        %v1350 = vpop.f32.mrb[0].mxu0
        %v1351 = vadd.f32 0.0, %v1350
        %v1352 = vpop.f32.mrb[0].mxu0
        %1353 = vmatprep.mubr.f32.mxu0 0.0
        %1354 = vmatmul.mubr.f32.gmra.mrb[0].mxu0 %v1249
        %v1355 = vpop.f32.mrb[0].mxu0
        %v1356 = vadd.f32 0.0, %v1355
        %v1357 = vpop.f32.mrb[0].mxu0
        %1358 = vmatprep.mubr.f32.mxu0 0.0
        %1359 = vmatmul.mubr.f32.gmra.mrb[0].mxu0 %v1250
        %v1360 = vpop.f32.mrb[0].mxu0
        %v1361 = vadd.f32 0.0, %v1360
        %v1362 = vpop.f32.mrb[0].mxu0
        %1363 = vmatprep.mubr.f32.mxu0 0.0
        %1364 = vmatmul.mubr.f32.gmra.mrb[0].mxu0 %v1251
        %v1365 = vpop.f32.mrb[0].mxu0
        %v1366 = vadd.f32 0.0, %v1365
        %v1367 = vpop.f32.mrb[0].mxu0
        %1368 = vmatprep.mubr.f32.mxu0 0.0
        %1369 = vmatmul.mubr.f32.gmra.mrb[0].mxu0 %v1252
        %v1370 = vpop.f32.mrb[0].mxu0
        %v1371 = vadd.f32 0.0, %v1370
        %v1372 = vpop.f32.mrb[0].mxu0
        %1373 = vmatprep.mubr.f32.mxu0 0.0
        %1374 = vmatmul.mubr.f32.gmra.mrb[0].mxu0 %v1253
        %v1375 = vpop.f32.mrb[0].mxu0
        %v1376 = vadd.f32 0.0, %v1375
        %v1377 = vpop.f32.mrb[0].mxu0
        %1378 = vmatprep.mubr.f32.mxu0 0.0
        %1379 = vmatmul.mubr.f32.gmra.mrb[0].mxu0 %v1254
        %v1380 = vpop.f32.mrb[0].mxu0
        %v1381 = vadd.f32 0.0, %v1380
        %v1382 = vpop.f32.mrb[0].mxu0
        %1383 = vmatprep.mubr.f32.mxu0 0.0
        %1384 = vmatmul.mubr.f32.gmra.mrb[0].mxu0 %v1255
        %v1385 = vpop.f32.mrb[0].mxu0
        %v1386 = vadd.f32 0.0, %v1385
        %v1387 = vpop.f32.mrb[0].mxu0
        %1388 = vmatprep.mubr.f32.mxu0 0.0
        %1389 = vmatmul.mubr.f32.gmra.mrb[0].mxu0 %v1256
        %v1390 = vpop.f32.mrb[0].mxu0
        %v1391 = vadd.f32 0.0, %v1390
        %v1392 = vpop.f32.mrb[0].mxu0
        %1393 = vmatprep.mubr.f32.mxu0 0.0
        %1394 = vmatmul.mubr.f32.gmra.mrb[0].mxu0 %v1257
        %v1395 = vpop.f32.mrb[0].mxu0
        %v1396 = vadd.f32 0.0, %v1395
        %v1397 = vpop.f32.mrb[0].mxu0
        %1398 = vmatprep.mubr.f32.mxu0 0.0
        %1399 = vmatmul.mubr.f32.gmra.mrb[0].mxu0 %v1258
        %v1400 = vpop.f32.mrb[0].mxu0
        %v1401 = vadd.f32 0.0, %v1400
        %v1402 = vpop.f32.mrb[0].mxu0
        %1403 = vdwg.mxu0
        %v1404 = vmul.f32 %v1326, %v648
        %v1405 = vmul.f32 %v1331, %v649
        %v1406 = vmul.f32 %v1336, %v650
        %v1407 = vmul.f32 %v1341, %v651
        %v1408 = vmul.f32 %v1346, %v652
        %v1409 = vmul.f32 %v1351, %v653
        %v1410 = vmul.f32 %v1356, %v654
        %v1411 = vmul.f32 %v1361, %v655
        %v1412 = vmul.f32 %v1366, %v656
        %v1413 = vmul.f32 %v1371, %v657
        %v1414 = vmul.f32 %v1376, %v658
        %v1415 = vmul.f32 %v1381, %v659
        %v1416 = vmul.f32 %v1386, %v660
        %v1417 = vmul.f32 %v1391, %v661
        %v1418 = vmul.f32 %v1396, %v662
        %v1419 = vmul.f32 %v1401, %v663
        %v1420 = vld [vmem:[#allocation16] sm:$0xff]
        %v1421 = vld [vmem:[#allocation16 + $0x8] sm:$0xff]
        %v1422 = vld [vmem:[#allocation16 + $0x10] sm:$0xff]
        %v1423 = vld [vmem:[#allocation16 + $0x18] sm:$0xff]
        %v1424 = vld [vmem:[#allocation16 + $0x20] sm:$0xff]
        %v1425 = vld [vmem:[#allocation16 + $0x28] sm:$0xff]
        %v1426 = vld [vmem:[#allocation16 + $0x30] sm:$0xff]
        %v1427 = vld [vmem:[#allocation16 + $0x38] sm:$0xff]
        %v1428 = vld [vmem:[#allocation16 + $0x40] sm:$0xff]
        %v1429 = vld [vmem:[#allocation16 + $0x48] sm:$0xff]
        %v1430 = vld [vmem:[#allocation16 + $0x50] sm:$0xff]
        %v1431 = vld [vmem:[#allocation16 + $0x58] sm:$0xff]
        %v1432 = vld [vmem:[#allocation16 + $0x60] sm:$0xff]
        %v1433 = vld [vmem:[#allocation16 + $0x68] sm:$0xff]
        %v1434 = vld [vmem:[#allocation16 + $0x70] sm:$0xff]
        %v1435 = vld [vmem:[#allocation16 + $0x78] sm:$0xff]
        %v1436 = vld [vmem:[#allocation12] sm:$0xff]
        %v1437 = vld [vmem:[#allocation12 + $0x8] sm:$0xff]
        %v1438 = vld [vmem:[#allocation12 + $0x10] sm:$0xff]
        %v1439 = vld [vmem:[#allocation12 + $0x18] sm:$0xff]
        %v1440 = vld [vmem:[#allocation12 + $0x20] sm:$0xff]
        %v1441 = vld [vmem:[#allocation12 + $0x28] sm:$0xff]
        %v1442 = vld [vmem:[#allocation12 + $0x30] sm:$0xff]
        %v1443 = vld [vmem:[#allocation12 + $0x38] sm:$0xff]
        %v1444 = vld [vmem:[#allocation12 + $0x40] sm:$0xff]
        %v1445 = vld [vmem:[#allocation12 + $0x48] sm:$0xff]
        %v1446 = vld [vmem:[#allocation12 + $0x50] sm:$0xff]
        %v1447 = vld [vmem:[#allocation12 + $0x58] sm:$0xff]
        %v1448 = vld [vmem:[#allocation12 + $0x60] sm:$0xff]
        %v1449 = vld [vmem:[#allocation12 + $0x68] sm:$0xff]
        %v1450 = vld [vmem:[#allocation12 + $0x70] sm:$0xff]
        %v1451 = vld [vmem:[#allocation12 + $0x78] sm:$0xff]
        %v1452 = vld [vmem:[#allocation13] sm:$0xff]
        %v1453 = vld [vmem:[#allocation13 + $0x8] sm:$0xff]
        %v1454 = vld [vmem:[#allocation13 + $0x10] sm:$0xff]
        %v1455 = vld [vmem:[#allocation13 + $0x18] sm:$0xff]
        %v1456 = vld [vmem:[#allocation13 + $0x20] sm:$0xff]
        %v1457 = vld [vmem:[#allocation13 + $0x28] sm:$0xff]
        %v1458 = vld [vmem:[#allocation13 + $0x30] sm:$0xff]
        %v1459 = vld [vmem:[#allocation13 + $0x38] sm:$0xff]
        %v1460 = vld [vmem:[#allocation13 + $0x40] sm:$0xff]
        %v1461 = vld [vmem:[#allocation13 + $0x48] sm:$0xff]
        %v1462 = vld [vmem:[#allocation13 + $0x50] sm:$0xff]
        %v1463 = vld [vmem:[#allocation13 + $0x58] sm:$0xff]
        %v1464 = vld [vmem:[#allocation13 + $0x60] sm:$0xff]
        %v1465 = vld [vmem:[#allocation13 + $0x68] sm:$0xff]
        %v1466 = vld [vmem:[#allocation13 + $0x70] sm:$0xff]
        %v1467 = vld [vmem:[#allocation13 + $0x78] sm:$0xff]
        %1468 = vmatprep.subr.mxu0 0.0
        %1469 = vmatpush1.msra.mxu0 %v1404
        %1470 = vmatprep.subr.mxu0 0.0
        %1471 = vmatpush1.msra.mxu0 %v1405
        %1472 = vmatprep.subr.mxu0 0.0
        %1473 = vmatpush1.msra.mxu0 %v1406
        %1474 = vmatprep.subr.mxu0 0.0
        %1475 = vmatpush1.msra.mxu0 %v1407
        %1476 = vmatprep.subr.mxu0 0.0
        %1477 = vmatpush1.msra.mxu0 %v1408
        %1478 = vmatprep.subr.mxu0 0.0
        %1479 = vmatpush1.msra.mxu0 %v1409
        %1480 = vmatprep.subr.mxu0 0.0
        %1481 = vmatpush1.msra.mxu0 %v1410
        %1482 = vmatprep.subr.mxu0 0.0
        %1483 = vmatpush1.msra.mxu0 %v1411
        %1484 = vmatprep.subr.mxu0 0.0
        %1485 = vmatpush1.msra.mxu0 %v1412
        %1486 = vmatprep.subr.mxu0 0.0
        %1487 = vmatpush1.msra.mxu0 %v1413
        %1488 = vmatprep.subr.mxu0 0.0
        %1489 = vmatpush1.msra.mxu0 %v1414
        %1490 = vmatprep.subr.mxu0 0.0
        %1491 = vmatpush1.msra.mxu0 %v1415
        %1492 = vmatprep.subr.mxu0 0.0
        %1493 = vmatpush1.msra.mxu0 %v1416
        %1494 = vmatprep.subr.mxu0 0.0
        %1495 = vmatpush1.msra.mxu0 %v1417
        %1496 = vmatprep.subr.mxu0 0.0
        %1497 = vmatpush1.msra.mxu0 %v1418
        %1498 = vmatprep.subr.mxu0 0.0
        %1499 = vmatpush1.msra.mxu0 %v1419
        %1500 = vmatprep.subr.mxu0 0.0
        %1501 = vmatpush1.msra.mxu0 0.0
        %1502 = vmatprep.subr.mxu0 0.0
        %1503 = vmatpush1.msra.mxu0 0.0
        %1504 = vmatprep.subr.mxu0 0.0
        %1505 = vmatpush1.msra.mxu0 0.0
        %1506 = vmatprep.subr.mxu0 0.0
        %1507 = vmatpush1.msra.mxu0 0.0
        %1508 = vmatprep.subr.mxu0 0.0
        %1509 = vmatpush1.msra.mxu0 0.0
        %1510 = vmatprep.subr.mxu0 0.0
        %1511 = vmatpush1.msra.mxu0 0.0
        %1512 = vmatprep.subr.mxu0 0.0
        %1513 = vmatpush1.msra.mxu0 0.0
        %1514 = vmatprep.subr.mxu0 0.0
        %1515 = vmatpush1.msra.mxu0 0.0
        %1516 = vmatprep.subr.mxu0 0.0
        %1517 = vmatpush1.msra.mxu0 0.0
        %1518 = vmatprep.subr.mxu0 0.0
        %1519 = vmatpush1.msra.mxu0 0.0
        %1520 = vmatprep.subr.mxu0 0.0
        %1521 = vmatpush1.msra.mxu0 0.0
        %1522 = vmatprep.subr.mxu0 0.0
        %1523 = vmatpush1.msra.mxu0 0.0
        %1524 = vmatprep.subr.mxu0 0.0
        %1525 = vmatpush1.msra.mxu0 0.0
        %1526 = vmatprep.subr.mxu0 0.0
        %1527 = vmatpush1.msra.mxu0 0.0
        %1528 = vmatprep.subr.mxu0 0.0
        %1529 = vmatpush1.msra.mxu0 0.0
        %1530 = vmatprep.subr.mxu0 0.0
        %1531 = vmatpush1.msra.mxu0 0.0
        %1532 = vmatprep.mubr.f32.mxu0 0.0
        %1533 = vmatmul.mubr.f32.gmra.mrb[0].mxu0 %v1452
        %v1534 = vpop.f32.mrb[0].mxu0
        %v1535 = vadd.f32 0.0, %v1534
        %v1536 = vpop.f32.mrb[0].mxu0
        %1537 = vmatprep.mubr.f32.mxu0 0.0
        %1538 = vmatmul.mubr.f32.gmra.mrb[0].mxu0 %v1453
        %v1539 = vpop.f32.mrb[0].mxu0
        %v1540 = vadd.f32 0.0, %v1539
        %v1541 = vpop.f32.mrb[0].mxu0
        %1542 = vmatprep.mubr.f32.mxu0 0.0
        %1543 = vmatmul.mubr.f32.gmra.mrb[0].mxu0 %v1454
        %v1544 = vpop.f32.mrb[0].mxu0
        %v1545 = vadd.f32 0.0, %v1544
        %v1546 = vpop.f32.mrb[0].mxu0
        %1547 = vmatprep.mubr.f32.mxu0 0.0
        %1548 = vmatmul.mubr.f32.gmra.mrb[0].mxu0 %v1455
        %v1549 = vpop.f32.mrb[0].mxu0
        %v1550 = vadd.f32 0.0, %v1549
        %v1551 = vpop.f32.mrb[0].mxu0
        %1552 = vmatprep.mubr.f32.mxu0 0.0
        %1553 = vmatmul.mubr.f32.gmra.mrb[0].mxu0 %v1456
        %v1554 = vpop.f32.mrb[0].mxu0
        %v1555 = vadd.f32 0.0, %v1554
        %v1556 = vpop.f32.mrb[0].mxu0
        %1557 = vmatprep.mubr.f32.mxu0 0.0
        %1558 = vmatmul.mubr.f32.gmra.mrb[0].mxu0 %v1457
        %v1559 = vpop.f32.mrb[0].mxu0
        %v1560 = vadd.f32 0.0, %v1559
        %v1561 = vpop.f32.mrb[0].mxu0
        %1562 = vmatprep.mubr.f32.mxu0 0.0
        %1563 = vmatmul.mubr.f32.gmra.mrb[0].mxu0 %v1458
        %v1564 = vpop.f32.mrb[0].mxu0
        %v1565 = vadd.f32 0.0, %v1564
        %v1566 = vpop.f32.mrb[0].mxu0
        %1567 = vmatprep.mubr.f32.mxu0 0.0
        %1568 = vmatmul.mubr.f32.gmra.mrb[0].mxu0 %v1459
        %v1569 = vpop.f32.mrb[0].mxu0
        %v1570 = vadd.f32 0.0, %v1569
        %v1571 = vpop.f32.mrb[0].mxu0
        %1572 = vmatprep.mubr.f32.mxu0 0.0
        %1573 = vmatmul.mubr.f32.gmra.mrb[0].mxu0 %v1460
        %v1574 = vpop.f32.mrb[0].mxu0
        %v1575 = vadd.f32 0.0, %v1574
        %v1576 = vpop.f32.mrb[0].mxu0
        %1577 = vmatprep.mubr.f32.mxu0 0.0
        %1578 = vmatmul.mubr.f32.gmra.mrb[0].mxu0 %v1461
        %v1579 = vpop.f32.mrb[0].mxu0
        %v1580 = vadd.f32 0.0, %v1579
        %v1581 = vpop.f32.mrb[0].mxu0
        %1582 = vmatprep.mubr.f32.mxu0 0.0
        %1583 = vmatmul.mubr.f32.gmra.mrb[0].mxu0 %v1462
        %v1584 = vpop.f32.mrb[0].mxu0
        %v1585 = vadd.f32 0.0, %v1584
        %v1586 = vpop.f32.mrb[0].mxu0
        %1587 = vmatprep.mubr.f32.mxu0 0.0
        %1588 = vmatmul.mubr.f32.gmra.mrb[0].mxu0 %v1463
        %v1589 = vpop.f32.mrb[0].mxu0
        %v1590 = vadd.f32 0.0, %v1589
        %v1591 = vpop.f32.mrb[0].mxu0
        %1592 = vmatprep.mubr.f32.mxu0 0.0
        %1593 = vmatmul.mubr.f32.gmra.mrb[0].mxu0 %v1464
        %v1594 = vpop.f32.mrb[0].mxu0
        %v1595 = vadd.f32 0.0, %v1594
        %v1596 = vpop.f32.mrb[0].mxu0
        %1597 = vmatprep.mubr.f32.mxu0 0.0
        %1598 = vmatmul.mubr.f32.gmra.mrb[0].mxu0 %v1465
        %v1599 = vpop.f32.mrb[0].mxu0
        %v1600 = vadd.f32 0.0, %v1599
        %v1601 = vpop.f32.mrb[0].mxu0
        %1602 = vmatprep.mubr.f32.mxu0 0.0
        %1603 = vmatmul.mubr.f32.gmra.mrb[0].mxu0 %v1466
        %v1604 = vpop.f32.mrb[0].mxu0
        %v1605 = vadd.f32 0.0, %v1604
        %v1606 = vpop.f32.mrb[0].mxu0
        %1607 = vmatprep.mubr.f32.mxu0 0.0
        %1608 = vmatmul.mubr.f32.gmra.mrb[0].mxu0 %v1467
        %v1609 = vpop.f32.mrb[0].mxu0
        %v1610 = vadd.f32 0.0, %v1609
        %v1611 = vpop.f32.mrb[0].mxu0
        %1612 = vdwg.mxu0
        %1613 = vmatprep.subr.mxu0 0.0
        %1614 = vmatpush1.msra.mxu0 %v1326
        %1615 = vmatprep.subr.mxu0 0.0
        %1616 = vmatpush1.msra.mxu0 %v1331
        %1617 = vmatprep.subr.mxu0 0.0
        %1618 = vmatpush1.msra.mxu0 %v1336
        %1619 = vmatprep.subr.mxu0 0.0
        %1620 = vmatpush1.msra.mxu0 %v1341
        %1621 = vmatprep.subr.mxu0 0.0
        %1622 = vmatpush1.msra.mxu0 %v1346
        %1623 = vmatprep.subr.mxu0 0.0
        %1624 = vmatpush1.msra.mxu0 %v1351
        %1625 = vmatprep.subr.mxu0 0.0
        %1626 = vmatpush1.msra.mxu0 %v1356
        %1627 = vmatprep.subr.mxu0 0.0
        %1628 = vmatpush1.msra.mxu0 %v1361
        %1629 = vmatprep.subr.mxu0 0.0
        %1630 = vmatpush1.msra.mxu0 %v1366
        %1631 = vmatprep.subr.mxu0 0.0
        %1632 = vmatpush1.msra.mxu0 %v1371
        %1633 = vmatprep.subr.mxu0 0.0
        %1634 = vmatpush1.msra.mxu0 %v1376
        %1635 = vmatprep.subr.mxu0 0.0
        %1636 = vmatpush1.msra.mxu0 %v1381
        %1637 = vmatprep.subr.mxu0 0.0
        %1638 = vmatpush1.msra.mxu0 %v1386
        %1639 = vmatprep.subr.mxu0 0.0
        %1640 = vmatpush1.msra.mxu0 %v1391
        %1641 = vmatprep.subr.mxu0 0.0
        %1642 = vmatpush1.msra.mxu0 %v1396
        %1643 = vmatprep.subr.mxu0 0.0
        %1644 = vmatpush1.msra.mxu0 %v1401
        %1645 = vmatprep.subr.mxu0 0.0
        %1646 = vmatpush1.msra.mxu0 0.0
        %1647 = vmatprep.subr.mxu0 0.0
        %1648 = vmatpush1.msra.mxu0 0.0
        %1649 = vmatprep.subr.mxu0 0.0
        %1650 = vmatpush1.msra.mxu0 0.0
        %1651 = vmatprep.subr.mxu0 0.0
        %1652 = vmatpush1.msra.mxu0 0.0
        %1653 = vmatprep.subr.mxu0 0.0
        %1654 = vmatpush1.msra.mxu0 0.0
        %1655 = vmatprep.subr.mxu0 0.0
        %1656 = vmatpush1.msra.mxu0 0.0
        %1657 = vmatprep.subr.mxu0 0.0
        %1658 = vmatpush1.msra.mxu0 0.0
        %1659 = vmatprep.subr.mxu0 0.0
        %1660 = vmatpush1.msra.mxu0 0.0
        %1661 = vmatprep.subr.mxu0 0.0
        %1662 = vmatpush1.msra.mxu0 0.0
        %1663 = vmatprep.subr.mxu0 0.0
        %1664 = vmatpush1.msra.mxu0 0.0
        %1665 = vmatprep.subr.mxu0 0.0
        %1666 = vmatpush1.msra.mxu0 0.0
        %1667 = vmatprep.subr.mxu0 0.0
        %1668 = vmatpush1.msra.mxu0 0.0
        %1669 = vmatprep.subr.mxu0 0.0
        %1670 = vmatpush1.msra.mxu0 0.0
        %1671 = vmatprep.subr.mxu0 0.0
        %1672 = vmatpush1.msra.mxu0 0.0
        %1673 = vmatprep.subr.mxu0 0.0
        %1674 = vmatpush1.msra.mxu0 0.0
        %1675 = vmatprep.subr.mxu0 0.0
        %1676 = vmatpush1.msra.mxu0 0.0
        %1677 = vmatprep.mubr.f32.mxu0 0.0
        %1678 = vmatmul.mubr.f32.gmra.mrb[0].mxu0 %v1436
        %v1679 = vpop.f32.mrb[0].mxu0
        %v1680 = vadd.f32 %v1535, %v1679
        %v1681 = vpop.f32.mrb[0].mxu0
        %1682 = vmatprep.mubr.f32.mxu0 0.0
        %1683 = vmatmul.mubr.f32.gmra.mrb[0].mxu0 %v1437
        %v1684 = vpop.f32.mrb[0].mxu0
        %v1685 = vadd.f32 %v1540, %v1684
        %v1686 = vpop.f32.mrb[0].mxu0
        %1687 = vmatprep.mubr.f32.mxu0 0.0
        %1688 = vmatmul.mubr.f32.gmra.mrb[0].mxu0 %v1438
        %v1689 = vpop.f32.mrb[0].mxu0
        %v1690 = vadd.f32 %v1545, %v1689
        %v1691 = vpop.f32.mrb[0].mxu0
        %1692 = vmatprep.mubr.f32.mxu0 0.0
        %1693 = vmatmul.mubr.f32.gmra.mrb[0].mxu0 %v1439
        %v1694 = vpop.f32.mrb[0].mxu0
        %v1695 = vadd.f32 %v1550, %v1694
        %v1696 = vpop.f32.mrb[0].mxu0
        %1697 = vmatprep.mubr.f32.mxu0 0.0
        %1698 = vmatmul.mubr.f32.gmra.mrb[0].mxu0 %v1440
        %v1699 = vpop.f32.mrb[0].mxu0
        %v1700 = vadd.f32 %v1555, %v1699
        %v1701 = vpop.f32.mrb[0].mxu0
        %1702 = vmatprep.mubr.f32.mxu0 0.0
        %1703 = vmatmul.mubr.f32.gmra.mrb[0].mxu0 %v1441
        %v1704 = vpop.f32.mrb[0].mxu0
        %v1705 = vadd.f32 %v1560, %v1704
        %v1706 = vpop.f32.mrb[0].mxu0
        %1707 = vmatprep.mubr.f32.mxu0 0.0
        %1708 = vmatmul.mubr.f32.gmra.mrb[0].mxu0 %v1442
        %v1709 = vpop.f32.mrb[0].mxu0
        %v1710 = vadd.f32 %v1565, %v1709
        %v1711 = vpop.f32.mrb[0].mxu0
        %1712 = vmatprep.mubr.f32.mxu0 0.0
        %1713 = vmatmul.mubr.f32.gmra.mrb[0].mxu0 %v1443
        %v1714 = vpop.f32.mrb[0].mxu0
        %v1715 = vadd.f32 %v1570, %v1714
        %v1716 = vpop.f32.mrb[0].mxu0
        %1717 = vmatprep.mubr.f32.mxu0 0.0
        %1718 = vmatmul.mubr.f32.gmra.mrb[0].mxu0 %v1444
        %v1719 = vpop.f32.mrb[0].mxu0
        %v1720 = vadd.f32 %v1575, %v1719
        %v1721 = vpop.f32.mrb[0].mxu0
        %1722 = vmatprep.mubr.f32.mxu0 0.0
        %1723 = vmatmul.mubr.f32.gmra.mrb[0].mxu0 %v1445
        %v1724 = vpop.f32.mrb[0].mxu0
        %v1725 = vadd.f32 %v1580, %v1724
        %v1726 = vpop.f32.mrb[0].mxu0
        %1727 = vmatprep.mubr.f32.mxu0 0.0
        %1728 = vmatmul.mubr.f32.gmra.mrb[0].mxu0 %v1446
        %v1729 = vpop.f32.mrb[0].mxu0
        %v1730 = vadd.f32 %v1585, %v1729
        %v1731 = vpop.f32.mrb[0].mxu0
        %1732 = vmatprep.mubr.f32.mxu0 0.0
        %1733 = vmatmul.mubr.f32.gmra.mrb[0].mxu0 %v1447
        %v1734 = vpop.f32.mrb[0].mxu0
        %v1735 = vadd.f32 %v1590, %v1734
        %v1736 = vpop.f32.mrb[0].mxu0
        %1737 = vmatprep.mubr.f32.mxu0 0.0
        %1738 = vmatmul.mubr.f32.gmra.mrb[0].mxu0 %v1448
        %v1739 = vpop.f32.mrb[0].mxu0
        %v1740 = vadd.f32 %v1595, %v1739
        %v1741 = vpop.f32.mrb[0].mxu0
        %1742 = vmatprep.mubr.f32.mxu0 0.0
        %1743 = vmatmul.mubr.f32.gmra.mrb[0].mxu0 %v1449
        %v1744 = vpop.f32.mrb[0].mxu0
        %v1745 = vadd.f32 %v1600, %v1744
        %v1746 = vpop.f32.mrb[0].mxu0
        %1747 = vmatprep.mubr.f32.mxu0 0.0
        %1748 = vmatmul.mubr.f32.gmra.mrb[0].mxu0 %v1450
        %v1749 = vpop.f32.mrb[0].mxu0
        %v1750 = vadd.f32 %v1605, %v1749
        %v1751 = vpop.f32.mrb[0].mxu0
        %1752 = vmatprep.mubr.f32.mxu0 0.0
        %1753 = vmatmul.mubr.f32.gmra.mrb[0].mxu0 %v1451
        %v1754 = vpop.f32.mrb[0].mxu0
        %v1755 = vadd.f32 %v1610, %v1754
        %v1756 = vpop.f32.mrb[0].mxu0
        %1757 = vdwg.mxu0
        %v1758 = vadd.f32 %v1420, %v1680
        %v1759 = vadd.f32 %v1421, %v1685
        %v1760 = vadd.f32 %v1422, %v1690
        %v1761 = vadd.f32 %v1423, %v1695
        %v1762 = vadd.f32 %v1424, %v1700
        %v1763 = vadd.f32 %v1425, %v1705
        %v1764 = vadd.f32 %v1426, %v1710
        %v1765 = vadd.f32 %v1427, %v1715
        %v1766 = vadd.f32 %v1428, %v1720
        %v1767 = vadd.f32 %v1429, %v1725
        %v1768 = vadd.f32 %v1430, %v1730
        %v1769 = vadd.f32 %v1431, %v1735
        %v1770 = vadd.f32 %v1432, %v1740
        %v1771 = vadd.f32 %v1433, %v1745
        %v1772 = vadd.f32 %v1434, %v1750
        %v1773 = vadd.f32 %v1435, %v1755
        %1774 = vst [vmem:[#allocation16] sm:$0xff] %v1758
        %1775 = vst [vmem:[#allocation16 + $0x8] sm:$0xff] %v1759
        %1776 = vst [vmem:[#allocation16 + $0x10] sm:$0xff] %v1760
        %1777 = vst [vmem:[#allocation16 + $0x18] sm:$0xff] %v1761
        %1778 = vst [vmem:[#allocation16 + $0x20] sm:$0xff] %v1762
        %1779 = vst [vmem:[#allocation16 + $0x28] sm:$0xff] %v1763
        %1780 = vst [vmem:[#allocation16 + $0x30] sm:$0xff] %v1764
        %1781 = vst [vmem:[#allocation16 + $0x38] sm:$0xff] %v1765
        %1782 = vst [vmem:[#allocation16 + $0x40] sm:$0xff] %v1766
        %1783 = vst [vmem:[#allocation16 + $0x48] sm:$0xff] %v1767
        %1784 = vst [vmem:[#allocation16 + $0x50] sm:$0xff] %v1768
        %1785 = vst [vmem:[#allocation16 + $0x58] sm:$0xff] %v1769
        %1786 = vst [vmem:[#allocation16 + $0x60] sm:$0xff] %v1770
        %1787 = vst [vmem:[#allocation16 + $0x68] sm:$0xff] %v1771
        %1788 = vst [vmem:[#allocation16 + $0x70] sm:$0xff] %v1772
        %1789 = vst [vmem:[#allocation16 + $0x78] sm:$0xff] %v1773
        %v1790 = vadd.f32 %v1326, %v1404
        %v1791 = vadd.f32 %v1331, %v1405
        %v1792 = vadd.f32 %v1336, %v1406
        %v1793 = vadd.f32 %v1341, %v1407
        %v1794 = vadd.f32 %v1346, %v1408
        %v1795 = vadd.f32 %v1351, %v1409
        %v1796 = vadd.f32 %v1356, %v1410
        %v1797 = vadd.f32 %v1361, %v1411
        %v1798 = vadd.f32 %v1366, %v1412
        %v1799 = vadd.f32 %v1371, %v1413
        %v1800 = vadd.f32 %v1376, %v1414
        %v1801 = vadd.f32 %v1381, %v1415
        %v1802 = vadd.f32 %v1386, %v1416
        %v1803 = vadd.f32 %v1391, %v1417
        %v1804 = vadd.f32 %v1396, %v1418
        %v1805 = vadd.f32 %v1401, %v1419
        %1806 = vst [vmem:[#allocation3] sm:$0xff] %v1790
        %1807 = vst [vmem:[#allocation3 + $0x8] sm:$0xff] %v1791
        %1808 = vst [vmem:[#allocation3 + $0x10] sm:$0xff] %v1792
        %1809 = vst [vmem:[#allocation3 + $0x18] sm:$0xff] %v1793
        %1810 = vst [vmem:[#allocation3 + $0x20] sm:$0xff] %v1794
        %1811 = vst [vmem:[#allocation3 + $0x28] sm:$0xff] %v1795
        %1812 = vst [vmem:[#allocation3 + $0x30] sm:$0xff] %v1796
        %1813 = vst [vmem:[#allocation3 + $0x38] sm:$0xff] %v1797
        %1814 = vst [vmem:[#allocation3 + $0x40] sm:$0xff] %v1798
        %1815 = vst [vmem:[#allocation3 + $0x48] sm:$0xff] %v1799
        %1816 = vst [vmem:[#allocation3 + $0x50] sm:$0xff] %v1800
        %1817 = vst [vmem:[#allocation3 + $0x58] sm:$0xff] %v1801
        %1818 = vst [vmem:[#allocation3 + $0x60] sm:$0xff] %v1802
        %1819 = vst [vmem:[#allocation3 + $0x68] sm:$0xff] %v1803
        %1820 = vst [vmem:[#allocation3 + $0x70] sm:$0xff] %v1804
        %1821 = vst [vmem:[#allocation3 + $0x78] sm:$0xff] %v1805
        // Predicated region
        $region85: #{tpu_custom_call.1} parent=55 // pred_check
          %p1822 = pneg %p230
        $region86: #{tpu_custom_call.1} parent=55 // pred_check_branch
          %1824 = sbr.rel (%p1822) target = $region88
        $region87: #{tpu_custom_call.1} parent=55 // pred_region
          %s1826 = ssub.s32 2048, 2048
          %1827 = vsyncadd [#allocation6], %s1826
          %s1828 = sshll.u32 [#allocation15], 4
          %s1829 = int_to_ptr.vmem [resolvable:$true] %s1828
          %1834 = dma.vmem_to_hbm [thread:$0]  %s1829, 2048, %s9, [#allocation6], 128, 128, 8
        $region88: #{tpu_custom_call.1} parent=55 // pred_fallthru
          _
        // Predicated region
        $region89: #{tpu_custom_call.1} parent=55 // pred_check
          %p1835 = pneg %p251
        $region90: #{tpu_custom_call.1} parent=55 // pred_check_branch
          %1837 = sbr.rel (%p1835) target = $region92
        $region91: #{tpu_custom_call.1} parent=55 // pred_region
          %s1839 = ssub.s32 2048, 2048
          %1840 = vsyncadd [#allocation17], %s1839
          %s1841 = sshll.u32 [#allocation16], 4
          %s1842 = int_to_ptr.vmem [resolvable:$true] %s1841
          %1847 = dma.vmem_to_hbm [thread:$0]  %s1842, 2048, %s10, [#allocation17], 128, 128, 8
        $region92: #{tpu_custom_call.1} parent=55 // pred_fallthru
          _
        // Predicated region
        $region93: #{tpu_custom_call.1} parent=55 // pred_check
          %p1848 = pneg %p230
        $region94: #{tpu_custom_call.1} parent=55 // pred_check_branch
          %1850 = sbr.rel (%p1848) target = $region96
        $region95: #{tpu_custom_call.1} parent=55 // pred_region
          %1851 = dma.done [#allocation6], 2048
        $region96: #{tpu_custom_call.1} parent=55 // pred_fallthru
          _
        // Predicated region
        $region97: #{tpu_custom_call.1} parent=55 // pred_check
          %p1852 = pneg %p251
        $region98: #{tpu_custom_call.1} parent=55 // pred_check_branch
          %1854 = sbr.rel (%p1852) target = $region100
        $region99: #{tpu_custom_call.1} parent=55 // pred_region
          %1855 = dma.done [#allocation17], 2048
        $region100: #{tpu_custom_call.1} parent=55 // pred_fallthru
          _
      $region56: #{tpu_custom_call.1} parent=5 // pred_fallthru
        _
      %p1856 = scmp.le.s32.totalorder 2, %s23
      // Predicated region
      $region101: #{tpu_custom_call.1} parent=5 // pred_check
        %p1857 = pneg %p1856
      $region102: #{tpu_custom_call.1} parent=5 // pred_check_branch
        %1859 = sbr.rel (%p1857) target = $region104
      $region103: #{tpu_custom_call.1} parent=5 // pred_region
        %s1860 = ssub.s32 %s23, 2
      $region104: #{tpu_custom_call.1} parent=5 // pred_fallthru
        _
    $region6: #{tpu_custom_call.1} parent=1 // loop_footer
      %s27 = sadd.s32 1, %s23
    $region7: #{tpu_custom_call.1} parent=1 // loop_footer_branch
      %22 = sbr.rel target = $region3
    $region8: #{tpu_custom_call.1} parent=1 // loop_exit
      _
    %1861 = vsyncpa [#allocation5], 1
    %s1862 = scalar_lea.sflag [#allocation5], 1
    %1863 = vsyncpa %s1862, 1
    %1864 = vsyncpa [#allocation8], 1
    %1865 = vsyncpa [#allocation11], 1
    %1866 = vsyncpa [#allocation14], 1
    %1867 = vsyncpa [#allocation6], 1
    %s1868 = scalar_lea.sflag [#allocation6], 1
    %1869 = vsyncpa %s1868, 1
    %1870 = vsyncpa [#allocation17], 1

// kernel: tpu_custom_call.1
$region0: #{tpu_custom_call.1}
  #allocation0 [shape = 'u32[]', space=smem, size = 0x4, offset = 0x4, fixed_abs, tag = 'smem constant byte address 0x4 - core index']
  #allocation1 [shape = 'u32[144,128]{1,0:T(1,128)}', space=vmem, size = 0x12000, scoped, tag = 'internal scratch']
  #allocation2 [shape = 'f32[128,128]{1,0:T(8,128)}', space=vmem, size = 0x10000, scoped, tag = 'scratch operand']
  #allocation3 [shape = 'f32[128,128]{1,0:T(8,128)}', space=vmem, size = 0x10000, scoped, tag = 'scratch operand']
  %s0 = inlined_call_operand.vmem [shape: f32[128,128], index: 0, kind: input, shape index: {}]
  %s1 = inlined_call_operand.hbm [shape: f32[128,128], index: 1, kind: input, shape index: {}]
  %s2 = inlined_call_operand.hbm [shape: f32[128,128], index: 2, kind: input, shape index: {}]
  %s3 = inlined_call_operand.hbm [shape: f32[128,128], index: 3, kind: input, shape index: {}]
  %s4 = inlined_call_operand.hbm [shape: f32[128,128], index: 4, kind: input, shape index: {}]
  %s5 = inlined_call_operand.hbm [shape: f32[128,128], index: 5, kind: input, shape index: {}]
  %s6 = inlined_call_operand.hbm [shape: f32[128,128], index: 6, kind: input, shape index: {}]
  %s7 = inlined_call_operand.vmem [shape: f32[1,128], index: 7, kind: input, shape index: {}]
  %s8 = inlined_call_operand.vmem [shape: f32[128,1], index: 8, kind: input, shape index: {}]
  %s9 = inlined_call_operand.hbm [shape: f32[128,128], index: 9, kind: output, shape index: {0}]
  %s10 = inlined_call_operand.hbm [shape: f32[128,128], index: 10, kind: output, shape index: {1}]
  %11 = xla_tuple %s9, %s10
  %s12 = sld [smem:[#allocation0]]
  $region105: #{tpu_custom_call.1} parent=0
    _
  %s14 = ssub.s32 1, %s12
  %s15 = scalar_select 0, %s14, %s12
  $region1: #{tpu_custom_call.1} parent=0
    #allocation4 [shape = 'u8[65536]{0}', space=vmem, size = 0x10000, scoped, tag = 'input window, operand 1, single buffered']
    #allocation5 [shape = 's32[2]{0}', space=sflag, size = 0x8, scoped, tag = 'scoped memory for tpu_custom_call.1']
    #allocation6 [shape = 's32[2]{0}', space=sflag, size = 0x8, scoped, tag = 'scoped memory for tpu_custom_call.1']
    #allocation7 [shape = 'u8[65536]{0}', space=vmem, size = 0x10000, scoped, tag = 'input window, operand 2, single buffered']
    #allocation8 [shape = 's32[1]{0}', space=sflag, size = 0x4, scoped, tag = 'scoped memory for tpu_custom_call.1']
    #allocation9 [shape = 'u8[65536]{0}', space=vmem, size = 0x10000, scoped, tag = 'input window, operand 3, single buffered']
    #allocation10 [shape = 'u8[65536]{0}', space=vmem, size = 0x10000, scoped, tag = 'input window, operand 4, single buffered']
    #allocation11 [shape = 's32[1]{0}', space=sflag, size = 0x4, scoped, tag = 'scoped memory for tpu_custom_call.1']
    #allocation12 [shape = 'u8[65536]{0}', space=vmem, size = 0x10000, scoped, tag = 'input window, operand 5, single buffered']
    #allocation13 [shape = 'u8[65536]{0}', space=vmem, size = 0x10000, scoped, tag = 'input window, operand 6, single buffered']
    #allocation14 [shape = 's32[1]{0}', space=sflag, size = 0x4, scoped, tag = 'scoped memory for tpu_custom_call.1']
    #allocation15 [shape = 'u8[65536]{0}', space=vmem, size = 0x10000, scoped, tag = 'output window, operand 0, single buffered']
    #allocation16 [shape = 'u8[65536]{0}', space=vmem, size = 0x10000, scoped, tag = 'output window, operand 1, single buffered']
    #allocation17 [shape = 's32[1]{0}', space=sflag, size = 0x4, scoped, tag = 'scoped memory for tpu_custom_call.1']
    %16 = vsyncpa [#allocation5], 0
    %17 = vsyncpa [#allocation8], 0
    %18 = vsyncpa [#allocation11], 0
    %19 = vsyncpa [#allocation14], 0
    %20 = vsyncpa [#allocation6], 0
    %21 = vsyncpa [#allocation17], 0
    loop: start=0, step=1, limit=4
    $region2: #{tpu_custom_call.1} parent=1 // loop_pre_header
      _
    $region3: #{tpu_custom_call.1} parent=1 // loop_header
      %s23 = sphi 0, %s27
      %p24 = scmp.ge.s32.totalorder %s23, 4
      %s31 = sphi 0, %s31
      %s33 = sphi 0, %s31
      %s34 = sphi 0, %s33
      %s48 = sphi 0, %s34
      %s52 = sphi 0, %s52
      %s54 = sphi 0, %s52
      %s55 = sphi 0, %s54
      %s69 = sphi 0, %s55
      %s73 = sphi 0, %s73
      %s75 = sphi 0, %s73
      %s76 = sphi 0, %s75
      %s90 = sphi 0, %s76
      %s94 = sphi 0, %s94
      %s96 = sphi 0, %s94
      %s97 = sphi 0, %s96
      %s111 = sphi 0, %s97
      %s115 = sphi 0, %s115
      %s117 = sphi 0, %s115
      %s118 = sphi 0, %s117
      %s132 = sphi 0, %s118
      %s136 = sphi 0, %s136
      %s138 = sphi 0, %s136
      %s139 = sphi 0, %s138
      %s153 = sphi 0, %s139
      %s157 = sphi 0, %s157
      %s159 = sphi 0, %s157
      %s160 = sphi 0, %s159
      %s174 = sphi 0, %s160
      %s178 = sphi 0, %s178
      %s180 = sphi 0, %s178
      %s181 = sphi 0, %s180
      %s195 = sphi 0, %s181
      %s199 = sphi 0, %s199
      %s201 = sphi 0, %s199
      %s202 = sphi 0, %s201
      %s216 = sphi 0, %s202
      %s220 = sphi 0, %s220
      %s222 = sphi 0, %s220
      %s223 = sphi 0, %s222
      %s237 = sphi 0, %s223
      %s241 = sphi 0, %s241
      %s243 = sphi 0, %s241
      %s244 = sphi 0, %s243
      %s258 = sphi 0, %s244
    $region4: #{tpu_custom_call.1} parent=1 // loop_header_branch
      %26 = sbr.rel (%p24) target = $region8
    $region5: #{tpu_custom_call.1} parent=1 // loop_body
      %s28 = ssub.s32 %s23, 1
      %s29 = ssub.s32 %s23, 2
      %s30 = sadd.s32 %s23, 1
      %s32 = sadd.s32 %s31, 1
      %p35 = scmp.eq.s32.totalorder %s23, 1
      %p36 = scmp.ne.s32.totalorder %s31, %s33
      %p37 = scmp.eq.s32.totalorder %s23, 0
      %p38 = por %p36, %p37
      %p39 = scmp.ne.s32.totalorder %s31, %s33
      %p40 = scmp.eq.s32.totalorder %s28, 1
      %p41 = por %p39, %p40
      %p42 = scmp.ne.s32.totalorder %s33, %s34
      %p43 = scmp.eq.s32.totalorder %s28, 0
      %p44 = por %p42, %p43
      %p45 = scmp.ne.s32.totalorder %s33, %s34
      %p46 = scmp.eq.s32.totalorder %s29, 1
      %p47 = por %p45, %p46
      %p49 = scmp.ne.s32.totalorder %s34, %s48
      %p50 = scmp.eq.s32.totalorder %s29, 0
      %p51 = por %p49, %p50
      %s53 = sadd.s32 %s52, 1
      %p56 = scmp.eq.s32.totalorder %s23, 1
      %p57 = scmp.ne.s32.totalorder %s52, %s54
      %p58 = scmp.eq.s32.totalorder %s23, 0
      %p59 = por %p57, %p58
      %p60 = scmp.ne.s32.totalorder %s52, %s54
      %p61 = scmp.eq.s32.totalorder %s28, 1
      %p62 = por %p60, %p61
      %p63 = scmp.ne.s32.totalorder %s54, %s55
      %p64 = scmp.eq.s32.totalorder %s28, 0
      %p65 = por %p63, %p64
      %p66 = scmp.ne.s32.totalorder %s54, %s55
      %p67 = scmp.eq.s32.totalorder %s29, 1
      %p68 = por %p66, %p67
      %p70 = scmp.ne.s32.totalorder %s55, %s69
      %p71 = scmp.eq.s32.totalorder %s29, 0
      %p72 = por %p70, %p71
      %s74 = sadd.s32 %s73, 1
      %p77 = scmp.eq.s32.totalorder %s23, 1
      %p78 = scmp.ne.s32.totalorder %s73, %s75
      %p79 = scmp.eq.s32.totalorder %s23, 0
      %p80 = por %p78, %p79
      %p81 = scmp.ne.s32.totalorder %s73, %s75
      %p82 = scmp.eq.s32.totalorder %s28, 1
      %p83 = por %p81, %p82
      %p84 = scmp.ne.s32.totalorder %s75, %s76
      %p85 = scmp.eq.s32.totalorder %s28, 0
      %p86 = por %p84, %p85
      %p87 = scmp.ne.s32.totalorder %s75, %s76
      %p88 = scmp.eq.s32.totalorder %s29, 1
      %p89 = por %p87, %p88
      %p91 = scmp.ne.s32.totalorder %s76, %s90
      %p92 = scmp.eq.s32.totalorder %s29, 0
      %p93 = por %p91, %p92
      %s95 = sadd.s32 %s94, 1
      %p98 = scmp.eq.s32.totalorder %s23, 1
      %p99 = scmp.ne.s32.totalorder %s94, %s96
      %p100 = scmp.eq.s32.totalorder %s23, 0
      %p101 = por %p99, %p100
      %p102 = scmp.ne.s32.totalorder %s94, %s96
      %p103 = scmp.eq.s32.totalorder %s28, 1
      %p104 = por %p102, %p103
      %p105 = scmp.ne.s32.totalorder %s96, %s97
      %p106 = scmp.eq.s32.totalorder %s28, 0
      %p107 = por %p105, %p106
      %p108 = scmp.ne.s32.totalorder %s96, %s97
      %p109 = scmp.eq.s32.totalorder %s29, 1
      %p110 = por %p108, %p109
      %p112 = scmp.ne.s32.totalorder %s97, %s111
      %p113 = scmp.eq.s32.totalorder %s29, 0
      %p114 = por %p112, %p113
      %s116 = sadd.s32 %s115, 1
      %p119 = scmp.eq.s32.totalorder %s23, 1
      %p120 = scmp.ne.s32.totalorder %s115, %s117
      %p121 = scmp.eq.s32.totalorder %s23, 0
      %p122 = por %p120, %p121
      %p123 = scmp.ne.s32.totalorder %s115, %s117
      %p124 = scmp.eq.s32.totalorder %s28, 1
      %p125 = por %p123, %p124
      %p126 = scmp.ne.s32.totalorder %s117, %s118
      %p127 = scmp.eq.s32.totalorder %s28, 0
      %p128 = por %p126, %p127
      %p129 = scmp.ne.s32.totalorder %s117, %s118
      %p130 = scmp.eq.s32.totalorder %s29, 1
      %p131 = por %p129, %p130
      %p133 = scmp.ne.s32.totalorder %s118, %s132
      %p134 = scmp.eq.s32.totalorder %s29, 0
      %p135 = por %p133, %p134
      %s137 = sadd.s32 %s136, 1
      %p140 = scmp.eq.s32.totalorder %s23, 1
      %p141 = scmp.ne.s32.totalorder %s136, %s138
      %p142 = scmp.eq.s32.totalorder %s23, 0
      %p143 = por %p141, %p142
      %p144 = scmp.ne.s32.totalorder %s136, %s138
      %p145 = scmp.eq.s32.totalorder %s28, 1
      %p146 = por %p144, %p145
      %p147 = scmp.ne.s32.totalorder %s138, %s139
      %p148 = scmp.eq.s32.totalorder %s28, 0
      %p149 = por %p147, %p148
      %p150 = scmp.ne.s32.totalorder %s138, %s139
      %p151 = scmp.eq.s32.totalorder %s29, 1
      %p152 = por %p150, %p151
      %p154 = scmp.ne.s32.totalorder %s139, %s153
      %p155 = scmp.eq.s32.totalorder %s29, 0
      %p156 = por %p154, %p155
      %s158 = sadd.s32 %s157, 1
      %p161 = scmp.eq.s32.totalorder %s23, 1
      %p162 = scmp.ne.s32.totalorder %s157, %s159
      %p163 = scmp.eq.s32.totalorder %s23, 0
      %p164 = por %p162, %p163
      %p165 = scmp.ne.s32.totalorder %s157, %s159
      %p166 = scmp.eq.s32.totalorder %s28, 1
      %p167 = por %p165, %p166
      %p168 = scmp.ne.s32.totalorder %s159, %s160
      %p169 = scmp.eq.s32.totalorder %s28, 0
      %p170 = por %p168, %p169
      %p171 = scmp.ne.s32.totalorder %s159, %s160
      %p172 = scmp.eq.s32.totalorder %s29, 1
      %p173 = por %p171, %p172
      %p175 = scmp.ne.s32.totalorder %s160, %s174
      %p176 = scmp.eq.s32.totalorder %s29, 0
      %p177 = por %p175, %p176
      %s179 = sadd.s32 %s178, 1
      %p182 = scmp.eq.s32.totalorder %s23, 1
      %p183 = scmp.ne.s32.totalorder %s178, %s180
      %p184 = scmp.eq.s32.totalorder %s23, 0
      %p185 = por %p183, %p184
      %p186 = scmp.ne.s32.totalorder %s178, %s180
      %p187 = scmp.eq.s32.totalorder %s28, 1
      %p188 = por %p186, %p187
      %p189 = scmp.ne.s32.totalorder %s180, %s181
      %p190 = scmp.eq.s32.totalorder %s28, 0
      %p191 = por %p189, %p190
      %p192 = scmp.ne.s32.totalorder %s180, %s181
      %p193 = scmp.eq.s32.totalorder %s29, 1
      %p194 = por %p192, %p193
      %p196 = scmp.ne.s32.totalorder %s181, %s195
      %p197 = scmp.eq.s32.totalorder %s29, 0
      %p198 = por %p196, %p197
      %s200 = sadd.s32 %s199, 1
      %p203 = scmp.eq.s32.totalorder %s23, 1
      %p204 = scmp.ne.s32.totalorder %s199, %s201
      %p205 = scmp.eq.s32.totalorder %s23, 0
      %p206 = por %p204, %p205
      %p207 = scmp.ne.s32.totalorder %s199, %s201
      %p208 = scmp.eq.s32.totalorder %s28, 1
      %p209 = por %p207, %p208
      %p210 = scmp.ne.s32.totalorder %s201, %s202
      %p211 = scmp.eq.s32.totalorder %s28, 0
      %p212 = por %p210, %p211
      %p213 = scmp.ne.s32.totalorder %s201, %s202
      %p214 = scmp.eq.s32.totalorder %s29, 1
      %p215 = por %p213, %p214
      %p217 = scmp.ne.s32.totalorder %s202, %s216
      %p218 = scmp.eq.s32.totalorder %s29, 0
      %p219 = por %p217, %p218
      %s221 = sadd.s32 %s220, 1
      %p224 = scmp.eq.s32.totalorder %s23, 1
      %p225 = scmp.ne.s32.totalorder %s220, %s222
      %p226 = scmp.eq.s32.totalorder %s23, 0
      %p227 = por %p225, %p226
      %p228 = scmp.ne.s32.totalorder %s220, %s222
      %p229 = scmp.eq.s32.totalorder %s28, 1
      %p230 = por %p228, %p229
      %p231 = scmp.ne.s32.totalorder %s222, %s223
      %p232 = scmp.eq.s32.totalorder %s28, 0
      %p233 = por %p231, %p232
      %p234 = scmp.ne.s32.totalorder %s222, %s223
      %p235 = scmp.eq.s32.totalorder %s29, 1
      %p236 = por %p234, %p235
      %p238 = scmp.ne.s32.totalorder %s223, %s237
      %p239 = scmp.eq.s32.totalorder %s29, 0
      %p240 = por %p238, %p239
      %s242 = sadd.s32 %s241, 1
      %p245 = scmp.eq.s32.totalorder %s23, 1
      %p246 = scmp.ne.s32.totalorder %s241, %s243
      %p247 = scmp.eq.s32.totalorder %s23, 0
      %p248 = por %p246, %p247
      %p249 = scmp.ne.s32.totalorder %s241, %s243
      %p250 = scmp.eq.s32.totalorder %s28, 1
      %p251 = por %p249, %p250
      %p252 = scmp.ne.s32.totalorder %s243, %s244
      %p253 = scmp.eq.s32.totalorder %s28, 0
      %p254 = por %p252, %p253
      %p255 = scmp.ne.s32.totalorder %s243, %s244
      %p256 = scmp.eq.s32.totalorder %s29, 1
      %p257 = por %p255, %p256
      %p259 = scmp.ne.s32.totalorder %s244, %s258
      %p260 = scmp.eq.s32.totalorder %s29, 0
      %p261 = por %p259, %p260
      %p262 = scmp.le.s32.totalorder 1, %s23
      %p263 = scmp.lt.s32.totalorder %s23, 3
      %p264 = pnand %p262, %p263
      %p265 = pneg %p264
      // Predicated region
      $region9: #{tpu_custom_call.1} parent=5 // pred_check
        _
      $region10: #{tpu_custom_call.1} parent=5 // pred_check_branch
        %267 = sbr.rel (%p264) target = $region12
      $region11: #{tpu_custom_call.1} parent=5 // pred_region
        %s268 = ssub.s32 %s23, 1
        // Predicated region
        $region13: #{tpu_custom_call.1} parent=11 // pred_check
          %p269 = pneg %p44
        $region14: #{tpu_custom_call.1} parent=11 // pred_check_branch
          %271 = sbr.rel (%p269) target = $region16
        $region15: #{tpu_custom_call.1} parent=11 // pred_region
          _
        $region16: #{tpu_custom_call.1} parent=11 // pred_fallthru
          _
        // Predicated region
        $region17: #{tpu_custom_call.1} parent=11 // pred_check
          %p272 = pneg %p65
        $region18: #{tpu_custom_call.1} parent=11 // pred_check_branch
          %274 = sbr.rel (%p272) target = $region20
        $region19: #{tpu_custom_call.1} parent=11 // pred_region
          %s276 = ssub.s32 2048, 2048
          %277 = vsyncadd [#allocation5], %s276
          %s278 = sshll.u32 [#allocation4], 4
          %s279 = int_to_ptr.vmem [resolvable:$true] %s278
          %284 = dma.hbm_to_vmem [thread:$0]  %s1, 2048, %s279, [#allocation5], 128, 128, 8
        $region20: #{tpu_custom_call.1} parent=11 // pred_fallthru
          _
        // Predicated region
        $region21: #{tpu_custom_call.1} parent=11 // pred_check
          %p285 = pneg %p86
        $region22: #{tpu_custom_call.1} parent=11 // pred_check_branch
          %287 = sbr.rel (%p285) target = $region24
        $region23: #{tpu_custom_call.1} parent=11 // pred_region
          %s289 = ssub.s32 2048, 2048
          %290 = vsyncadd [#allocation8], %s289
          %s291 = sshll.u32 [#allocation7], 4
          %s292 = int_to_ptr.vmem [resolvable:$true] %s291
          %297 = dma.hbm_to_vmem [thread:$0]  %s2, 2048, %s292, [#allocation8], 128, 128, 8
        $region24: #{tpu_custom_call.1} parent=11 // pred_fallthru
          _
        // Predicated region
        $region25: #{tpu_custom_call.1} parent=11 // pred_check
          %p298 = pneg %p107
        $region26: #{tpu_custom_call.1} parent=11 // pred_check_branch
          %300 = sbr.rel (%p298) target = $region28
        $region27: #{tpu_custom_call.1} parent=11 // pred_region
          %s302 = ssub.s32 2048, 2048
          %303 = vsyncadd [#allocation8], %s302
          %s304 = sshll.u32 [#allocation9], 4
          %s305 = int_to_ptr.vmem [resolvable:$true] %s304
          %310 = dma.hbm_to_vmem [thread:$0]  %s3, 2048, %s305, [#allocation8], 128, 128, 8
        $region28: #{tpu_custom_call.1} parent=11 // pred_fallthru
          _
        // Predicated region
        $region29: #{tpu_custom_call.1} parent=11 // pred_check
          %p311 = pneg %p128
        $region30: #{tpu_custom_call.1} parent=11 // pred_check_branch
          %313 = sbr.rel (%p311) target = $region32
        $region31: #{tpu_custom_call.1} parent=11 // pred_region
          %s315 = ssub.s32 2048, 2048
          %316 = vsyncadd [#allocation11], %s315
          %s317 = sshll.u32 [#allocation10], 4
          %s318 = int_to_ptr.vmem [resolvable:$true] %s317
          %323 = dma.hbm_to_vmem [thread:$0]  %s4, 2048, %s318, [#allocation11], 128, 128, 8
        $region32: #{tpu_custom_call.1} parent=11 // pred_fallthru
          _
        // Predicated region
        $region33: #{tpu_custom_call.1} parent=11 // pred_check
          %p324 = pneg %p149
        $region34: #{tpu_custom_call.1} parent=11 // pred_check_branch
          %326 = sbr.rel (%p324) target = $region36
        $region35: #{tpu_custom_call.1} parent=11 // pred_region
          %s328 = ssub.s32 2048, 2048
          %329 = vsyncadd [#allocation11], %s328
          %s330 = sshll.u32 [#allocation12], 4
          %s331 = int_to_ptr.vmem [resolvable:$true] %s330
          %336 = dma.hbm_to_vmem [thread:$0]  %s5, 2048, %s331, [#allocation11], 128, 128, 8
        $region36: #{tpu_custom_call.1} parent=11 // pred_fallthru
          _
        // Predicated region
        $region37: #{tpu_custom_call.1} parent=11 // pred_check
          %p337 = pneg %p170
        $region38: #{tpu_custom_call.1} parent=11 // pred_check_branch
          %339 = sbr.rel (%p337) target = $region40
        $region39: #{tpu_custom_call.1} parent=11 // pred_region
          %s341 = ssub.s32 2048, 2048
          %342 = vsyncadd [#allocation14], %s341
          %s343 = sshll.u32 [#allocation13], 4
          %s344 = int_to_ptr.vmem [resolvable:$true] %s343
          %349 = dma.hbm_to_vmem [thread:$0]  %s6, 2048, %s344, [#allocation14], 128, 128, 8
        $region40: #{tpu_custom_call.1} parent=11 // pred_fallthru
          _
        // Predicated region
        $region41: #{tpu_custom_call.1} parent=11 // pred_check
          %p350 = pneg %p191
        $region42: #{tpu_custom_call.1} parent=11 // pred_check_branch
          %352 = sbr.rel (%p350) target = $region44
        $region43: #{tpu_custom_call.1} parent=11 // pred_region
          _
        $region44: #{tpu_custom_call.1} parent=11 // pred_fallthru
          _
        // Predicated region
        $region45: #{tpu_custom_call.1} parent=11 // pred_check
          %p353 = pneg %p212
        $region46: #{tpu_custom_call.1} parent=11 // pred_check_branch
          %355 = sbr.rel (%p353) target = $region48
        $region47: #{tpu_custom_call.1} parent=11 // pred_region
          _
        $region48: #{tpu_custom_call.1} parent=11 // pred_fallthru
          _
      $region12: #{tpu_custom_call.1} parent=5 // pred_fallthru
        _
      %p356 = scmp.lt.s32.totalorder %s23, 2
      // Predicated region
      $region49: #{tpu_custom_call.1} parent=5 // pred_check
        %p357 = pneg %p356
      $region50: #{tpu_custom_call.1} parent=5 // pred_check_branch
        %359 = sbr.rel (%p357) target = $region52
      $region51: #{tpu_custom_call.1} parent=5 // pred_region
        _
      $region52: #{tpu_custom_call.1} parent=5 // pred_fallthru
        _
      %p360 = scmp.le.s32.totalorder 1, %s23
      %p361 = scmp.lt.s32.totalorder %s23, 3
      %p362 = pnand %p360, %p361
      %p363 = pneg %p362
      // Predicated region
      $region53: #{tpu_custom_call.1} parent=5 // pred_check
        _
      $region54: #{tpu_custom_call.1} parent=5 // pred_check_branch
        %365 = sbr.rel (%p362) target = $region56
      $region55: #{tpu_custom_call.1} parent=5 // pred_region
        %s366 = ssub.s32 %s23, 1
        // Predicated region
        $region57: #{tpu_custom_call.1} parent=55 // pred_check
          %p367 = pneg %p65
        $region58: #{tpu_custom_call.1} parent=55 // pred_check_branch
          %369 = sbr.rel (%p367) target = $region60
        $region59: #{tpu_custom_call.1} parent=55 // pred_region
          %370 = dma.done [#allocation5], 2048
        $region60: #{tpu_custom_call.1} parent=55 // pred_fallthru
          _
        // Predicated region
        $region61: #{tpu_custom_call.1} parent=55 // pred_check
          %p371 = pneg %p86
        $region62: #{tpu_custom_call.1} parent=55 // pred_check_branch
          %373 = sbr.rel (%p371) target = $region64
        $region63: #{tpu_custom_call.1} parent=55 // pred_region
          %374 = dma.done [#allocation8], 2048
        $region64: #{tpu_custom_call.1} parent=55 // pred_fallthru
          _
        // Predicated region
        $region65: #{tpu_custom_call.1} parent=55 // pred_check
          %p375 = pneg %p107
        $region66: #{tpu_custom_call.1} parent=55 // pred_check_branch
          %377 = sbr.rel (%p375) target = $region68
        $region67: #{tpu_custom_call.1} parent=55 // pred_region
          %378 = dma.done [#allocation8], 2048
        $region68: #{tpu_custom_call.1} parent=55 // pred_fallthru
          _
        // Predicated region
        $region69: #{tpu_custom_call.1} parent=55 // pred_check
          %p379 = pneg %p128
        $region70: #{tpu_custom_call.1} parent=55 // pred_check_branch
          %381 = sbr.rel (%p379) target = $region72
        $region71: #{tpu_custom_call.1} parent=55 // pred_region
          %382 = dma.done [#allocation11], 2048
        $region72: #{tpu_custom_call.1} parent=55 // pred_fallthru
          _
        // Predicated region
        $region73: #{tpu_custom_call.1} parent=55 // pred_check
          %p383 = pneg %p149
        $region74: #{tpu_custom_call.1} parent=55 // pred_check_branch
          %385 = sbr.rel (%p383) target = $region76
        $region75: #{tpu_custom_call.1} parent=55 // pred_region
          %386 = dma.done [#allocation11], 2048
        $region76: #{tpu_custom_call.1} parent=55 // pred_fallthru
          _
        // Predicated region
        $region77: #{tpu_custom_call.1} parent=55 // pred_check
          %p387 = pneg %p170
        $region78: #{tpu_custom_call.1} parent=55 // pred_check_branch
          %389 = sbr.rel (%p387) target = $region80
        $region79: #{tpu_custom_call.1} parent=55 // pred_region
          %390 = dma.done [#allocation14], 2048
        $region80: #{tpu_custom_call.1} parent=55 // pred_fallthru
          _
        %p391 = pneg %p44
        %p392 = pneg %p41
        %p393 = pneg %p65
        %p394 = pneg %p62
        %p395 = pneg %p86
        %p396 = pneg %p83
        %p397 = pneg %p107
        %p398 = pneg %p104
        %p399 = pneg %p128
        %p400 = pneg %p125
        %p401 = pneg %p149
        %p402 = pneg %p146
        %p403 = pneg %p170
        %p404 = pneg %p167
        %p405 = pneg %p191
        %p406 = pneg %p188
        %p407 = pneg %p212
        %p408 = pneg %p209
        %p409 = pneg %p233
        %p410 = pneg %p230
        %p411 = pneg %p254
        %p412 = pneg %p251
        %p413 = scmp.eq.s32.totalorder %s28, 0
        // Predicated region
        $region81: #{tpu_custom_call.1} parent=55 // pred_check
          %p414 = pneg %p413
        $region82: #{tpu_custom_call.1} parent=55 // pred_check_branch
          %416 = sbr.rel (%p414) target = $region84
        $region83: #{tpu_custom_call.1} parent=55 // pred_region
          %v417 = vld [vmem:[#allocation4] sm:$0xff]
          %v418 = vld [vmem:[#allocation4 + $0x8] sm:$0xff]
          %v419 = vld [vmem:[#allocation4 + $0x10] sm:$0xff]
          %v420 = vld [vmem:[#allocation4 + $0x18] sm:$0xff]
          %v421 = vld [vmem:[#allocation4 + $0x20] sm:$0xff]
          %v422 = vld [vmem:[#allocation4 + $0x28] sm:$0xff]
          %v423 = vld [vmem:[#allocation4 + $0x30] sm:$0xff]
          %v424 = vld [vmem:[#allocation4 + $0x38] sm:$0xff]
          %v425 = vld [vmem:[#allocation4 + $0x40] sm:$0xff]
          %v426 = vld [vmem:[#allocation4 + $0x48] sm:$0xff]
          %v427 = vld [vmem:[#allocation4 + $0x50] sm:$0xff]
          %v428 = vld [vmem:[#allocation4 + $0x58] sm:$0xff]
          %v429 = vld [vmem:[#allocation4 + $0x60] sm:$0xff]
          %v430 = vld [vmem:[#allocation4 + $0x68] sm:$0xff]
          %v431 = vld [vmem:[#allocation4 + $0x70] sm:$0xff]
          %v432 = vld [vmem:[#allocation4 + $0x78] sm:$0xff]
          %433 = vst [vmem:[#allocation2] sm:$0xff] %v417
          %434 = vst [vmem:[#allocation2 + $0x8] sm:$0xff] %v418
          %435 = vst [vmem:[#allocation2 + $0x10] sm:$0xff] %v419
          %436 = vst [vmem:[#allocation2 + $0x18] sm:$0xff] %v420
          %437 = vst [vmem:[#allocation2 + $0x20] sm:$0xff] %v421
          %438 = vst [vmem:[#allocation2 + $0x28] sm:$0xff] %v422
          %439 = vst [vmem:[#allocation2 + $0x30] sm:$0xff] %v423
          %440 = vst [vmem:[#allocation2 + $0x38] sm:$0xff] %v424
          %441 = vst [vmem:[#allocation2 + $0x40] sm:$0xff] %v425
          %442 = vst [vmem:[#allocation2 + $0x48] sm:$0xff] %v426
          %443 = vst [vmem:[#allocation2 + $0x50] sm:$0xff] %v427
          %444 = vst [vmem:[#allocation2 + $0x58] sm:$0xff] %v428
          %445 = vst [vmem:[#allocation2 + $0x60] sm:$0xff] %v429
          %446 = vst [vmem:[#allocation2 + $0x68] sm:$0xff] %v430
          %447 = vst [vmem:[#allocation2 + $0x70] sm:$0xff] %v431
          %448 = vst [vmem:[#allocation2 + $0x78] sm:$0xff] %v432
          %v449 = vld [vmem:[#allocation7] sm:$0xff]
          %v450 = vld [vmem:[#allocation7 + $0x8] sm:$0xff]
          %v451 = vld [vmem:[#allocation7 + $0x10] sm:$0xff]
          %v452 = vld [vmem:[#allocation7 + $0x18] sm:$0xff]
          %v453 = vld [vmem:[#allocation7 + $0x20] sm:$0xff]
          %v454 = vld [vmem:[#allocation7 + $0x28] sm:$0xff]
          %v455 = vld [vmem:[#allocation7 + $0x30] sm:$0xff]
          %v456 = vld [vmem:[#allocation7 + $0x38] sm:$0xff]
          %v457 = vld [vmem:[#allocation7 + $0x40] sm:$0xff]
          %v458 = vld [vmem:[#allocation7 + $0x48] sm:$0xff]
          %v459 = vld [vmem:[#allocation7 + $0x50] sm:$0xff]
          %v460 = vld [vmem:[#allocation7 + $0x58] sm:$0xff]
          %v461 = vld [vmem:[#allocation7 + $0x60] sm:$0xff]
          %v462 = vld [vmem:[#allocation7 + $0x68] sm:$0xff]
          %v463 = vld [vmem:[#allocation7 + $0x70] sm:$0xff]
          %v464 = vld [vmem:[#allocation7 + $0x78] sm:$0xff]
          %465 = vst [vmem:[#allocation3] sm:$0xff] %v449
          %466 = vst [vmem:[#allocation3 + $0x8] sm:$0xff] %v450
          %467 = vst [vmem:[#allocation3 + $0x10] sm:$0xff] %v451
          %468 = vst [vmem:[#allocation3 + $0x18] sm:$0xff] %v452
          %469 = vst [vmem:[#allocation3 + $0x20] sm:$0xff] %v453
          %470 = vst [vmem:[#allocation3 + $0x28] sm:$0xff] %v454
          %471 = vst [vmem:[#allocation3 + $0x30] sm:$0xff] %v455
          %472 = vst [vmem:[#allocation3 + $0x38] sm:$0xff] %v456
          %473 = vst [vmem:[#allocation3 + $0x40] sm:$0xff] %v457
          %474 = vst [vmem:[#allocation3 + $0x48] sm:$0xff] %v458
          %475 = vst [vmem:[#allocation3 + $0x50] sm:$0xff] %v459
          %476 = vst [vmem:[#allocation3 + $0x58] sm:$0xff] %v460
          %477 = vst [vmem:[#allocation3 + $0x60] sm:$0xff] %v461
          %478 = vst [vmem:[#allocation3 + $0x68] sm:$0xff] %v462
          %479 = vst [vmem:[#allocation3 + $0x70] sm:$0xff] %v463
          %480 = vst [vmem:[#allocation3 + $0x78] sm:$0xff] %v464
          %v481 = vld [vmem:[%s7] sm:$0x1]
          %v483 = vlaneseq
          %v484 = vshrl.u32 %v483, 7
          %v485 = vsub.s32 0, %v484
          %v486 = vrot.slane %v481, %v485
          %488 = vst [vmem:[#allocation15] sm:$0xff] %v486
          %489 = vst [vmem:[#allocation15 + $0x8] sm:$0xff] %v486
          %490 = vst [vmem:[#allocation15 + $0x10] sm:$0xff] %v486
          %491 = vst [vmem:[#allocation15 + $0x18] sm:$0xff] %v486
          %492 = vst [vmem:[#allocation15 + $0x20] sm:$0xff] %v486
          %493 = vst [vmem:[#allocation15 + $0x28] sm:$0xff] %v486
          %494 = vst [vmem:[#allocation15 + $0x30] sm:$0xff] %v486
          %495 = vst [vmem:[#allocation15 + $0x38] sm:$0xff] %v486
          %496 = vst [vmem:[#allocation15 + $0x40] sm:$0xff] %v486
          %497 = vst [vmem:[#allocation15 + $0x48] sm:$0xff] %v486
          %498 = vst [vmem:[#allocation15 + $0x50] sm:$0xff] %v486
          %499 = vst [vmem:[#allocation15 + $0x58] sm:$0xff] %v486
          %500 = vst [vmem:[#allocation15 + $0x60] sm:$0xff] %v486
          %501 = vst [vmem:[#allocation15 + $0x68] sm:$0xff] %v486
          %502 = vst [vmem:[#allocation15 + $0x70] sm:$0xff] %v486
          %503 = vst [vmem:[#allocation15 + $0x78] sm:$0xff] %v486
          %v504 = vld [vmem:[%s8] sm:$0xff]
          %v505 = vld [vmem:[%s8 + $0x8] sm:$0xff]
          %v506 = vld [vmem:[%s8 + $0x10] sm:$0xff]
          %v507 = vld [vmem:[%s8 + $0x18] sm:$0xff]
          %v508 = vld [vmem:[%s8 + $0x20] sm:$0xff]
          %v509 = vld [vmem:[%s8 + $0x28] sm:$0xff]
          %v510 = vld [vmem:[%s8 + $0x30] sm:$0xff]
          %v511 = vld [vmem:[%s8 + $0x38] sm:$0xff]
          %v512 = vld [vmem:[%s8 + $0x40] sm:$0xff]
          %v513 = vld [vmem:[%s8 + $0x48] sm:$0xff]
          %v514 = vld [vmem:[%s8 + $0x50] sm:$0xff]
          %v515 = vld [vmem:[%s8 + $0x58] sm:$0xff]
          %v516 = vld [vmem:[%s8 + $0x60] sm:$0xff]
          %v517 = vld [vmem:[%s8 + $0x68] sm:$0xff]
          %v518 = vld [vmem:[%s8 + $0x70] sm:$0xff]
          %v519 = vld [vmem:[%s8 + $0x78] sm:$0xff]
          %521 = vset.pattern.permute.xlu0 0
          %522 = vperm.xlu0 %521, %v504
          %v523 = vpop.permute.xlu0 %522
          %526 = vset.pattern.permute.xlu0 0
          %527 = vperm.xlu0 %526, %v505
          %v528 = vpop.permute.xlu0 %527
          %531 = vset.pattern.permute.xlu0 0
          %532 = vperm.xlu0 %531, %v506
          %v533 = vpop.permute.xlu0 %532
          %536 = vset.pattern.permute.xlu0 0
          %537 = vperm.xlu0 %536, %v507
          %v538 = vpop.permute.xlu0 %537
          %541 = vset.pattern.permute.xlu0 0
          %542 = vperm.xlu0 %541, %v508
          %v543 = vpop.permute.xlu0 %542
          %546 = vset.pattern.permute.xlu0 0
          %547 = vperm.xlu0 %546, %v509
          %v548 = vpop.permute.xlu0 %547
          %551 = vset.pattern.permute.xlu0 0
          %552 = vperm.xlu0 %551, %v510
          %v553 = vpop.permute.xlu0 %552
          %556 = vset.pattern.permute.xlu0 0
          %557 = vperm.xlu0 %556, %v511
          %v558 = vpop.permute.xlu0 %557
          %561 = vset.pattern.permute.xlu0 0
          %562 = vperm.xlu0 %561, %v512
          %v563 = vpop.permute.xlu0 %562
          %566 = vset.pattern.permute.xlu0 0
          %567 = vperm.xlu0 %566, %v513
          %v568 = vpop.permute.xlu0 %567
          %571 = vset.pattern.permute.xlu0 0
          %572 = vperm.xlu0 %571, %v514
          %v573 = vpop.permute.xlu0 %572
          %576 = vset.pattern.permute.xlu0 0
          %577 = vperm.xlu0 %576, %v515
          %v578 = vpop.permute.xlu0 %577
          %581 = vset.pattern.permute.xlu0 0
          %582 = vperm.xlu0 %581, %v516
          %v583 = vpop.permute.xlu0 %582
          %586 = vset.pattern.permute.xlu0 0
          %587 = vperm.xlu0 %586, %v517
          %v588 = vpop.permute.xlu0 %587
          %591 = vset.pattern.permute.xlu0 0
          %592 = vperm.xlu0 %591, %v518
          %v593 = vpop.permute.xlu0 %592
          %596 = vset.pattern.permute.xlu0 0
          %597 = vperm.xlu0 %596, %v519
          %v598 = vpop.permute.xlu0 %597
          %600 = vst [vmem:[#allocation16] sm:$0xff] %v523
          %601 = vst [vmem:[#allocation16 + $0x8] sm:$0xff] %v528
          %602 = vst [vmem:[#allocation16 + $0x10] sm:$0xff] %v533
          %603 = vst [vmem:[#allocation16 + $0x18] sm:$0xff] %v538
          %604 = vst [vmem:[#allocation16 + $0x20] sm:$0xff] %v543
          %605 = vst [vmem:[#allocation16 + $0x28] sm:$0xff] %v548
          %606 = vst [vmem:[#allocation16 + $0x30] sm:$0xff] %v553
          %607 = vst [vmem:[#allocation16 + $0x38] sm:$0xff] %v558
          %608 = vst [vmem:[#allocation16 + $0x40] sm:$0xff] %v563
          %609 = vst [vmem:[#allocation16 + $0x48] sm:$0xff] %v568
          %610 = vst [vmem:[#allocation16 + $0x50] sm:$0xff] %v573
          %611 = vst [vmem:[#allocation16 + $0x58] sm:$0xff] %v578
          %612 = vst [vmem:[#allocation16 + $0x60] sm:$0xff] %v583
          %613 = vst [vmem:[#allocation16 + $0x68] sm:$0xff] %v588
          %614 = vst [vmem:[#allocation16 + $0x70] sm:$0xff] %v593
          %615 = vst [vmem:[#allocation16 + $0x78] sm:$0xff] %v598
        $region84: #{tpu_custom_call.1} parent=55 // pred_fallthru
          _
        %v616 = vld [vmem:[%s0] sm:$0xff]
        %v617 = vld [vmem:[%s0 + $0x8] sm:$0xff]
        %v618 = vld [vmem:[%s0 + $0x10] sm:$0xff]
        %v619 = vld [vmem:[%s0 + $0x18] sm:$0xff]
        %v620 = vld [vmem:[%s0 + $0x20] sm:$0xff]
        %v621 = vld [vmem:[%s0 + $0x28] sm:$0xff]
        %v622 = vld [vmem:[%s0 + $0x30] sm:$0xff]
        %v623 = vld [vmem:[%s0 + $0x38] sm:$0xff]
        %v624 = vld [vmem:[%s0 + $0x40] sm:$0xff]
        %v625 = vld [vmem:[%s0 + $0x48] sm:$0xff]
        %v626 = vld [vmem:[%s0 + $0x50] sm:$0xff]
        %v627 = vld [vmem:[%s0 + $0x58] sm:$0xff]
        %v628 = vld [vmem:[%s0 + $0x60] sm:$0xff]
        %v629 = vld [vmem:[%s0 + $0x68] sm:$0xff]
        %v630 = vld [vmem:[%s0 + $0x70] sm:$0xff]
        %v631 = vld [vmem:[%s0 + $0x78] sm:$0xff]
        %v632 = vld [vmem:[#allocation2] sm:$0xff]
        %v633 = vld [vmem:[#allocation2 + $0x8] sm:$0xff]
        %v634 = vld [vmem:[#allocation2 + $0x10] sm:$0xff]
        %v635 = vld [vmem:[#allocation2 + $0x18] sm:$0xff]
        %v636 = vld [vmem:[#allocation2 + $0x20] sm:$0xff]
        %v637 = vld [vmem:[#allocation2 + $0x28] sm:$0xff]
        %v638 = vld [vmem:[#allocation2 + $0x30] sm:$0xff]
        %v639 = vld [vmem:[#allocation2 + $0x38] sm:$0xff]
        %v640 = vld [vmem:[#allocation2 + $0x40] sm:$0xff]
        %v641 = vld [vmem:[#allocation2 + $0x48] sm:$0xff]
        %v642 = vld [vmem:[#allocation2 + $0x50] sm:$0xff]
        %v643 = vld [vmem:[#allocation2 + $0x58] sm:$0xff]
        %v644 = vld [vmem:[#allocation2 + $0x60] sm:$0xff]
        %v645 = vld [vmem:[#allocation2 + $0x68] sm:$0xff]
        %v646 = vld [vmem:[#allocation2 + $0x70] sm:$0xff]
        %v647 = vld [vmem:[#allocation2 + $0x78] sm:$0xff]
        %v648 = vld [vmem:[#allocation3] sm:$0xff]
        %v649 = vld [vmem:[#allocation3 + $0x8] sm:$0xff]
        %v650 = vld [vmem:[#allocation3 + $0x10] sm:$0xff]
        %v651 = vld [vmem:[#allocation3 + $0x18] sm:$0xff]
        %v652 = vld [vmem:[#allocation3 + $0x20] sm:$0xff]
        %v653 = vld [vmem:[#allocation3 + $0x28] sm:$0xff]
        %v654 = vld [vmem:[#allocation3 + $0x30] sm:$0xff]
        %v655 = vld [vmem:[#allocation3 + $0x38] sm:$0xff]
        %v656 = vld [vmem:[#allocation3 + $0x40] sm:$0xff]
        %v657 = vld [vmem:[#allocation3 + $0x48] sm:$0xff]
        %v658 = vld [vmem:[#allocation3 + $0x50] sm:$0xff]
        %v659 = vld [vmem:[#allocation3 + $0x58] sm:$0xff]
        %v660 = vld [vmem:[#allocation3 + $0x60] sm:$0xff]
        %v661 = vld [vmem:[#allocation3 + $0x68] sm:$0xff]
        %v662 = vld [vmem:[#allocation3 + $0x70] sm:$0xff]
        %v663 = vld [vmem:[#allocation3 + $0x78] sm:$0xff]
        %664 = vmatprep.subr.mxu0 0.0
        %665 = vmatpush1.xpose.msra.mxu0 %v648
        %666 = vmatprep.subr.mxu0 0.0
        %667 = vmatpush1.xpose.msra.mxu0 %v649
        %668 = vmatprep.subr.mxu0 0.0
        %669 = vmatpush1.xpose.msra.mxu0 %v650
        %670 = vmatprep.subr.mxu0 0.0
        %671 = vmatpush1.xpose.msra.mxu0 %v651
        %672 = vmatprep.subr.mxu0 0.0
        %673 = vmatpush1.xpose.msra.mxu0 %v652
        %674 = vmatprep.subr.mxu0 0.0
        %675 = vmatpush1.xpose.msra.mxu0 %v653
        %676 = vmatprep.subr.mxu0 0.0
        %677 = vmatpush1.xpose.msra.mxu0 %v654
        %678 = vmatprep.subr.mxu0 0.0
        %679 = vmatpush1.xpose.msra.mxu0 %v655
        %680 = vmatprep.subr.mxu0 0.0
        %681 = vmatpush1.xpose.msra.mxu0 %v656
        %682 = vmatprep.subr.mxu0 0.0
        %683 = vmatpush1.xpose.msra.mxu0 %v657
        %684 = vmatprep.subr.mxu0 0.0
        %685 = vmatpush1.xpose.msra.mxu0 %v658
        %686 = vmatprep.subr.mxu0 0.0
        %687 = vmatpush1.xpose.msra.mxu0 %v659
        %688 = vmatprep.subr.mxu0 0.0
        %689 = vmatpush1.xpose.msra.mxu0 %v660
        %690 = vmatprep.subr.mxu0 0.0
        %691 = vmatpush1.xpose.msra.mxu0 %v661
        %692 = vmatprep.subr.mxu0 0.0
        %693 = vmatpush1.xpose.msra.mxu0 %v662
        %694 = vmatprep.subr.mxu0 0.0
        %695 = vmatpush1.xpose.msra.mxu0 %v663
        %696 = vmatprep.subr.mxu0 0.0
        %697 = vmatpush1.xpose.msra.mxu0 0.0
        %698 = vmatprep.subr.mxu0 0.0
        %699 = vmatpush1.xpose.msra.mxu0 0.0
        %700 = vmatprep.subr.mxu0 0.0
        %701 = vmatpush1.xpose.msra.mxu0 0.0
        %702 = vmatprep.subr.mxu0 0.0
        %703 = vmatpush1.xpose.msra.mxu0 0.0
        %704 = vmatprep.subr.mxu0 0.0
        %705 = vmatpush1.xpose.msra.mxu0 0.0
        %706 = vmatprep.subr.mxu0 0.0
        %707 = vmatpush1.xpose.msra.mxu0 0.0
        %708 = vmatprep.subr.mxu0 0.0
        %709 = vmatpush1.xpose.msra.mxu0 0.0
        %710 = vmatprep.subr.mxu0 0.0
        %711 = vmatpush1.xpose.msra.mxu0 0.0
        %712 = vmatprep.subr.mxu0 0.0
        %713 = vmatpush1.xpose.msra.mxu0 0.0
        %714 = vmatprep.subr.mxu0 0.0
        %715 = vmatpush1.xpose.msra.mxu0 0.0
        %716 = vmatprep.subr.mxu0 0.0
        %717 = vmatpush1.xpose.msra.mxu0 0.0
        %718 = vmatprep.subr.mxu0 0.0
        %719 = vmatpush1.xpose.msra.mxu0 0.0
        %720 = vmatprep.subr.mxu0 0.0
        %721 = vmatpush1.xpose.msra.mxu0 0.0
        %722 = vmatprep.subr.mxu0 0.0
        %723 = vmatpush1.xpose.msra.mxu0 0.0
        %724 = vmatprep.subr.mxu0 0.0
        %725 = vmatpush1.xpose.msra.mxu0 0.0
        %726 = vmatprep.subr.mxu0 0.0
        %727 = vmatpush1.xpose.msra.mxu0 0.0
        %728 = vmatprep.mubr.f32.mxu0 0.0
        %729 = vmatmul.mubr.f32.gmra.mrb[0].mxu0 %v616
        %v730 = vpop.f32.mrb[0].mxu0
        %v731 = vadd.f32 0.0, %v730
        %v732 = vpop.f32.mrb[0].mxu0
        %733 = vmatprep.mubr.f32.mxu0 0.0
        %734 = vmatmul.mubr.f32.gmra.mrb[0].mxu0 %v617
        %v735 = vpop.f32.mrb[0].mxu0
        %v736 = vadd.f32 0.0, %v735
        %v737 = vpop.f32.mrb[0].mxu0
        %738 = vmatprep.mubr.f32.mxu0 0.0
        %739 = vmatmul.mubr.f32.gmra.mrb[0].mxu0 %v618
        %v740 = vpop.f32.mrb[0].mxu0
        %v741 = vadd.f32 0.0, %v740
        %v742 = vpop.f32.mrb[0].mxu0
        %743 = vmatprep.mubr.f32.mxu0 0.0
        %744 = vmatmul.mubr.f32.gmra.mrb[0].mxu0 %v619
        %v745 = vpop.f32.mrb[0].mxu0
        %v746 = vadd.f32 0.0, %v745
        %v747 = vpop.f32.mrb[0].mxu0
        %748 = vmatprep.mubr.f32.mxu0 0.0
        %749 = vmatmul.mubr.f32.gmra.mrb[0].mxu0 %v620
        %v750 = vpop.f32.mrb[0].mxu0
        %v751 = vadd.f32 0.0, %v750
        %v752 = vpop.f32.mrb[0].mxu0
        %753 = vmatprep.mubr.f32.mxu0 0.0
        %754 = vmatmul.mubr.f32.gmra.mrb[0].mxu0 %v621
        %v755 = vpop.f32.mrb[0].mxu0
        %v756 = vadd.f32 0.0, %v755
        %v757 = vpop.f32.mrb[0].mxu0
        %758 = vmatprep.mubr.f32.mxu0 0.0
        %759 = vmatmul.mubr.f32.gmra.mrb[0].mxu0 %v622
        %v760 = vpop.f32.mrb[0].mxu0
        %v761 = vadd.f32 0.0, %v760
        %v762 = vpop.f32.mrb[0].mxu0
        %763 = vmatprep.mubr.f32.mxu0 0.0
        %764 = vmatmul.mubr.f32.gmra.mrb[0].mxu0 %v623
        %v765 = vpop.f32.mrb[0].mxu0
        %v766 = vadd.f32 0.0, %v765
        %v767 = vpop.f32.mrb[0].mxu0
        %768 = vmatprep.mubr.f32.mxu0 0.0
        %769 = vmatmul.mubr.f32.gmra.mrb[0].mxu0 %v624
        %v770 = vpop.f32.mrb[0].mxu0
        %v771 = vadd.f32 0.0, %v770
        %v772 = vpop.f32.mrb[0].mxu0
        %773 = vmatprep.mubr.f32.mxu0 0.0
        %774 = vmatmul.mubr.f32.gmra.mrb[0].mxu0 %v625
        %v775 = vpop.f32.mrb[0].mxu0
        %v776 = vadd.f32 0.0, %v775
        %v777 = vpop.f32.mrb[0].mxu0
        %778 = vmatprep.mubr.f32.mxu0 0.0
        %779 = vmatmul.mubr.f32.gmra.mrb[0].mxu0 %v626
        %v780 = vpop.f32.mrb[0].mxu0
        %v781 = vadd.f32 0.0, %v780
        %v782 = vpop.f32.mrb[0].mxu0
        %783 = vmatprep.mubr.f32.mxu0 0.0
        %784 = vmatmul.mubr.f32.gmra.mrb[0].mxu0 %v627
        %v785 = vpop.f32.mrb[0].mxu0
        %v786 = vadd.f32 0.0, %v785
        %v787 = vpop.f32.mrb[0].mxu0
        %788 = vmatprep.mubr.f32.mxu0 0.0
        %789 = vmatmul.mubr.f32.gmra.mrb[0].mxu0 %v628
        %v790 = vpop.f32.mrb[0].mxu0
        %v791 = vadd.f32 0.0, %v790
        %v792 = vpop.f32.mrb[0].mxu0
        %793 = vmatprep.mubr.f32.mxu0 0.0
        %794 = vmatmul.mubr.f32.gmra.mrb[0].mxu0 %v629
        %v795 = vpop.f32.mrb[0].mxu0
        %v796 = vadd.f32 0.0, %v795
        %v797 = vpop.f32.mrb[0].mxu0
        %798 = vmatprep.mubr.f32.mxu0 0.0
        %799 = vmatmul.mubr.f32.gmra.mrb[0].mxu0 %v630
        %v800 = vpop.f32.mrb[0].mxu0
        %v801 = vadd.f32 0.0, %v800
        %v802 = vpop.f32.mrb[0].mxu0
        %803 = vmatprep.mubr.f32.mxu0 0.0
        %804 = vmatmul.mubr.f32.gmra.mrb[0].mxu0 %v631
        %v805 = vpop.f32.mrb[0].mxu0
        %v806 = vadd.f32 0.0, %v805
        %v807 = vpop.f32.mrb[0].mxu0
        %808 = vdwg.mxu0
        %v809 = vmul.f32 %v731, %v632
        %v810 = vmul.f32 %v736, %v633
        %v811 = vmul.f32 %v741, %v634
        %v812 = vmul.f32 %v746, %v635
        %v813 = vmul.f32 %v751, %v636
        %v814 = vmul.f32 %v756, %v637
        %v815 = vmul.f32 %v761, %v638
        %v816 = vmul.f32 %v766, %v639
        %v817 = vmul.f32 %v771, %v640
        %v818 = vmul.f32 %v776, %v641
        %v819 = vmul.f32 %v781, %v642
        %v820 = vmul.f32 %v786, %v643
        %v821 = vmul.f32 %v791, %v644
        %v822 = vmul.f32 %v796, %v645
        %v823 = vmul.f32 %v801, %v646
        %v824 = vmul.f32 %v806, %v647
        %v825 = vld [vmem:[#allocation15] sm:$0xff]
        %v826 = vld [vmem:[#allocation15 + $0x8] sm:$0xff]
        %v827 = vld [vmem:[#allocation15 + $0x10] sm:$0xff]
        %v828 = vld [vmem:[#allocation15 + $0x18] sm:$0xff]
        %v829 = vld [vmem:[#allocation15 + $0x20] sm:$0xff]
        %v830 = vld [vmem:[#allocation15 + $0x28] sm:$0xff]
        %v831 = vld [vmem:[#allocation15 + $0x30] sm:$0xff]
        %v832 = vld [vmem:[#allocation15 + $0x38] sm:$0xff]
        %v833 = vld [vmem:[#allocation15 + $0x40] sm:$0xff]
        %v834 = vld [vmem:[#allocation15 + $0x48] sm:$0xff]
        %v835 = vld [vmem:[#allocation15 + $0x50] sm:$0xff]
        %v836 = vld [vmem:[#allocation15 + $0x58] sm:$0xff]
        %v837 = vld [vmem:[#allocation15 + $0x60] sm:$0xff]
        %v838 = vld [vmem:[#allocation15 + $0x68] sm:$0xff]
        %v839 = vld [vmem:[#allocation15 + $0x70] sm:$0xff]
        %v840 = vld [vmem:[#allocation15 + $0x78] sm:$0xff]
        %v841 = vld [vmem:[#allocation9] sm:$0xff]
        %v842 = vld [vmem:[#allocation9 + $0x8] sm:$0xff]
        %v843 = vld [vmem:[#allocation9 + $0x10] sm:$0xff]
        %v844 = vld [vmem:[#allocation9 + $0x18] sm:$0xff]
        %v845 = vld [vmem:[#allocation9 + $0x20] sm:$0xff]
        %v846 = vld [vmem:[#allocation9 + $0x28] sm:$0xff]
        %v847 = vld [vmem:[#allocation9 + $0x30] sm:$0xff]
        %v848 = vld [vmem:[#allocation9 + $0x38] sm:$0xff]
        %v849 = vld [vmem:[#allocation9 + $0x40] sm:$0xff]
        %v850 = vld [vmem:[#allocation9 + $0x48] sm:$0xff]
        %v851 = vld [vmem:[#allocation9 + $0x50] sm:$0xff]
        %v852 = vld [vmem:[#allocation9 + $0x58] sm:$0xff]
        %v853 = vld [vmem:[#allocation9 + $0x60] sm:$0xff]
        %v854 = vld [vmem:[#allocation9 + $0x68] sm:$0xff]
        %v855 = vld [vmem:[#allocation9 + $0x70] sm:$0xff]
        %v856 = vld [vmem:[#allocation9 + $0x78] sm:$0xff]
        %v857 = vld [vmem:[#allocation10] sm:$0xff]
        %v858 = vld [vmem:[#allocation10 + $0x8] sm:$0xff]
        %v859 = vld [vmem:[#allocation10 + $0x10] sm:$0xff]
        %v860 = vld [vmem:[#allocation10 + $0x18] sm:$0xff]
        %v861 = vld [vmem:[#allocation10 + $0x20] sm:$0xff]
        %v862 = vld [vmem:[#allocation10 + $0x28] sm:$0xff]
        %v863 = vld [vmem:[#allocation10 + $0x30] sm:$0xff]
        %v864 = vld [vmem:[#allocation10 + $0x38] sm:$0xff]
        %v865 = vld [vmem:[#allocation10 + $0x40] sm:$0xff]
        %v866 = vld [vmem:[#allocation10 + $0x48] sm:$0xff]
        %v867 = vld [vmem:[#allocation10 + $0x50] sm:$0xff]
        %v868 = vld [vmem:[#allocation10 + $0x58] sm:$0xff]
        %v869 = vld [vmem:[#allocation10 + $0x60] sm:$0xff]
        %v870 = vld [vmem:[#allocation10 + $0x68] sm:$0xff]
        %v871 = vld [vmem:[#allocation10 + $0x70] sm:$0xff]
        %v872 = vld [vmem:[#allocation10 + $0x78] sm:$0xff]
        %873 = vmatprep.subr.mxu0 0.0
        %874 = vmatpush1.msra.mxu0 %v857
        %875 = vmatprep.subr.mxu0 0.0
        %876 = vmatpush1.msra.mxu0 %v858
        %877 = vmatprep.subr.mxu0 0.0
        %878 = vmatpush1.msra.mxu0 %v859
        %879 = vmatprep.subr.mxu0 0.0
        %880 = vmatpush1.msra.mxu0 %v860
        %881 = vmatprep.subr.mxu0 0.0
        %882 = vmatpush1.msra.mxu0 %v861
        %883 = vmatprep.subr.mxu0 0.0
        %884 = vmatpush1.msra.mxu0 %v862
        %885 = vmatprep.subr.mxu0 0.0
        %886 = vmatpush1.msra.mxu0 %v863
        %887 = vmatprep.subr.mxu0 0.0
        %888 = vmatpush1.msra.mxu0 %v864
        %889 = vmatprep.subr.mxu0 0.0
        %890 = vmatpush1.msra.mxu0 %v865
        %891 = vmatprep.subr.mxu0 0.0
        %892 = vmatpush1.msra.mxu0 %v866
        %893 = vmatprep.subr.mxu0 0.0
        %894 = vmatpush1.msra.mxu0 %v867
        %895 = vmatprep.subr.mxu0 0.0
        %896 = vmatpush1.msra.mxu0 %v868
        %897 = vmatprep.subr.mxu0 0.0
        %898 = vmatpush1.msra.mxu0 %v869
        %899 = vmatprep.subr.mxu0 0.0
        %900 = vmatpush1.msra.mxu0 %v870
        %901 = vmatprep.subr.mxu0 0.0
        %902 = vmatpush1.msra.mxu0 %v871
        %903 = vmatprep.subr.mxu0 0.0
        %904 = vmatpush1.msra.mxu0 %v872
        %905 = vmatprep.subr.mxu0 0.0
        %906 = vmatpush1.msra.mxu0 0.0
        %907 = vmatprep.subr.mxu0 0.0
        %908 = vmatpush1.msra.mxu0 0.0
        %909 = vmatprep.subr.mxu0 0.0
        %910 = vmatpush1.msra.mxu0 0.0
        %911 = vmatprep.subr.mxu0 0.0
        %912 = vmatpush1.msra.mxu0 0.0
        %913 = vmatprep.subr.mxu0 0.0
        %914 = vmatpush1.msra.mxu0 0.0
        %915 = vmatprep.subr.mxu0 0.0
        %916 = vmatpush1.msra.mxu0 0.0
        %917 = vmatprep.subr.mxu0 0.0
        %918 = vmatpush1.msra.mxu0 0.0
        %919 = vmatprep.subr.mxu0 0.0
        %920 = vmatpush1.msra.mxu0 0.0
        %921 = vmatprep.subr.mxu0 0.0
        %922 = vmatpush1.msra.mxu0 0.0
        %923 = vmatprep.subr.mxu0 0.0
        %924 = vmatpush1.msra.mxu0 0.0
        %925 = vmatprep.subr.mxu0 0.0
        %926 = vmatpush1.msra.mxu0 0.0
        %927 = vmatprep.subr.mxu0 0.0
        %928 = vmatpush1.msra.mxu0 0.0
        %929 = vmatprep.subr.mxu0 0.0
        %930 = vmatpush1.msra.mxu0 0.0
        %931 = vmatprep.subr.mxu0 0.0
        %932 = vmatpush1.msra.mxu0 0.0
        %933 = vmatprep.subr.mxu0 0.0
        %934 = vmatpush1.msra.mxu0 0.0
        %935 = vmatprep.subr.mxu0 0.0
        %936 = vmatpush1.msra.mxu0 0.0
        %937 = vmatprep.mubr.f32.mxu0 0.0
        %938 = vmatmul.mubr.f32.gmra.mrb[0].mxu0 %v809
        %v939 = vpop.f32.mrb[0].mxu0
        %v940 = vadd.f32 0.0, %v939
        %v941 = vpop.f32.mrb[0].mxu0
        %942 = vmatprep.mubr.f32.mxu0 0.0
        %943 = vmatmul.mubr.f32.gmra.mrb[0].mxu0 %v810
        %v944 = vpop.f32.mrb[0].mxu0
        %v945 = vadd.f32 0.0, %v944
        %v946 = vpop.f32.mrb[0].mxu0
        %947 = vmatprep.mubr.f32.mxu0 0.0
        %948 = vmatmul.mubr.f32.gmra.mrb[0].mxu0 %v811
        %v949 = vpop.f32.mrb[0].mxu0
        %v950 = vadd.f32 0.0, %v949
        %v951 = vpop.f32.mrb[0].mxu0
        %952 = vmatprep.mubr.f32.mxu0 0.0
        %953 = vmatmul.mubr.f32.gmra.mrb[0].mxu0 %v812
        %v954 = vpop.f32.mrb[0].mxu0
        %v955 = vadd.f32 0.0, %v954
        %v956 = vpop.f32.mrb[0].mxu0
        %957 = vmatprep.mubr.f32.mxu0 0.0
        %958 = vmatmul.mubr.f32.gmra.mrb[0].mxu0 %v813
        %v959 = vpop.f32.mrb[0].mxu0
        %v960 = vadd.f32 0.0, %v959
        %v961 = vpop.f32.mrb[0].mxu0
        %962 = vmatprep.mubr.f32.mxu0 0.0
        %963 = vmatmul.mubr.f32.gmra.mrb[0].mxu0 %v814
        %v964 = vpop.f32.mrb[0].mxu0
        %v965 = vadd.f32 0.0, %v964
        %v966 = vpop.f32.mrb[0].mxu0
        %967 = vmatprep.mubr.f32.mxu0 0.0
        %968 = vmatmul.mubr.f32.gmra.mrb[0].mxu0 %v815
        %v969 = vpop.f32.mrb[0].mxu0
        %v970 = vadd.f32 0.0, %v969
        %v971 = vpop.f32.mrb[0].mxu0
        %972 = vmatprep.mubr.f32.mxu0 0.0
        %973 = vmatmul.mubr.f32.gmra.mrb[0].mxu0 %v816
        %v974 = vpop.f32.mrb[0].mxu0
        %v975 = vadd.f32 0.0, %v974
        %v976 = vpop.f32.mrb[0].mxu0
        %977 = vmatprep.mubr.f32.mxu0 0.0
        %978 = vmatmul.mubr.f32.gmra.mrb[0].mxu0 %v817
        %v979 = vpop.f32.mrb[0].mxu0
        %v980 = vadd.f32 0.0, %v979
        %v981 = vpop.f32.mrb[0].mxu0
        %982 = vmatprep.mubr.f32.mxu0 0.0
        %983 = vmatmul.mubr.f32.gmra.mrb[0].mxu0 %v818
        %v984 = vpop.f32.mrb[0].mxu0
        %v985 = vadd.f32 0.0, %v984
        %v986 = vpop.f32.mrb[0].mxu0
        %987 = vmatprep.mubr.f32.mxu0 0.0
        %988 = vmatmul.mubr.f32.gmra.mrb[0].mxu0 %v819
        %v989 = vpop.f32.mrb[0].mxu0
        %v990 = vadd.f32 0.0, %v989
        %v991 = vpop.f32.mrb[0].mxu0
        %992 = vmatprep.mubr.f32.mxu0 0.0
        %993 = vmatmul.mubr.f32.gmra.mrb[0].mxu0 %v820
        %v994 = vpop.f32.mrb[0].mxu0
        %v995 = vadd.f32 0.0, %v994
        %v996 = vpop.f32.mrb[0].mxu0
        %997 = vmatprep.mubr.f32.mxu0 0.0
        %998 = vmatmul.mubr.f32.gmra.mrb[0].mxu0 %v821
        %v999 = vpop.f32.mrb[0].mxu0
        %v1000 = vadd.f32 0.0, %v999
        %v1001 = vpop.f32.mrb[0].mxu0
        %1002 = vmatprep.mubr.f32.mxu0 0.0
        %1003 = vmatmul.mubr.f32.gmra.mrb[0].mxu0 %v822
        %v1004 = vpop.f32.mrb[0].mxu0
        %v1005 = vadd.f32 0.0, %v1004
        %v1006 = vpop.f32.mrb[0].mxu0
        %1007 = vmatprep.mubr.f32.mxu0 0.0
        %1008 = vmatmul.mubr.f32.gmra.mrb[0].mxu0 %v823
        %v1009 = vpop.f32.mrb[0].mxu0
        %v1010 = vadd.f32 0.0, %v1009
        %v1011 = vpop.f32.mrb[0].mxu0
        %1012 = vmatprep.mubr.f32.mxu0 0.0
        %1013 = vmatmul.mubr.f32.gmra.mrb[0].mxu0 %v824
        %v1014 = vpop.f32.mrb[0].mxu0
        %v1015 = vadd.f32 0.0, %v1014
        %v1016 = vpop.f32.mrb[0].mxu0
        %1017 = vdwg.mxu0
        %1018 = vmatprep.subr.mxu0 0.0
        %1019 = vmatpush1.msra.mxu0 %v841
        %1020 = vmatprep.subr.mxu0 0.0
        %1021 = vmatpush1.msra.mxu0 %v842
        %1022 = vmatprep.subr.mxu0 0.0
        %1023 = vmatpush1.msra.mxu0 %v843
        %1024 = vmatprep.subr.mxu0 0.0
        %1025 = vmatpush1.msra.mxu0 %v844
        %1026 = vmatprep.subr.mxu0 0.0
        %1027 = vmatpush1.msra.mxu0 %v845
        %1028 = vmatprep.subr.mxu0 0.0
        %1029 = vmatpush1.msra.mxu0 %v846
        %1030 = vmatprep.subr.mxu0 0.0
        %1031 = vmatpush1.msra.mxu0 %v847
        %1032 = vmatprep.subr.mxu0 0.0
        %1033 = vmatpush1.msra.mxu0 %v848
        %1034 = vmatprep.subr.mxu0 0.0
        %1035 = vmatpush1.msra.mxu0 %v849
        %1036 = vmatprep.subr.mxu0 0.0
        %1037 = vmatpush1.msra.mxu0 %v850
        %1038 = vmatprep.subr.mxu0 0.0
        %1039 = vmatpush1.msra.mxu0 %v851
        %1040 = vmatprep.subr.mxu0 0.0
        %1041 = vmatpush1.msra.mxu0 %v852
        %1042 = vmatprep.subr.mxu0 0.0
        %1043 = vmatpush1.msra.mxu0 %v853
        %1044 = vmatprep.subr.mxu0 0.0
        %1045 = vmatpush1.msra.mxu0 %v854
        %1046 = vmatprep.subr.mxu0 0.0
        %1047 = vmatpush1.msra.mxu0 %v855
        %1048 = vmatprep.subr.mxu0 0.0
        %1049 = vmatpush1.msra.mxu0 %v856
        %1050 = vmatprep.subr.mxu0 0.0
        %1051 = vmatpush1.msra.mxu0 0.0
        %1052 = vmatprep.subr.mxu0 0.0
        %1053 = vmatpush1.msra.mxu0 0.0
        %1054 = vmatprep.subr.mxu0 0.0
        %1055 = vmatpush1.msra.mxu0 0.0
        %1056 = vmatprep.subr.mxu0 0.0
        %1057 = vmatpush1.msra.mxu0 0.0
        %1058 = vmatprep.subr.mxu0 0.0
        %1059 = vmatpush1.msra.mxu0 0.0
        %1060 = vmatprep.subr.mxu0 0.0
        %1061 = vmatpush1.msra.mxu0 0.0
        %1062 = vmatprep.subr.mxu0 0.0
        %1063 = vmatpush1.msra.mxu0 0.0
        %1064 = vmatprep.subr.mxu0 0.0
        %1065 = vmatpush1.msra.mxu0 0.0
        %1066 = vmatprep.subr.mxu0 0.0
        %1067 = vmatpush1.msra.mxu0 0.0
        %1068 = vmatprep.subr.mxu0 0.0
        %1069 = vmatpush1.msra.mxu0 0.0
        %1070 = vmatprep.subr.mxu0 0.0
        %1071 = vmatpush1.msra.mxu0 0.0
        %1072 = vmatprep.subr.mxu0 0.0
        %1073 = vmatpush1.msra.mxu0 0.0
        %1074 = vmatprep.subr.mxu0 0.0
        %1075 = vmatpush1.msra.mxu0 0.0
        %1076 = vmatprep.subr.mxu0 0.0
        %1077 = vmatpush1.msra.mxu0 0.0
        %1078 = vmatprep.subr.mxu0 0.0
        %1079 = vmatpush1.msra.mxu0 0.0
        %1080 = vmatprep.subr.mxu0 0.0
        %1081 = vmatpush1.msra.mxu0 0.0
        %1082 = vmatprep.mubr.f32.mxu0 0.0
        %1083 = vmatmul.mubr.f32.gmra.mrb[0].mxu0 %v731
        %v1084 = vpop.f32.mrb[0].mxu0
        %v1085 = vadd.f32 %v940, %v1084
        %v1086 = vpop.f32.mrb[0].mxu0
        %1087 = vmatprep.mubr.f32.mxu0 0.0
        %1088 = vmatmul.mubr.f32.gmra.mrb[0].mxu0 %v736
        %v1089 = vpop.f32.mrb[0].mxu0
        %v1090 = vadd.f32 %v945, %v1089
        %v1091 = vpop.f32.mrb[0].mxu0
        %1092 = vmatprep.mubr.f32.mxu0 0.0
        %1093 = vmatmul.mubr.f32.gmra.mrb[0].mxu0 %v741
        %v1094 = vpop.f32.mrb[0].mxu0
        %v1095 = vadd.f32 %v950, %v1094
        %v1096 = vpop.f32.mrb[0].mxu0
        %1097 = vmatprep.mubr.f32.mxu0 0.0
        %1098 = vmatmul.mubr.f32.gmra.mrb[0].mxu0 %v746
        %v1099 = vpop.f32.mrb[0].mxu0
        %v1100 = vadd.f32 %v955, %v1099
        %v1101 = vpop.f32.mrb[0].mxu0
        %1102 = vmatprep.mubr.f32.mxu0 0.0
        %1103 = vmatmul.mubr.f32.gmra.mrb[0].mxu0 %v751
        %v1104 = vpop.f32.mrb[0].mxu0
        %v1105 = vadd.f32 %v960, %v1104
        %v1106 = vpop.f32.mrb[0].mxu0
        %1107 = vmatprep.mubr.f32.mxu0 0.0
        %1108 = vmatmul.mubr.f32.gmra.mrb[0].mxu0 %v756
        %v1109 = vpop.f32.mrb[0].mxu0
        %v1110 = vadd.f32 %v965, %v1109
        %v1111 = vpop.f32.mrb[0].mxu0
        %1112 = vmatprep.mubr.f32.mxu0 0.0
        %1113 = vmatmul.mubr.f32.gmra.mrb[0].mxu0 %v761
        %v1114 = vpop.f32.mrb[0].mxu0
        %v1115 = vadd.f32 %v970, %v1114
        %v1116 = vpop.f32.mrb[0].mxu0
        %1117 = vmatprep.mubr.f32.mxu0 0.0
        %1118 = vmatmul.mubr.f32.gmra.mrb[0].mxu0 %v766
        %v1119 = vpop.f32.mrb[0].mxu0
        %v1120 = vadd.f32 %v975, %v1119
        %v1121 = vpop.f32.mrb[0].mxu0
        %1122 = vmatprep.mubr.f32.mxu0 0.0
        %1123 = vmatmul.mubr.f32.gmra.mrb[0].mxu0 %v771
        %v1124 = vpop.f32.mrb[0].mxu0
        %v1125 = vadd.f32 %v980, %v1124
        %v1126 = vpop.f32.mrb[0].mxu0
        %1127 = vmatprep.mubr.f32.mxu0 0.0
        %1128 = vmatmul.mubr.f32.gmra.mrb[0].mxu0 %v776
        %v1129 = vpop.f32.mrb[0].mxu0
        %v1130 = vadd.f32 %v985, %v1129
        %v1131 = vpop.f32.mrb[0].mxu0
        %1132 = vmatprep.mubr.f32.mxu0 0.0
        %1133 = vmatmul.mubr.f32.gmra.mrb[0].mxu0 %v781
        %v1134 = vpop.f32.mrb[0].mxu0
        %v1135 = vadd.f32 %v990, %v1134
        %v1136 = vpop.f32.mrb[0].mxu0
        %1137 = vmatprep.mubr.f32.mxu0 0.0
        %1138 = vmatmul.mubr.f32.gmra.mrb[0].mxu0 %v786
        %v1139 = vpop.f32.mrb[0].mxu0
        %v1140 = vadd.f32 %v995, %v1139
        %v1141 = vpop.f32.mrb[0].mxu0
        %1142 = vmatprep.mubr.f32.mxu0 0.0
        %1143 = vmatmul.mubr.f32.gmra.mrb[0].mxu0 %v791
        %v1144 = vpop.f32.mrb[0].mxu0
        %v1145 = vadd.f32 %v1000, %v1144
        %v1146 = vpop.f32.mrb[0].mxu0
        %1147 = vmatprep.mubr.f32.mxu0 0.0
        %1148 = vmatmul.mubr.f32.gmra.mrb[0].mxu0 %v796
        %v1149 = vpop.f32.mrb[0].mxu0
        %v1150 = vadd.f32 %v1005, %v1149
        %v1151 = vpop.f32.mrb[0].mxu0
        %1152 = vmatprep.mubr.f32.mxu0 0.0
        %1153 = vmatmul.mubr.f32.gmra.mrb[0].mxu0 %v801
        %v1154 = vpop.f32.mrb[0].mxu0
        %v1155 = vadd.f32 %v1010, %v1154
        %v1156 = vpop.f32.mrb[0].mxu0
        %1157 = vmatprep.mubr.f32.mxu0 0.0
        %1158 = vmatmul.mubr.f32.gmra.mrb[0].mxu0 %v806
        %v1159 = vpop.f32.mrb[0].mxu0
        %v1160 = vadd.f32 %v1015, %v1159
        %v1161 = vpop.f32.mrb[0].mxu0
        %1162 = vdwg.mxu0
        %v1163 = vadd.f32 %v825, %v1085
        %v1164 = vadd.f32 %v826, %v1090
        %v1165 = vadd.f32 %v827, %v1095
        %v1166 = vadd.f32 %v828, %v1100
        %v1167 = vadd.f32 %v829, %v1105
        %v1168 = vadd.f32 %v830, %v1110
        %v1169 = vadd.f32 %v831, %v1115
        %v1170 = vadd.f32 %v832, %v1120
        %v1171 = vadd.f32 %v833, %v1125
        %v1172 = vadd.f32 %v834, %v1130
        %v1173 = vadd.f32 %v835, %v1135
        %v1174 = vadd.f32 %v836, %v1140
        %v1175 = vadd.f32 %v837, %v1145
        %v1176 = vadd.f32 %v838, %v1150
        %v1177 = vadd.f32 %v839, %v1155
        %v1178 = vadd.f32 %v840, %v1160
        %1179 = vst [vmem:[#allocation15] sm:$0xff] %v1163
        %1180 = vst [vmem:[#allocation15 + $0x8] sm:$0xff] %v1164
        %1181 = vst [vmem:[#allocation15 + $0x10] sm:$0xff] %v1165
        %1182 = vst [vmem:[#allocation15 + $0x18] sm:$0xff] %v1166
        %1183 = vst [vmem:[#allocation15 + $0x20] sm:$0xff] %v1167
        %1184 = vst [vmem:[#allocation15 + $0x28] sm:$0xff] %v1168
        %1185 = vst [vmem:[#allocation15 + $0x30] sm:$0xff] %v1169
        %1186 = vst [vmem:[#allocation15 + $0x38] sm:$0xff] %v1170
        %1187 = vst [vmem:[#allocation15 + $0x40] sm:$0xff] %v1171
        %1188 = vst [vmem:[#allocation15 + $0x48] sm:$0xff] %v1172
        %1189 = vst [vmem:[#allocation15 + $0x50] sm:$0xff] %v1173
        %1190 = vst [vmem:[#allocation15 + $0x58] sm:$0xff] %v1174
        %1191 = vst [vmem:[#allocation15 + $0x60] sm:$0xff] %v1175
        %1192 = vst [vmem:[#allocation15 + $0x68] sm:$0xff] %v1176
        %1193 = vst [vmem:[#allocation15 + $0x70] sm:$0xff] %v1177
        %1194 = vst [vmem:[#allocation15 + $0x78] sm:$0xff] %v1178
        %v1195 = vadd.f32 %v731, %v809
        %v1196 = vadd.f32 %v736, %v810
        %v1197 = vadd.f32 %v741, %v811
        %v1198 = vadd.f32 %v746, %v812
        %v1199 = vadd.f32 %v751, %v813
        %v1200 = vadd.f32 %v756, %v814
        %v1201 = vadd.f32 %v761, %v815
        %v1202 = vadd.f32 %v766, %v816
        %v1203 = vadd.f32 %v771, %v817
        %v1204 = vadd.f32 %v776, %v818
        %v1205 = vadd.f32 %v781, %v819
        %v1206 = vadd.f32 %v786, %v820
        %v1207 = vadd.f32 %v791, %v821
        %v1208 = vadd.f32 %v796, %v822
        %v1209 = vadd.f32 %v801, %v823
        %v1210 = vadd.f32 %v806, %v824
        %1211 = vst [vmem:[#allocation2] sm:$0xff] %v1195
        %1212 = vst [vmem:[#allocation2 + $0x8] sm:$0xff] %v1196
        %1213 = vst [vmem:[#allocation2 + $0x10] sm:$0xff] %v1197
        %1214 = vst [vmem:[#allocation2 + $0x18] sm:$0xff] %v1198
        %1215 = vst [vmem:[#allocation2 + $0x20] sm:$0xff] %v1199
        %1216 = vst [vmem:[#allocation2 + $0x28] sm:$0xff] %v1200
        %1217 = vst [vmem:[#allocation2 + $0x30] sm:$0xff] %v1201
        %1218 = vst [vmem:[#allocation2 + $0x38] sm:$0xff] %v1202
        %1219 = vst [vmem:[#allocation2 + $0x40] sm:$0xff] %v1203
        %1220 = vst [vmem:[#allocation2 + $0x48] sm:$0xff] %v1204
        %1221 = vst [vmem:[#allocation2 + $0x50] sm:$0xff] %v1205
        %1222 = vst [vmem:[#allocation2 + $0x58] sm:$0xff] %v1206
        %1223 = vst [vmem:[#allocation2 + $0x60] sm:$0xff] %v1207
        %1224 = vst [vmem:[#allocation2 + $0x68] sm:$0xff] %v1208
        %1225 = vst [vmem:[#allocation2 + $0x70] sm:$0xff] %v1209
        %1226 = vst [vmem:[#allocation2 + $0x78] sm:$0xff] %v1210
        %1227 = vxpose.xlu0.b32.start [1/16] %v632, 128
        %1228 = vxpose.xlu0.b32.cont [2/16] %v633, 128
        %1229 = vxpose.xlu0.b32.cont [3/16] %v634, 128
        %1230 = vxpose.xlu0.b32.cont [4/16] %v635, 128
        %1231 = vxpose.xlu0.b32.cont [5/16] %v636, 128
        %1232 = vxpose.xlu0.b32.cont [6/16] %v637, 128
        %1233 = vxpose.xlu0.b32.cont [7/16] %v638, 128
        %1234 = vxpose.xlu0.b32.cont [8/16] %v639, 128
        %1235 = vxpose.xlu0.b32.cont [9/16] %v640, 128
        %1236 = vxpose.xlu0.b32.cont [10/16] %v641, 128
        %1237 = vxpose.xlu0.b32.cont [11/16] %v642, 128
        %1238 = vxpose.xlu0.b32.cont [12/16] %v643, 128
        %1239 = vxpose.xlu0.b32.cont [13/16] %v644, 128
        %1240 = vxpose.xlu0.b32.cont [14/16] %v645, 128
        %1241 = vxpose.xlu0.b32.cont [15/16] %v646, 128
        %1242 = vxpose.xlu0.b32.end [16/16] %v647, 128
        %v1243 = vpop.trf.xlu0
        %v1244 = vpop.trf.xlu0
        %v1245 = vpop.trf.xlu0
        %v1246 = vpop.trf.xlu0
        %v1247 = vpop.trf.xlu0
        %v1248 = vpop.trf.xlu0
        %v1249 = vpop.trf.xlu0
        %v1250 = vpop.trf.xlu0
        %v1251 = vpop.trf.xlu0
        %v1252 = vpop.trf.xlu0
        %v1253 = vpop.trf.xlu0
        %v1254 = vpop.trf.xlu0
        %v1255 = vpop.trf.xlu0
        %v1256 = vpop.trf.xlu0
        %v1257 = vpop.trf.xlu0
        %v1258 = vpop.trf.xlu0
        %1259 = vmatprep.subr.mxu0 0.0
        %1260 = vmatpush1.msra.mxu0 %v616
        %1261 = vmatprep.subr.mxu0 0.0
        %1262 = vmatpush1.msra.mxu0 %v617
        %1263 = vmatprep.subr.mxu0 0.0
        %1264 = vmatpush1.msra.mxu0 %v618
        %1265 = vmatprep.subr.mxu0 0.0
        %1266 = vmatpush1.msra.mxu0 %v619
        %1267 = vmatprep.subr.mxu0 0.0
        %1268 = vmatpush1.msra.mxu0 %v620
        %1269 = vmatprep.subr.mxu0 0.0
        %1270 = vmatpush1.msra.mxu0 %v621
        %1271 = vmatprep.subr.mxu0 0.0
        %1272 = vmatpush1.msra.mxu0 %v622
        %1273 = vmatprep.subr.mxu0 0.0
        %1274 = vmatpush1.msra.mxu0 %v623
        %1275 = vmatprep.subr.mxu0 0.0
        %1276 = vmatpush1.msra.mxu0 %v624
        %1277 = vmatprep.subr.mxu0 0.0
        %1278 = vmatpush1.msra.mxu0 %v625
        %1279 = vmatprep.subr.mxu0 0.0
        %1280 = vmatpush1.msra.mxu0 %v626
        %1281 = vmatprep.subr.mxu0 0.0
        %1282 = vmatpush1.msra.mxu0 %v627
        %1283 = vmatprep.subr.mxu0 0.0
        %1284 = vmatpush1.msra.mxu0 %v628
        %1285 = vmatprep.subr.mxu0 0.0
        %1286 = vmatpush1.msra.mxu0 %v629
        %1287 = vmatprep.subr.mxu0 0.0
        %1288 = vmatpush1.msra.mxu0 %v630
        %1289 = vmatprep.subr.mxu0 0.0
        %1290 = vmatpush1.msra.mxu0 %v631
        %1291 = vmatprep.subr.mxu0 0.0
        %1292 = vmatpush1.msra.mxu0 0.0
        %1293 = vmatprep.subr.mxu0 0.0
        %1294 = vmatpush1.msra.mxu0 0.0
        %1295 = vmatprep.subr.mxu0 0.0
        %1296 = vmatpush1.msra.mxu0 0.0
        %1297 = vmatprep.subr.mxu0 0.0
        %1298 = vmatpush1.msra.mxu0 0.0
        %1299 = vmatprep.subr.mxu0 0.0
        %1300 = vmatpush1.msra.mxu0 0.0
        %1301 = vmatprep.subr.mxu0 0.0
        %1302 = vmatpush1.msra.mxu0 0.0
        %1303 = vmatprep.subr.mxu0 0.0
        %1304 = vmatpush1.msra.mxu0 0.0
        %1305 = vmatprep.subr.mxu0 0.0
        %1306 = vmatpush1.msra.mxu0 0.0
        %1307 = vmatprep.subr.mxu0 0.0
        %1308 = vmatpush1.msra.mxu0 0.0
        %1309 = vmatprep.subr.mxu0 0.0
        %1310 = vmatpush1.msra.mxu0 0.0
        %1311 = vmatprep.subr.mxu0 0.0
        %1312 = vmatpush1.msra.mxu0 0.0
        %1313 = vmatprep.subr.mxu0 0.0
        %1314 = vmatpush1.msra.mxu0 0.0
        %1315 = vmatprep.subr.mxu0 0.0
        %1316 = vmatpush1.msra.mxu0 0.0
        %1317 = vmatprep.subr.mxu0 0.0
        %1318 = vmatpush1.msra.mxu0 0.0
        %1319 = vmatprep.subr.mxu0 0.0
        %1320 = vmatpush1.msra.mxu0 0.0
        %1321 = vmatprep.subr.mxu0 0.0
        %1322 = vmatpush1.msra.mxu0 0.0
        %1323 = vmatprep.mubr.f32.mxu0 0.0
        %1324 = vmatmul.mubr.f32.gmra.mrb[0].mxu0 %v1243
        %v1325 = vpop.f32.mrb[0].mxu0
        %v1326 = vadd.f32 0.0, %v1325
        %v1327 = vpop.f32.mrb[0].mxu0
        %1328 = vmatprep.mubr.f32.mxu0 0.0
        %1329 = vmatmul.mubr.f32.gmra.mrb[0].mxu0 %v1244
        %v1330 = vpop.f32.mrb[0].mxu0
        %v1331 = vadd.f32 0.0, %v1330
        %v1332 = vpop.f32.mrb[0].mxu0
        %1333 = vmatprep.mubr.f32.mxu0 0.0
        %1334 = vmatmul.mubr.f32.gmra.mrb[0].mxu0 %v1245
        %v1335 = vpop.f32.mrb[0].mxu0
        %v1336 = vadd.f32 0.0, %v1335
        %v1337 = vpop.f32.mrb[0].mxu0
        %1338 = vmatprep.mubr.f32.mxu0 0.0
        %1339 = vmatmul.mubr.f32.gmra.mrb[0].mxu0 %v1246
        %v1340 = vpop.f32.mrb[0].mxu0
        %v1341 = vadd.f32 0.0, %v1340
        %v1342 = vpop.f32.mrb[0].mxu0
        %1343 = vmatprep.mubr.f32.mxu0 0.0
        %1344 = vmatmul.mubr.f32.gmra.mrb[0].mxu0 %v1247
        %v1345 = vpop.f32.mrb[0].mxu0
        %v1346 = vadd.f32 0.0, %v1345
        %v1347 = vpop.f32.mrb[0].mxu0
        %1348 = vmatprep.mubr.f32.mxu0 0.0
        %1349 = vmatmul.mubr.f32.gmra.mrb[0].mxu0 %v1248
        %v1350 = vpop.f32.mrb[0].mxu0
        %v1351 = vadd.f32 0.0, %v1350
        %v1352 = vpop.f32.mrb[0].mxu0
        %1353 = vmatprep.mubr.f32.mxu0 0.0
        %1354 = vmatmul.mubr.f32.gmra.mrb[0].mxu0 %v1249
        %v1355 = vpop.f32.mrb[0].mxu0
        %v1356 = vadd.f32 0.0, %v1355
        %v1357 = vpop.f32.mrb[0].mxu0
        %1358 = vmatprep.mubr.f32.mxu0 0.0
        %1359 = vmatmul.mubr.f32.gmra.mrb[0].mxu0 %v1250
        %v1360 = vpop.f32.mrb[0].mxu0
        %v1361 = vadd.f32 0.0, %v1360
        %v1362 = vpop.f32.mrb[0].mxu0
        %1363 = vmatprep.mubr.f32.mxu0 0.0
        %1364 = vmatmul.mubr.f32.gmra.mrb[0].mxu0 %v1251
        %v1365 = vpop.f32.mrb[0].mxu0
        %v1366 = vadd.f32 0.0, %v1365
        %v1367 = vpop.f32.mrb[0].mxu0
        %1368 = vmatprep.mubr.f32.mxu0 0.0
        %1369 = vmatmul.mubr.f32.gmra.mrb[0].mxu0 %v1252
        %v1370 = vpop.f32.mrb[0].mxu0
        %v1371 = vadd.f32 0.0, %v1370
        %v1372 = vpop.f32.mrb[0].mxu0
        %1373 = vmatprep.mubr.f32.mxu0 0.0
        %1374 = vmatmul.mubr.f32.gmra.mrb[0].mxu0 %v1253
        %v1375 = vpop.f32.mrb[0].mxu0
        %v1376 = vadd.f32 0.0, %v1375
        %v1377 = vpop.f32.mrb[0].mxu0
        %1378 = vmatprep.mubr.f32.mxu0 0.0
        %1379 = vmatmul.mubr.f32.gmra.mrb[0].mxu0 %v1254
        %v1380 = vpop.f32.mrb[0].mxu0
        %v1381 = vadd.f32 0.0, %v1380
        %v1382 = vpop.f32.mrb[0].mxu0
        %1383 = vmatprep.mubr.f32.mxu0 0.0
        %1384 = vmatmul.mubr.f32.gmra.mrb[0].mxu0 %v1255
        %v1385 = vpop.f32.mrb[0].mxu0
        %v1386 = vadd.f32 0.0, %v1385
        %v1387 = vpop.f32.mrb[0].mxu0
        %1388 = vmatprep.mubr.f32.mxu0 0.0
        %1389 = vmatmul.mubr.f32.gmra.mrb[0].mxu0 %v1256
        %v1390 = vpop.f32.mrb[0].mxu0
        %v1391 = vadd.f32 0.0, %v1390
        %v1392 = vpop.f32.mrb[0].mxu0
        %1393 = vmatprep.mubr.f32.mxu0 0.0
        %1394 = vmatmul.mubr.f32.gmra.mrb[0].mxu0 %v1257
        %v1395 = vpop.f32.mrb[0].mxu0
        %v1396 = vadd.f32 0.0, %v1395
        %v1397 = vpop.f32.mrb[0].mxu0
        %1398 = vmatprep.mubr.f32.mxu0 0.0
        %1399 = vmatmul.mubr.f32.gmra.mrb[0].mxu0 %v1258
        %v1400 = vpop.f32.mrb[0].mxu0
        %v1401 = vadd.f32 0.0, %v1400
        %v1402 = vpop.f32.mrb[0].mxu0
        %1403 = vdwg.mxu0
        %v1404 = vmul.f32 %v1326, %v648
        %v1405 = vmul.f32 %v1331, %v649
        %v1406 = vmul.f32 %v1336, %v650
        %v1407 = vmul.f32 %v1341, %v651
        %v1408 = vmul.f32 %v1346, %v652
        %v1409 = vmul.f32 %v1351, %v653
        %v1410 = vmul.f32 %v1356, %v654
        %v1411 = vmul.f32 %v1361, %v655
        %v1412 = vmul.f32 %v1366, %v656
        %v1413 = vmul.f32 %v1371, %v657
        %v1414 = vmul.f32 %v1376, %v658
        %v1415 = vmul.f32 %v1381, %v659
        %v1416 = vmul.f32 %v1386, %v660
        %v1417 = vmul.f32 %v1391, %v661
        %v1418 = vmul.f32 %v1396, %v662
        %v1419 = vmul.f32 %v1401, %v663
        %v1420 = vld [vmem:[#allocation16] sm:$0xff]
        %v1421 = vld [vmem:[#allocation16 + $0x8] sm:$0xff]
        %v1422 = vld [vmem:[#allocation16 + $0x10] sm:$0xff]
        %v1423 = vld [vmem:[#allocation16 + $0x18] sm:$0xff]
        %v1424 = vld [vmem:[#allocation16 + $0x20] sm:$0xff]
        %v1425 = vld [vmem:[#allocation16 + $0x28] sm:$0xff]
        %v1426 = vld [vmem:[#allocation16 + $0x30] sm:$0xff]
        %v1427 = vld [vmem:[#allocation16 + $0x38] sm:$0xff]
        %v1428 = vld [vmem:[#allocation16 + $0x40] sm:$0xff]
        %v1429 = vld [vmem:[#allocation16 + $0x48] sm:$0xff]
        %v1430 = vld [vmem:[#allocation16 + $0x50] sm:$0xff]
        %v1431 = vld [vmem:[#allocation16 + $0x58] sm:$0xff]
        %v1432 = vld [vmem:[#allocation16 + $0x60] sm:$0xff]
        %v1433 = vld [vmem:[#allocation16 + $0x68] sm:$0xff]
        %v1434 = vld [vmem:[#allocation16 + $0x70] sm:$0xff]
        %v1435 = vld [vmem:[#allocation16 + $0x78] sm:$0xff]
        %v1436 = vld [vmem:[#allocation12] sm:$0xff]
        %v1437 = vld [vmem:[#allocation12 + $0x8] sm:$0xff]
        %v1438 = vld [vmem:[#allocation12 + $0x10] sm:$0xff]
        %v1439 = vld [vmem:[#allocation12 + $0x18] sm:$0xff]
        %v1440 = vld [vmem:[#allocation12 + $0x20] sm:$0xff]
        %v1441 = vld [vmem:[#allocation12 + $0x28] sm:$0xff]
        %v1442 = vld [vmem:[#allocation12 + $0x30] sm:$0xff]
        %v1443 = vld [vmem:[#allocation12 + $0x38] sm:$0xff]
        %v1444 = vld [vmem:[#allocation12 + $0x40] sm:$0xff]
        %v1445 = vld [vmem:[#allocation12 + $0x48] sm:$0xff]
        %v1446 = vld [vmem:[#allocation12 + $0x50] sm:$0xff]
        %v1447 = vld [vmem:[#allocation12 + $0x58] sm:$0xff]
        %v1448 = vld [vmem:[#allocation12 + $0x60] sm:$0xff]
        %v1449 = vld [vmem:[#allocation12 + $0x68] sm:$0xff]
        %v1450 = vld [vmem:[#allocation12 + $0x70] sm:$0xff]
        %v1451 = vld [vmem:[#allocation12 + $0x78] sm:$0xff]
        %v1452 = vld [vmem:[#allocation13] sm:$0xff]
        %v1453 = vld [vmem:[#allocation13 + $0x8] sm:$0xff]
        %v1454 = vld [vmem:[#allocation13 + $0x10] sm:$0xff]
        %v1455 = vld [vmem:[#allocation13 + $0x18] sm:$0xff]
        %v1456 = vld [vmem:[#allocation13 + $0x20] sm:$0xff]
        %v1457 = vld [vmem:[#allocation13 + $0x28] sm:$0xff]
        %v1458 = vld [vmem:[#allocation13 + $0x30] sm:$0xff]
        %v1459 = vld [vmem:[#allocation13 + $0x38] sm:$0xff]
        %v1460 = vld [vmem:[#allocation13 + $0x40] sm:$0xff]
        %v1461 = vld [vmem:[#allocation13 + $0x48] sm:$0xff]
        %v1462 = vld [vmem:[#allocation13 + $0x50] sm:$0xff]
        %v1463 = vld [vmem:[#allocation13 + $0x58] sm:$0xff]
        %v1464 = vld [vmem:[#allocation13 + $0x60] sm:$0xff]
        %v1465 = vld [vmem:[#allocation13 + $0x68] sm:$0xff]
        %v1466 = vld [vmem:[#allocation13 + $0x70] sm:$0xff]
        %v1467 = vld [vmem:[#allocation13 + $0x78] sm:$0xff]
        %1468 = vmatprep.subr.mxu0 0.0
        %1469 = vmatpush1.msra.mxu0 %v1404
        %1470 = vmatprep.subr.mxu0 0.0
        %1471 = vmatpush1.msra.mxu0 %v1405
        %1472 = vmatprep.subr.mxu0 0.0
        %1473 = vmatpush1.msra.mxu0 %v1406
        %1474 = vmatprep.subr.mxu0 0.0
        %1475 = vmatpush1.msra.mxu0 %v1407
        %1476 = vmatprep.subr.mxu0 0.0
        %1477 = vmatpush1.msra.mxu0 %v1408
        %1478 = vmatprep.subr.mxu0 0.0
        %1479 = vmatpush1.msra.mxu0 %v1409
        %1480 = vmatprep.subr.mxu0 0.0
        %1481 = vmatpush1.msra.mxu0 %v1410
        %1482 = vmatprep.subr.mxu0 0.0
        %1483 = vmatpush1.msra.mxu0 %v1411
        %1484 = vmatprep.subr.mxu0 0.0
        %1485 = vmatpush1.msra.mxu0 %v1412
        %1486 = vmatprep.subr.mxu0 0.0
        %1487 = vmatpush1.msra.mxu0 %v1413
        %1488 = vmatprep.subr.mxu0 0.0
        %1489 = vmatpush1.msra.mxu0 %v1414
        %1490 = vmatprep.subr.mxu0 0.0
        %1491 = vmatpush1.msra.mxu0 %v1415
        %1492 = vmatprep.subr.mxu0 0.0
        %1493 = vmatpush1.msra.mxu0 %v1416
        %1494 = vmatprep.subr.mxu0 0.0
        %1495 = vmatpush1.msra.mxu0 %v1417
        %1496 = vmatprep.subr.mxu0 0.0
        %1497 = vmatpush1.msra.mxu0 %v1418
        %1498 = vmatprep.subr.mxu0 0.0
        %1499 = vmatpush1.msra.mxu0 %v1419
        %1500 = vmatprep.subr.mxu0 0.0
        %1501 = vmatpush1.msra.mxu0 0.0
        %1502 = vmatprep.subr.mxu0 0.0
        %1503 = vmatpush1.msra.mxu0 0.0
        %1504 = vmatprep.subr.mxu0 0.0
        %1505 = vmatpush1.msra.mxu0 0.0
        %1506 = vmatprep.subr.mxu0 0.0
        %1507 = vmatpush1.msra.mxu0 0.0
        %1508 = vmatprep.subr.mxu0 0.0
        %1509 = vmatpush1.msra.mxu0 0.0
        %1510 = vmatprep.subr.mxu0 0.0
        %1511 = vmatpush1.msra.mxu0 0.0
        %1512 = vmatprep.subr.mxu0 0.0
        %1513 = vmatpush1.msra.mxu0 0.0
        %1514 = vmatprep.subr.mxu0 0.0
        %1515 = vmatpush1.msra.mxu0 0.0
        %1516 = vmatprep.subr.mxu0 0.0
        %1517 = vmatpush1.msra.mxu0 0.0
        %1518 = vmatprep.subr.mxu0 0.0
        %1519 = vmatpush1.msra.mxu0 0.0
        %1520 = vmatprep.subr.mxu0 0.0
        %1521 = vmatpush1.msra.mxu0 0.0
        %1522 = vmatprep.subr.mxu0 0.0
        %1523 = vmatpush1.msra.mxu0 0.0
        %1524 = vmatprep.subr.mxu0 0.0
        %1525 = vmatpush1.msra.mxu0 0.0
        %1526 = vmatprep.subr.mxu0 0.0
        %1527 = vmatpush1.msra.mxu0 0.0
        %1528 = vmatprep.subr.mxu0 0.0
        %1529 = vmatpush1.msra.mxu0 0.0
        %1530 = vmatprep.subr.mxu0 0.0
        %1531 = vmatpush1.msra.mxu0 0.0
        %1532 = vmatprep.mubr.f32.mxu0 0.0
        %1533 = vmatmul.mubr.f32.gmra.mrb[0].mxu0 %v1452
        %v1534 = vpop.f32.mrb[0].mxu0
        %v1535 = vadd.f32 0.0, %v1534
        %v1536 = vpop.f32.mrb[0].mxu0
        %1537 = vmatprep.mubr.f32.mxu0 0.0
        %1538 = vmatmul.mubr.f32.gmra.mrb[0].mxu0 %v1453
        %v1539 = vpop.f32.mrb[0].mxu0
        %v1540 = vadd.f32 0.0, %v1539
        %v1541 = vpop.f32.mrb[0].mxu0
        %1542 = vmatprep.mubr.f32.mxu0 0.0
        %1543 = vmatmul.mubr.f32.gmra.mrb[0].mxu0 %v1454
        %v1544 = vpop.f32.mrb[0].mxu0
        %v1545 = vadd.f32 0.0, %v1544
        %v1546 = vpop.f32.mrb[0].mxu0
        %1547 = vmatprep.mubr.f32.mxu0 0.0
        %1548 = vmatmul.mubr.f32.gmra.mrb[0].mxu0 %v1455
        %v1549 = vpop.f32.mrb[0].mxu0
        %v1550 = vadd.f32 0.0, %v1549
        %v1551 = vpop.f32.mrb[0].mxu0
        %1552 = vmatprep.mubr.f32.mxu0 0.0
        %1553 = vmatmul.mubr.f32.gmra.mrb[0].mxu0 %v1456
        %v1554 = vpop.f32.mrb[0].mxu0
        %v1555 = vadd.f32 0.0, %v1554
        %v1556 = vpop.f32.mrb[0].mxu0
        %1557 = vmatprep.mubr.f32.mxu0 0.0
        %1558 = vmatmul.mubr.f32.gmra.mrb[0].mxu0 %v1457
        %v1559 = vpop.f32.mrb[0].mxu0
        %v1560 = vadd.f32 0.0, %v1559
        %v1561 = vpop.f32.mrb[0].mxu0
        %1562 = vmatprep.mubr.f32.mxu0 0.0
        %1563 = vmatmul.mubr.f32.gmra.mrb[0].mxu0 %v1458
        %v1564 = vpop.f32.mrb[0].mxu0
        %v1565 = vadd.f32 0.0, %v1564
        %v1566 = vpop.f32.mrb[0].mxu0
        %1567 = vmatprep.mubr.f32.mxu0 0.0
        %1568 = vmatmul.mubr.f32.gmra.mrb[0].mxu0 %v1459
        %v1569 = vpop.f32.mrb[0].mxu0
        %v1570 = vadd.f32 0.0, %v1569
        %v1571 = vpop.f32.mrb[0].mxu0
        %1572 = vmatprep.mubr.f32.mxu0 0.0
        %1573 = vmatmul.mubr.f32.gmra.mrb[0].mxu0 %v1460
        %v1574 = vpop.f32.mrb[0].mxu0
        %v1575 = vadd.f32 0.0, %v1574
        %v1576 = vpop.f32.mrb[0].mxu0
        %1577 = vmatprep.mubr.f32.mxu0 0.0
        %1578 = vmatmul.mubr.f32.gmra.mrb[0].mxu0 %v1461
        %v1579 = vpop.f32.mrb[0].mxu0
        %v1580 = vadd.f32 0.0, %v1579
        %v1581 = vpop.f32.mrb[0].mxu0
        %1582 = vmatprep.mubr.f32.mxu0 0.0
        %1583 = vmatmul.mubr.f32.gmra.mrb[0].mxu0 %v1462
        %v1584 = vpop.f32.mrb[0].mxu0
        %v1585 = vadd.f32 0.0, %v1584
        %v1586 = vpop.f32.mrb[0].mxu0
        %1587 = vmatprep.mubr.f32.mxu0 0.0
        %1588 = vmatmul.mubr.f32.gmra.mrb[0].mxu0 %v1463
        %v1589 = vpop.f32.mrb[0].mxu0
        %v1590 = vadd.f32 0.0, %v1589
        %v1591 = vpop.f32.mrb[0].mxu0
        %1592 = vmatprep.mubr.f32.mxu0 0.0
        %1593 = vmatmul.mubr.f32.gmra.mrb[0].mxu0 %v1464
        %v1594 = vpop.f32.mrb[0].mxu0
        %v1595 = vadd.f32 0.0, %v1594
        %v1596 = vpop.f32.mrb[0].mxu0
        %1597 = vmatprep.mubr.f32.mxu0 0.0
        %1598 = vmatmul.mubr.f32.gmra.mrb[0].mxu0 %v1465
        %v1599 = vpop.f32.mrb[0].mxu0
        %v1600 = vadd.f32 0.0, %v1599
        %v1601 = vpop.f32.mrb[0].mxu0
        %1602 = vmatprep.mubr.f32.mxu0 0.0
        %1603 = vmatmul.mubr.f32.gmra.mrb[0].mxu0 %v1466
        %v1604 = vpop.f32.mrb[0].mxu0
        %v1605 = vadd.f32 0.0, %v1604
        %v1606 = vpop.f32.mrb[0].mxu0
        %1607 = vmatprep.mubr.f32.mxu0 0.0
        %1608 = vmatmul.mubr.f32.gmra.mrb[0].mxu0 %v1467
        %v1609 = vpop.f32.mrb[0].mxu0
        %v1610 = vadd.f32 0.0, %v1609
        %v1611 = vpop.f32.mrb[0].mxu0
        %1612 = vdwg.mxu0
        %1613 = vmatprep.subr.mxu0 0.0
        %1614 = vmatpush1.msra.mxu0 %v1326
        %1615 = vmatprep.subr.mxu0 0.0
        %1616 = vmatpush1.msra.mxu0 %v1331
        %1617 = vmatprep.subr.mxu0 0.0
        %1618 = vmatpush1.msra.mxu0 %v1336
        %1619 = vmatprep.subr.mxu0 0.0
        %1620 = vmatpush1.msra.mxu0 %v1341
        %1621 = vmatprep.subr.mxu0 0.0
        %1622 = vmatpush1.msra.mxu0 %v1346
        %1623 = vmatprep.subr.mxu0 0.0
        %1624 = vmatpush1.msra.mxu0 %v1351
        %1625 = vmatprep.subr.mxu0 0.0
        %1626 = vmatpush1.msra.mxu0 %v1356
        %1627 = vmatprep.subr.mxu0 0.0
        %1628 = vmatpush1.msra.mxu0 %v1361
        %1629 = vmatprep.subr.mxu0 0.0
        %1630 = vmatpush1.msra.mxu0 %v1366
        %1631 = vmatprep.subr.mxu0 0.0
        %1632 = vmatpush1.msra.mxu0 %v1371
        %1633 = vmatprep.subr.mxu0 0.0
        %1634 = vmatpush1.msra.mxu0 %v1376
        %1635 = vmatprep.subr.mxu0 0.0
        %1636 = vmatpush1.msra.mxu0 %v1381
        %1637 = vmatprep.subr.mxu0 0.0
        %1638 = vmatpush1.msra.mxu0 %v1386
        %1639 = vmatprep.subr.mxu0 0.0
        %1640 = vmatpush1.msra.mxu0 %v1391
        %1641 = vmatprep.subr.mxu0 0.0
        %1642 = vmatpush1.msra.mxu0 %v1396
        %1643 = vmatprep.subr.mxu0 0.0
        %1644 = vmatpush1.msra.mxu0 %v1401
        %1645 = vmatprep.subr.mxu0 0.0
        %1646 = vmatpush1.msra.mxu0 0.0
        %1647 = vmatprep.subr.mxu0 0.0
        %1648 = vmatpush1.msra.mxu0 0.0
        %1649 = vmatprep.subr.mxu0 0.0
        %1650 = vmatpush1.msra.mxu0 0.0
        %1651 = vmatprep.subr.mxu0 0.0
        %1652 = vmatpush1.msra.mxu0 0.0
        %1653 = vmatprep.subr.mxu0 0.0
        %1654 = vmatpush1.msra.mxu0 0.0
        %1655 = vmatprep.subr.mxu0 0.0
        %1656 = vmatpush1.msra.mxu0 0.0
        %1657 = vmatprep.subr.mxu0 0.0
        %1658 = vmatpush1.msra.mxu0 0.0
        %1659 = vmatprep.subr.mxu0 0.0
        %1660 = vmatpush1.msra.mxu0 0.0
        %1661 = vmatprep.subr.mxu0 0.0
        %1662 = vmatpush1.msra.mxu0 0.0
        %1663 = vmatprep.subr.mxu0 0.0
        %1664 = vmatpush1.msra.mxu0 0.0
        %1665 = vmatprep.subr.mxu0 0.0
        %1666 = vmatpush1.msra.mxu0 0.0
        %1667 = vmatprep.subr.mxu0 0.0
        %1668 = vmatpush1.msra.mxu0 0.0
        %1669 = vmatprep.subr.mxu0 0.0
        %1670 = vmatpush1.msra.mxu0 0.0
        %1671 = vmatprep.subr.mxu0 0.0
        %1672 = vmatpush1.msra.mxu0 0.0
        %1673 = vmatprep.subr.mxu0 0.0
        %1674 = vmatpush1.msra.mxu0 0.0
        %1675 = vmatprep.subr.mxu0 0.0
        %1676 = vmatpush1.msra.mxu0 0.0
        %1677 = vmatprep.mubr.f32.mxu0 0.0
        %1678 = vmatmul.mubr.f32.gmra.mrb[0].mxu0 %v1436
        %v1679 = vpop.f32.mrb[0].mxu0
        %v1680 = vadd.f32 %v1535, %v1679
        %v1681 = vpop.f32.mrb[0].mxu0
        %1682 = vmatprep.mubr.f32.mxu0 0.0
        %1683 = vmatmul.mubr.f32.gmra.mrb[0].mxu0 %v1437
        %v1684 = vpop.f32.mrb[0].mxu0
        %v1685 = vadd.f32 %v1540, %v1684
        %v1686 = vpop.f32.mrb[0].mxu0
        %1687 = vmatprep.mubr.f32.mxu0 0.0
        %1688 = vmatmul.mubr.f32.gmra.mrb[0].mxu0 %v1438
        %v1689 = vpop.f32.mrb[0].mxu0
        %v1690 = vadd.f32 %v1545, %v1689
        %v1691 = vpop.f32.mrb[0].mxu0
        %1692 = vmatprep.mubr.f32.mxu0 0.0
        %1693 = vmatmul.mubr.f32.gmra.mrb[0].mxu0 %v1439
        %v1694 = vpop.f32.mrb[0].mxu0
        %v1695 = vadd.f32 %v1550, %v1694
        %v1696 = vpop.f32.mrb[0].mxu0
        %1697 = vmatprep.mubr.f32.mxu0 0.0
        %1698 = vmatmul.mubr.f32.gmra.mrb[0].mxu0 %v1440
        %v1699 = vpop.f32.mrb[0].mxu0
        %v1700 = vadd.f32 %v1555, %v1699
        %v1701 = vpop.f32.mrb[0].mxu0
        %1702 = vmatprep.mubr.f32.mxu0 0.0
        %1703 = vmatmul.mubr.f32.gmra.mrb[0].mxu0 %v1441
        %v1704 = vpop.f32.mrb[0].mxu0
        %v1705 = vadd.f32 %v1560, %v1704
        %v1706 = vpop.f32.mrb[0].mxu0
        %1707 = vmatprep.mubr.f32.mxu0 0.0
        %1708 = vmatmul.mubr.f32.gmra.mrb[0].mxu0 %v1442
        %v1709 = vpop.f32.mrb[0].mxu0
        %v1710 = vadd.f32 %v1565, %v1709
        %v1711 = vpop.f32.mrb[0].mxu0
        %1712 = vmatprep.mubr.f32.mxu0 0.0
        %1713 = vmatmul.mubr.f32.gmra.mrb[0].mxu0 %v1443
        %v1714 = vpop.f32.mrb[0].mxu0
        %v1715 = vadd.f32 %v1570, %v1714
        %v1716 = vpop.f32.mrb[0].mxu0
        %1717 = vmatprep.mubr.f32.mxu0 0.0
        %1718 = vmatmul.mubr.f32.gmra.mrb[0].mxu0 %v1444
        %v1719 = vpop.f32.mrb[0].mxu0
        %v1720 = vadd.f32 %v1575, %v1719
        %v1721 = vpop.f32.mrb[0].mxu0
        %1722 = vmatprep.mubr.f32.mxu0 0.0
        %1723 = vmatmul.mubr.f32.gmra.mrb[0].mxu0 %v1445
        %v1724 = vpop.f32.mrb[0].mxu0
        %v1725 = vadd.f32 %v1580, %v1724
        %v1726 = vpop.f32.mrb[0].mxu0
        %1727 = vmatprep.mubr.f32.mxu0 0.0
        %1728 = vmatmul.mubr.f32.gmra.mrb[0].mxu0 %v1446
        %v1729 = vpop.f32.mrb[0].mxu0
        %v1730 = vadd.f32 %v1585, %v1729
        %v1731 = vpop.f32.mrb[0].mxu0
        %1732 = vmatprep.mubr.f32.mxu0 0.0
        %1733 = vmatmul.mubr.f32.gmra.mrb[0].mxu0 %v1447
        %v1734 = vpop.f32.mrb[0].mxu0
        %v1735 = vadd.f32 %v1590, %v1734
        %v1736 = vpop.f32.mrb[0].mxu0
        %1737 = vmatprep.mubr.f32.mxu0 0.0
        %1738 = vmatmul.mubr.f32.gmra.mrb[0].mxu0 %v1448
        %v1739 = vpop.f32.mrb[0].mxu0
        %v1740 = vadd.f32 %v1595, %v1739
        %v1741 = vpop.f32.mrb[0].mxu0
        %1742 = vmatprep.mubr.f32.mxu0 0.0
        %1743 = vmatmul.mubr.f32.gmra.mrb[0].mxu0 %v1449
        %v1744 = vpop.f32.mrb[0].mxu0
        %v1745 = vadd.f32 %v1600, %v1744
        %v1746 = vpop.f32.mrb[0].mxu0
        %1747 = vmatprep.mubr.f32.mxu0 0.0
        %1748 = vmatmul.mubr.f32.gmra.mrb[0].mxu0 %v1450
        %v1749 = vpop.f32.mrb[0].mxu0
        %v1750 = vadd.f32 %v1605, %v1749
        %v1751 = vpop.f32.mrb[0].mxu0
        %1752 = vmatprep.mubr.f32.mxu0 0.0
        %1753 = vmatmul.mubr.f32.gmra.mrb[0].mxu0 %v1451
        %v1754 = vpop.f32.mrb[0].mxu0
        %v1755 = vadd.f32 %v1610, %v1754
        %v1756 = vpop.f32.mrb[0].mxu0
        %1757 = vdwg.mxu0
        %v1758 = vadd.f32 %v1420, %v1680
        %v1759 = vadd.f32 %v1421, %v1685
        %v1760 = vadd.f32 %v1422, %v1690
        %v1761 = vadd.f32 %v1423, %v1695
        %v1762 = vadd.f32 %v1424, %v1700
        %v1763 = vadd.f32 %v1425, %v1705
        %v1764 = vadd.f32 %v1426, %v1710
        %v1765 = vadd.f32 %v1427, %v1715
        %v1766 = vadd.f32 %v1428, %v1720
        %v1767 = vadd.f32 %v1429, %v1725
        %v1768 = vadd.f32 %v1430, %v1730
        %v1769 = vadd.f32 %v1431, %v1735
        %v1770 = vadd.f32 %v1432, %v1740
        %v1771 = vadd.f32 %v1433, %v1745
        %v1772 = vadd.f32 %v1434, %v1750
        %v1773 = vadd.f32 %v1435, %v1755
        %1774 = vst [vmem:[#allocation16] sm:$0xff] %v1758
        %1775 = vst [vmem:[#allocation16 + $0x8] sm:$0xff] %v1759
        %1776 = vst [vmem:[#allocation16 + $0x10] sm:$0xff] %v1760
        %1777 = vst [vmem:[#allocation16 + $0x18] sm:$0xff] %v1761
        %1778 = vst [vmem:[#allocation16 + $0x20] sm:$0xff] %v1762
        %1779 = vst [vmem:[#allocation16 + $0x28] sm:$0xff] %v1763
        %1780 = vst [vmem:[#allocation16 + $0x30] sm:$0xff] %v1764
        %1781 = vst [vmem:[#allocation16 + $0x38] sm:$0xff] %v1765
        %1782 = vst [vmem:[#allocation16 + $0x40] sm:$0xff] %v1766
        %1783 = vst [vmem:[#allocation16 + $0x48] sm:$0xff] %v1767
        %1784 = vst [vmem:[#allocation16 + $0x50] sm:$0xff] %v1768
        %1785 = vst [vmem:[#allocation16 + $0x58] sm:$0xff] %v1769
        %1786 = vst [vmem:[#allocation16 + $0x60] sm:$0xff] %v1770
        %1787 = vst [vmem:[#allocation16 + $0x68] sm:$0xff] %v1771
        %1788 = vst [vmem:[#allocation16 + $0x70] sm:$0xff] %v1772
        %1789 = vst [vmem:[#allocation16 + $0x78] sm:$0xff] %v1773
        %v1790 = vadd.f32 %v1326, %v1404
        %v1791 = vadd.f32 %v1331, %v1405
        %v1792 = vadd.f32 %v1336, %v1406
        %v1793 = vadd.f32 %v1341, %v1407
        %v1794 = vadd.f32 %v1346, %v1408
        %v1795 = vadd.f32 %v1351, %v1409
        %v1796 = vadd.f32 %v1356, %v1410
        %v1797 = vadd.f32 %v1361, %v1411
        %v1798 = vadd.f32 %v1366, %v1412
        %v1799 = vadd.f32 %v1371, %v1413
        %v1800 = vadd.f32 %v1376, %v1414
        %v1801 = vadd.f32 %v1381, %v1415
        %v1802 = vadd.f32 %v1386, %v1416
        %v1803 = vadd.f32 %v1391, %v1417
        %v1804 = vadd.f32 %v1396, %v1418
        %v1805 = vadd.f32 %v1401, %v1419
        %1806 = vst [vmem:[#allocation3] sm:$0xff] %v1790
        %1807 = vst [vmem:[#allocation3 + $0x8] sm:$0xff] %v1791
        %1808 = vst [vmem:[#allocation3 + $0x10] sm:$0xff] %v1792
        %1809 = vst [vmem:[#allocation3 + $0x18] sm:$0xff] %v1793
        %1810 = vst [vmem:[#allocation3 + $0x20] sm:$0xff] %v1794
        %1811 = vst [vmem:[#allocation3 + $0x28] sm:$0xff] %v1795
        %1812 = vst [vmem:[#allocation3 + $0x30] sm:$0xff] %v1796
        %1813 = vst [vmem:[#allocation3 + $0x38] sm:$0xff] %v1797
        %1814 = vst [vmem:[#allocation3 + $0x40] sm:$0xff] %v1798
        %1815 = vst [vmem:[#allocation3 + $0x48] sm:$0xff] %v1799
        %1816 = vst [vmem:[#allocation3 + $0x50] sm:$0xff] %v1800
        %1817 = vst [vmem:[#allocation3 + $0x58] sm:$0xff] %v1801
        %1818 = vst [vmem:[#allocation3 + $0x60] sm:$0xff] %v1802
        %1819 = vst [vmem:[#allocation3 + $0x68] sm:$0xff] %v1803
        %1820 = vst [vmem:[#allocation3 + $0x70] sm:$0xff] %v1804
        %1821 = vst [vmem:[#allocation3 + $0x78] sm:$0xff] %v1805
        // Predicated region
        $region85: #{tpu_custom_call.1} parent=55 // pred_check
          %p1822 = pneg %p230
        $region86: #{tpu_custom_call.1} parent=55 // pred_check_branch
          %1824 = sbr.rel (%p1822) target = $region88
        $region87: #{tpu_custom_call.1} parent=55 // pred_region
          %s1826 = ssub.s32 2048, 2048
          %1827 = vsyncadd [#allocation6], %s1826
          %s1828 = sshll.u32 [#allocation15], 4
          %s1829 = int_to_ptr.vmem [resolvable:$true] %s1828
          %1834 = dma.vmem_to_hbm [thread:$0]  %s1829, 2048, %s9, [#allocation6], 128, 128, 8
        $region88: #{tpu_custom_call.1} parent=55 // pred_fallthru
          _
        // Predicated region
        $region89: #{tpu_custom_call.1} parent=55 // pred_check
          %p1835 = pneg %p251
        $region90: #{tpu_custom_call.1} parent=55 // pred_check_branch
          %1837 = sbr.rel (%p1835) target = $region92
        $region91: #{tpu_custom_call.1} parent=55 // pred_region
          %s1839 = ssub.s32 2048, 2048
          %1840 = vsyncadd [#allocation17], %s1839
          %s1841 = sshll.u32 [#allocation16], 4
          %s1842 = int_to_ptr.vmem [resolvable:$true] %s1841
          %1847 = dma.vmem_to_hbm [thread:$0]  %s1842, 2048, %s10, [#allocation17], 128, 128, 8
        $region92: #{tpu_custom_call.1} parent=55 // pred_fallthru
          _
        // Predicated region
        $region93: #{tpu_custom_call.1} parent=55 // pred_check
          %p1848 = pneg %p230
        $region94: #{tpu_custom_call.1} parent=55 // pred_check_branch
          %1850 = sbr.rel (%p1848) target = $region96
        $region95: #{tpu_custom_call.1} parent=55 // pred_region
          %1851 = dma.done [#allocation6], 2048
        $region96: #{tpu_custom_call.1} parent=55 // pred_fallthru
          _
        // Predicated region
        $region97: #{tpu_custom_call.1} parent=55 // pred_check
          %p1852 = pneg %p251
        $region98: #{tpu_custom_call.1} parent=55 // pred_check_branch
          %1854 = sbr.rel (%p1852) target = $region100
        $region99: #{tpu_custom_call.1} parent=55 // pred_region
          %1855 = dma.done [#allocation17], 2048
        $region100: #{tpu_custom_call.1} parent=55 // pred_fallthru
          _
      $region56: #{tpu_custom_call.1} parent=5 // pred_fallthru
        _
      %p1856 = scmp.le.s32.totalorder 2, %s23
      // Predicated region
      $region101: #{tpu_custom_call.1} parent=5 // pred_check
        %p1857 = pneg %p1856
      $region102: #{tpu_custom_call.1} parent=5 // pred_check_branch
        %1859 = sbr.rel (%p1857) target = $region104
      $region103: #{tpu_custom_call.1} parent=5 // pred_region
        %s1860 = ssub.s32 %s23, 2
      $region104: #{tpu_custom_call.1} parent=5 // pred_fallthru
        _
    $region6: #{tpu_custom_call.1} parent=1 // loop_footer
      %s27 = sadd.s32 1, %s23
    $region7: #{tpu_custom_call.1} parent=1 // loop_footer_branch
      %22 = sbr.rel target = $region3
    $region8: #{tpu_custom_call.1} parent=1 // loop_exit
      _
    %1861 = vsyncpa [#allocation5], 1
    %s1862 = scalar_lea.sflag [#allocation5], 1
    %1863 = vsyncpa %s1862, 1
    %1864 = vsyncpa [#allocation8], 1
    %1865 = vsyncpa [#allocation11], 1
    %1866 = vsyncpa [#allocation14], 1
    %1867 = vsyncpa [#allocation6], 1
    %s1868 = scalar_lea.sflag [#allocation6], 1
    %1869 = vsyncpa %s1868, 1
    %1870 = vsyncpa [#allocation17], 1

</llo_original>
